<compile_context>
chip_gen: v7x
topology: tpu7x:2x2x1
jax: 0.10.0
libtpu: 0.0.40
codegen_flags: <defaults>
</compile_context>

<pallas_src>
import math

import jax
import jax.numpy as jnp
from jax.experimental import pallas as pl
from jax.experimental.pallas import tpu as pltpu


def _fold_bn(params, eps=1e-5):
    """Fold inference-mode BatchNorm2d into the (bias-free) first 1x1 conv."""
    s = params["bn_gamma"] * jax.lax.rsqrt(params["bn_var"] + eps)      # (3,)
    w1f = params["w1"] * s[:, None]                                     # (3, 3)
    b1f = params["bn_beta"] - s * params["bn_mean"]                     # (3,)
    return w1f, b1f


def _pick_tq(n, n_planes=16, budget_bytes=12 << 20):
    """Largest query-row tile TQ (divisor of n, multiple of 8 or n itself)
    whose ~n_planes live (TQ, n) f32 planes fit the per-step VMEM budget."""
    cap = max(8, budget_bytes // (n_planes * n * 4))
    if n <= cap:
        return n
    best = 0
    for d in range(8, min(n, cap) + 1, 8):
        if n % d == 0:
            best = d
    return best if best else n


def _make_kernel(n, out_channel, radius, k_neighbors):
    r2 = float(radius) * float(radius)
    kf = float(k_neighbors)

    def kernel(pos_ref, post_ref, tri_ref, x_ref, w1_ref, b1_ref, w2_ref,
               b2_ref, out_ref):
        pos_q = pos_ref[0]       # (tq, 3)  query rows of this tile
        pos_t = post_ref[0]      # (3, n)   all points, coord on sublanes

        # Pairwise per-coordinate differences; query i on sublanes, neighbour
        # j on lanes:  rel_d[i, j] = pos[j, d] - pos[i, d]
        rel = [pos_t[d:d + 1, :] - pos_q[:, d:d + 1] for d in range(3)]
        d2 = rel[0] * rel[0] + rel[1] * rel[1] + rel[2] * rel[2]   # (tq, n)
        inball = d2 < r2                                           # (tq, n)

        # "First k in-ball points by index": inclusive prefix count along j via
        # an upper-triangular matmul on the MXU.  0/1 operands in bf16 with f32
        # accumulation is bit-exact and halves operand traffic; `tri` is a
        # resident input (constant index_map), not rebuilt per step.
        cnt = jnp.dot(inball.astype(jnp.bfloat16), tri_ref[...],
                      preferred_element_type=jnp.float32)          # (tq, n)
        selected = inball & (cnt <= kf)
        # Additive mask: replaces C per-channel vselects with vadds.
        neg_mask = jnp.where(selected, 0.0, -1e30)                 # (tq, n)

        # pe_mlp layer 1 (conv1 with BatchNorm folded) + ReLU.  Channel dims
        # are 3, so unroll as scalar multiply-adds on the VPU (K=3 would waste
        # the MXU).
        h = []
        for c in range(3):
            acc = b1_ref[c] + w1_ref[c * 3] * rel[0]
            acc = acc + w1_ref[c * 3 + 1] * rel[1]
            acc = acc + w1_ref[c * 3 + 2] * rel[2]
            h.append(jnp.maximum(acc, 0.0))                        # (tq, n)
        del rel, d2, inball, cnt, selected   # keep the live set small

        # pe_mlp layer 2 + masked max over neighbours (lane axis).  Bias is
        # hoisted out of the max; per-channel (tq, 1) maxima are concatenated
        # once instead of 32 serial one-hot selects.
        cols = []
        for co in range(out_channel):
            f = w2_ref[co * 3] * h[0]
            f = f + w2_ref[co * 3 + 1] * h[1]
            f = f + w2_ref[co * 3 + 2] * h[2]
            col = jnp.max(f + neg_mask, axis=-1, keepdims=True)    # (tq, 1)
            cols.append(col + b2_ref[co])
        pe = jnp.concatenate(cols, axis=-1)                        # (tq, C)

        out_ref[0] = (x_ref[0] + pe).astype(out_ref.dtype)

    return kernel


def pe_generator(pos, x, radius, k, params):
    """Pallas implementation of PEGenerator.forward (inference)."""
    b, n, _ = pos.shape
    out_channel = x.shape[-1]

    # Host-side glue (all tiny): fold BN into conv1, flatten weights for SMEM,
    # build the (b, 3, n) view of pos (no in-kernel transposes) and the
    # upper-triangular prefix-count matrix (resident in the kernel).
    w1f, b1f = _fold_bn(params)
    w1_flat = w1f.reshape(-1)                    # (9,)
    w2_flat = params["w2"].reshape(-1)           # (C*3,)
    b2 = params["b2"]                            # (C,)
    pos_t = jnp.swapaxes(pos, 1, 2)              # (b, 3, n)
    tri = (jnp.arange(n)[:, None] <= jnp.arange(n)[None, :]
           ).astype(jnp.bfloat16)                # (n, n)

    tq = _pick_tq(n)
    n_tiles = n // tq

    # VMEM budget: ~16 live (tq, n) f32 planes + resident tri + double-buffered
    # pos/x/out tiles, with 2x headroom, clamped below v7x's 64 MiB ceiling.
    est = 16 * tq * n * 4 + n * n * 2 + 2 * 2 * tq * (out_channel + 3) * 4
    vmem_bytes = int(min(max(2 * est, 16 << 20), 48 << 20))

    kernel = _make_kernel(n, out_channel, radius, k)
    smem = pl.BlockSpec(memory_space=pltpu.MemorySpace.SMEM)

    return pl.pallas_call(
        kernel,
        out_shape=jax.ShapeDtypeStruct((b, n, out_channel), x.dtype),
        grid_spec=pltpu.PrefetchScalarGridSpec(
            num_scalar_prefetch=0,
            grid=(b, n_tiles),
            in_specs=[
                pl.BlockSpec((1, tq, 3), lambda bi, qi: (bi, qi, 0)),   # pos rows
                pl.BlockSpec((1, 3, n), lambda bi, qi: (bi, 0, 0)),     # pos^T
                pl.BlockSpec((n, n), lambda bi, qi: (0, 0)),            # tri (resident)
                pl.BlockSpec((1, tq, out_channel),
                             lambda bi, qi: (bi, qi, 0)),               # x
                smem,   # w1 (BN folded), flat (9,)
                smem,   # b1 (BN folded), (3,)
                smem,   # w2, flat (C*3,)
                smem,   # b2, (C,)
            ],
            out_specs=pl.BlockSpec((1, tq, out_channel),
                                   lambda bi, qi: (bi, qi, 0)),
        ),
        compiler_params=pltpu.CompilerParams(
            dimension_semantics=("parallel", "parallel"),
            vmem_limit_bytes=vmem_bytes),
    )(pos, pos_t, tri, x, w1_flat, b1f, w2_flat, b2)


def reference(pos, x, radius, k, params):
    """Pure-JAX reference mirroring the PyTorch forward (inference-mode BN)."""
    rel = pos[:, None, :, :] - pos[:, :, None, :]      # (b, i, j, 3) = pos_j - pos_i
    d2 = jnp.sum(rel * rel, axis=-1)                   # (b, i, j)
    inball = d2 < radius * radius
    cnt = jnp.cumsum(inball.astype(jnp.int32), axis=-1)
    selected = inball & (cnt <= k)
    w1f, b1f = _fold_bn(params)
    h = jnp.maximum(jnp.einsum("bijd,cd->bijc", rel, w1f) + b1f, 0.0)
    f = jnp.einsum("bijc,oc->bijo", h, params["w2"]) + params["b2"]
    f = jnp.where(selected[..., None], f, -1e30)
    pe = jnp.max(f, axis=2)                            # (b, n, C)
    return x + pe


def init_params(key, out_channel):
    """PyTorch-default-ish init (1x1 convs), randomized BN stats for a real test."""
    ks = jax.random.split(key, 7)
    bound = 1.0 / math.sqrt(3.0)
    w1 = jax.random.uniform(ks[0], (3, 3), jnp.float32, -bound, bound)
    w2 = jax.random.uniform(ks[1], (out_channel, 3), jnp.float32, -bound, bound)
    b2 = jax.random.uniform(ks[2], (out_channel,), jnp.float32, -bound, bound)
    bn_gamma = jax.random.uniform(ks[3], (3,), jnp.float32, 0.5, 1.5)
    bn_beta = 0.1 * jax.random.normal(ks[4], (3,), jnp.float32)
    bn_mean = 0.1 * jax.random.normal(ks[5], (3,), jnp.float32)
    bn_var = jax.random.uniform(ks[6], (3,), jnp.float32, 0.5, 1.5)
    return dict(w1=w1, w2=w2, b2=b2, bn_gamma=bn_gamma, bn_beta=bn_beta,
                bn_mean=bn_mean, bn_var=bn_var)


if __name__ == "__main__":
    b, n, out_channel = 2, 64, 32
    radius, k = 0.35, 8

    key = jax.random.PRNGKey(0)
    kpos, kx, kp = jax.random.split(key, 3)
    pos = jax.random.uniform(kpos, (b, n, 3), jnp.float32)          # points in unit cube
    x = jax.random.normal(kx, (b, n, out_channel), jnp.float32)
    params = init_params(kp, out_channel)

    out = pe_generator(pos, x, radius, k, params)
    out = jax.block_until_ready(out)

    ref = reference(pos, x, radius, k, params)
    assert out.shape == (b, n, out_channel)
    assert jnp.allclose(out, ref, rtol=1e-4, atol=1e-4), "mismatch vs reference"
    print("KERNEL_OK")
</pallas_src>

<mosaic_0001>
module attributes {stable_mosaic.version = 11 : i64} {
  func.func @kernel(%arg0: i32, %arg1: i32, %arg2: memref<1x64x3xf32, #tpu.memory_space<vmem>>, %arg3: memref<1x3x64xf32, #tpu.memory_space<vmem>>, %arg4: memref<64x64xbf16, #tpu.memory_space<vmem>>, %arg5: memref<1x64x32xf32, #tpu.memory_space<vmem>>, %arg6: memref<9xf32, #tpu.memory_space<smem>>, %arg7: memref<3xf32, #tpu.memory_space<smem>>, %arg8: memref<96xf32, #tpu.memory_space<smem>>, %arg9: memref<32xf32, #tpu.memory_space<smem>>, %arg10: memref<1x64x32xf32, #tpu.memory_space<vmem>>) attributes {dimension_semantics = [#tpu.dimension_semantics<parallel>, #tpu.dimension_semantics<parallel>], iteration_bounds = array<i64: 2, 1>, scalar_prefetch = 0 : i64, scratch_operands = 0 : i64, tpu.core_type = #tpu.core_type<tc>, window_params = [{transform_indices = @transform_0, window_bounds = array<i64: 1, 64, 3>}, {transform_indices = @transform_1, window_bounds = array<i64: 1, 3, 64>}, {pipeline_mode = #tpu.pipeline_mode<synchronous>, transform_indices = @transform_2, window_bounds = array<i64: 64, 64>}, {transform_indices = @transform_3, window_bounds = array<i64: 1, 64, 32>}, {transform_indices = @transform_4, window_bounds = array<i64: 9>}, {transform_indices = @transform_5, window_bounds = array<i64: 3>}, {transform_indices = @transform_6, window_bounds = array<i64: 96>}, {transform_indices = @transform_7, window_bounds = array<i64: 32>}, {transform_indices = @transform_8, window_bounds = array<i64: 1, 64, 32>}]} {
    %c0 = arith.constant 0 : index
    %c0_0 = arith.constant 0 : index
    %c0_1 = arith.constant 0 : index
    %0 = vector.load %arg2[%c0, %c0_0, %c0_1] : memref<1x64x3xf32, #tpu.memory_space<vmem>>, vector<1x64x3xf32>
    %1 = vector.shape_cast %0 : vector<1x64x3xf32> to vector<64x3xf32>
    %c0_2 = arith.constant 0 : index
    %c0_3 = arith.constant 0 : index
    %c0_4 = arith.constant 0 : index
    %2 = vector.load %arg3[%c0_2, %c0_3, %c0_4] : memref<1x3x64xf32, #tpu.memory_space<vmem>>, vector<1x3x64xf32>
    %3 = vector.shape_cast %2 : vector<1x3x64xf32> to vector<3x64xf32>
    %4 = vector.extract_strided_slice %3 {offsets = [0, 0], sizes = [1, 64], strides = [1, 1]} : vector<3x64xf32> to vector<1x64xf32>
    %5 = vector.extract_strided_slice %1 {offsets = [0, 0], sizes = [64, 1], strides = [1, 1]} : vector<64x3xf32> to vector<64x1xf32>
    %6 = vector.broadcast %4 : vector<1x64xf32> to vector<64x64xf32>
    %7 = vector.broadcast %5 : vector<64x1xf32> to vector<64x64xf32>
    %8 = arith.subf %6, %7 : vector<64x64xf32>
    %9 = vector.extract_strided_slice %3 {offsets = [1, 0], sizes = [1, 64], strides = [1, 1]} : vector<3x64xf32> to vector<1x64xf32>
    %10 = vector.extract_strided_slice %1 {offsets = [0, 1], sizes = [64, 1], strides = [1, 1]} : vector<64x3xf32> to vector<64x1xf32>
    %11 = vector.broadcast %9 : vector<1x64xf32> to vector<64x64xf32>
    %12 = vector.broadcast %10 : vector<64x1xf32> to vector<64x64xf32>
    %13 = arith.subf %11, %12 : vector<64x64xf32>
    %14 = vector.extract_strided_slice %3 {offsets = [2, 0], sizes = [1, 64], strides = [1, 1]} : vector<3x64xf32> to vector<1x64xf32>
    %15 = vector.extract_strided_slice %1 {offsets = [0, 2], sizes = [64, 1], strides = [1, 1]} : vector<64x3xf32> to vector<64x1xf32>
    %16 = vector.broadcast %14 : vector<1x64xf32> to vector<64x64xf32>
    %17 = vector.broadcast %15 : vector<64x1xf32> to vector<64x64xf32>
    %18 = arith.subf %16, %17 : vector<64x64xf32>
    %19 = arith.mulf %8, %8 : vector<64x64xf32>
    %20 = arith.mulf %13, %13 : vector<64x64xf32>
    %21 = arith.addf %19, %20 : vector<64x64xf32>
    %22 = arith.mulf %18, %18 : vector<64x64xf32>
    %23 = arith.addf %21, %22 : vector<64x64xf32>
    %cst = arith.constant 1.225000e-01 : f32
    %24 = vector.broadcast %cst : f32 to vector<64x64xf32>
    %25 = arith.cmpf olt, %23, %24 : vector<64x64xf32>
    %26 = arith.extui %25 : vector<64x64xi1> to vector<64x64xi32>
    %27 = arith.sitofp %26 : vector<64x64xi32> to vector<64x64xf32>
    %28 = arith.truncf %27 : vector<64x64xf32> to vector<64x64xbf16>
    %c0_5 = arith.constant 0 : index
    %c0_6 = arith.constant 0 : index
    %29 = vector.load %arg4[%c0_5, %c0_6] : memref<64x64xbf16, #tpu.memory_space<vmem>>, vector<64x64xbf16>
    %cst_7 = arith.constant dense<0.000000e+00> : vector<64x64xf32>
    %30 = tpu.matmul %28, %29, %cst_7 {dimension_numbers = #tpu.dot_dimension_numbers<[1], [0], [0], [1], [0, 0, 1, 1], [], []>} : vector<64x64xbf16>, vector<64x64xbf16>, vector<64x64xf32> -> vector<64x64xf32>
    %cst_8 = arith.constant 8.000000e+00 : f32
    %31 = vector.broadcast %cst_8 : f32 to vector<64x64xf32>
    %32 = arith.cmpf ole, %30, %31 : vector<64x64xf32>
    %33 = arith.andi %25, %32 : vector<64x64xi1>
    %cst_9 = arith.constant 0.000000e+00 : f32
    %cst_10 = arith.constant -1.000000e+30 : f32
    %34 = vector.broadcast %cst_9 : f32 to vector<64x64xf32>
    %35 = vector.broadcast %cst_10 : f32 to vector<64x64xf32>
    %36 = arith.select %33, %34, %35 : vector<64x64xi1>, vector<64x64xf32>
    %c0_11 = arith.constant 0 : index
    %37 = memref.load %arg7[%c0_11] : memref<3xf32, #tpu.memory_space<smem>>
    %c0_12 = arith.constant 0 : index
    %38 = memref.load %arg6[%c0_12] : memref<9xf32, #tpu.memory_space<smem>>
    %39 = vector.broadcast %38 : f32 to vector<64x64xf32>
    %40 = arith.mulf %39, %8 : vector<64x64xf32>
    %41 = vector.broadcast %37 : f32 to vector<64x64xf32>
    %42 = arith.addf %41, %40 : vector<64x64xf32>
    %c1 = arith.constant 1 : index
    %43 = memref.load %arg6[%c1] : memref<9xf32, #tpu.memory_space<smem>>
    %44 = vector.broadcast %43 : f32 to vector<64x64xf32>
    %45 = arith.mulf %44, %13 : vector<64x64xf32>
    %46 = arith.addf %42, %45 : vector<64x64xf32>
    %c2 = arith.constant 2 : index
    %47 = memref.load %arg6[%c2] : memref<9xf32, #tpu.memory_space<smem>>
    %48 = vector.broadcast %47 : f32 to vector<64x64xf32>
    %49 = arith.mulf %48, %18 : vector<64x64xf32>
    %50 = arith.addf %46, %49 : vector<64x64xf32>
    %cst_13 = arith.constant 0.000000e+00 : f32
    %51 = vector.broadcast %cst_13 : f32 to vector<64x64xf32>
    %52 = arith.maximumf %50, %51 : vector<64x64xf32>
    %c1_14 = arith.constant 1 : index
    %53 = memref.load %arg7[%c1_14] : memref<3xf32, #tpu.memory_space<smem>>
    %c3 = arith.constant 3 : index
    %54 = memref.load %arg6[%c3] : memref<9xf32, #tpu.memory_space<smem>>
    %55 = vector.broadcast %54 : f32 to vector<64x64xf32>
    %56 = arith.mulf %55, %8 : vector<64x64xf32>
    %57 = vector.broadcast %53 : f32 to vector<64x64xf32>
    %58 = arith.addf %57, %56 : vector<64x64xf32>
    %c4 = arith.constant 4 : index
    %59 = memref.load %arg6[%c4] : memref<9xf32, #tpu.memory_space<smem>>
    %60 = vector.broadcast %59 : f32 to vector<64x64xf32>
    %61 = arith.mulf %60, %13 : vector<64x64xf32>
    %62 = arith.addf %58, %61 : vector<64x64xf32>
    %c5 = arith.constant 5 : index
    %63 = memref.load %arg6[%c5] : memref<9xf32, #tpu.memory_space<smem>>
    %64 = vector.broadcast %63 : f32 to vector<64x64xf32>
    %65 = arith.mulf %64, %18 : vector<64x64xf32>
    %66 = arith.addf %62, %65 : vector<64x64xf32>
    %cst_15 = arith.constant 0.000000e+00 : f32
    %67 = vector.broadcast %cst_15 : f32 to vector<64x64xf32>
    %68 = arith.maximumf %66, %67 : vector<64x64xf32>
    %c2_16 = arith.constant 2 : index
    %69 = memref.load %arg7[%c2_16] : memref<3xf32, #tpu.memory_space<smem>>
    %c6 = arith.constant 6 : index
    %70 = memref.load %arg6[%c6] : memref<9xf32, #tpu.memory_space<smem>>
    %71 = vector.broadcast %70 : f32 to vector<64x64xf32>
    %72 = arith.mulf %71, %8 : vector<64x64xf32>
    %73 = vector.broadcast %69 : f32 to vector<64x64xf32>
    %74 = arith.addf %73, %72 : vector<64x64xf32>
    %c7 = arith.constant 7 : index
    %75 = memref.load %arg6[%c7] : memref<9xf32, #tpu.memory_space<smem>>
    %76 = vector.broadcast %75 : f32 to vector<64x64xf32>
    %77 = arith.mulf %76, %13 : vector<64x64xf32>
    %78 = arith.addf %74, %77 : vector<64x64xf32>
    %c8 = arith.constant 8 : index
    %79 = memref.load %arg6[%c8] : memref<9xf32, #tpu.memory_space<smem>>
    %80 = vector.broadcast %79 : f32 to vector<64x64xf32>
    %81 = arith.mulf %80, %18 : vector<64x64xf32>
    %82 = arith.addf %78, %81 : vector<64x64xf32>
    %cst_17 = arith.constant 0.000000e+00 : f32
    %83 = vector.broadcast %cst_17 : f32 to vector<64x64xf32>
    %84 = arith.maximumf %82, %83 : vector<64x64xf32>
    %c0_18 = arith.constant 0 : index
    %85 = memref.load %arg8[%c0_18] : memref<96xf32, #tpu.memory_space<smem>>
    %86 = vector.broadcast %85 : f32 to vector<64x64xf32>
    %87 = arith.mulf %86, %52 : vector<64x64xf32>
    %c1_19 = arith.constant 1 : index
    %88 = memref.load %arg8[%c1_19] : memref<96xf32, #tpu.memory_space<smem>>
    %89 = vector.broadcast %88 : f32 to vector<64x64xf32>
    %90 = arith.mulf %89, %68 : vector<64x64xf32>
    %91 = arith.addf %87, %90 : vector<64x64xf32>
    %c2_20 = arith.constant 2 : index
    %92 = memref.load %arg8[%c2_20] : memref<96xf32, #tpu.memory_space<smem>>
    %93 = vector.broadcast %92 : f32 to vector<64x64xf32>
    %94 = arith.mulf %93, %84 : vector<64x64xf32>
    %95 = arith.addf %91, %94 : vector<64x64xf32>
    %96 = arith.addf %95, %36 : vector<64x64xf32>
    %cst_21 = arith.constant dense<0xFF800000> : vector<64xf32>
    %97 = vector.multi_reduction <maximumf>, %96, %cst_21 [1] : vector<64x64xf32> to vector<64xf32>
    %98 = vector.shape_cast %97 : vector<64xf32> to vector<64x1xf32>
    %c0_22 = arith.constant 0 : index
    %99 = memref.load %arg9[%c0_22] : memref<32xf32, #tpu.memory_space<smem>>
    %100 = vector.broadcast %99 : f32 to vector<64x1xf32>
    %101 = arith.addf %98, %100 : vector<64x1xf32>
    %c3_23 = arith.constant 3 : index
    %102 = memref.load %arg8[%c3_23] : memref<96xf32, #tpu.memory_space<smem>>
    %103 = vector.broadcast %102 : f32 to vector<64x64xf32>
    %104 = arith.mulf %103, %52 : vector<64x64xf32>
    %c4_24 = arith.constant 4 : index
    %105 = memref.load %arg8[%c4_24] : memref<96xf32, #tpu.memory_space<smem>>
    %106 = vector.broadcast %105 : f32 to vector<64x64xf32>
    %107 = arith.mulf %106, %68 : vector<64x64xf32>
    %108 = arith.addf %104, %107 : vector<64x64xf32>
    %c5_25 = arith.constant 5 : index
    %109 = memref.load %arg8[%c5_25] : memref<96xf32, #tpu.memory_space<smem>>
    %110 = vector.broadcast %109 : f32 to vector<64x64xf32>
    %111 = arith.mulf %110, %84 : vector<64x64xf32>
    %112 = arith.addf %108, %111 : vector<64x64xf32>
    %113 = arith.addf %112, %36 : vector<64x64xf32>
    %cst_26 = arith.constant dense<0xFF800000> : vector<64xf32>
    %114 = vector.multi_reduction <maximumf>, %113, %cst_26 [1] : vector<64x64xf32> to vector<64xf32>
    %115 = vector.shape_cast %114 : vector<64xf32> to vector<64x1xf32>
    %c1_27 = arith.constant 1 : index
    %116 = memref.load %arg9[%c1_27] : memref<32xf32, #tpu.memory_space<smem>>
    %117 = vector.broadcast %116 : f32 to vector<64x1xf32>
    %118 = arith.addf %115, %117 : vector<64x1xf32>
    %c6_28 = arith.constant 6 : index
    %119 = memref.load %arg8[%c6_28] : memref<96xf32, #tpu.memory_space<smem>>
    %120 = vector.broadcast %119 : f32 to vector<64x64xf32>
    %121 = arith.mulf %120, %52 : vector<64x64xf32>
    %c7_29 = arith.constant 7 : index
    %122 = memref.load %arg8[%c7_29] : memref<96xf32, #tpu.memory_space<smem>>
    %123 = vector.broadcast %122 : f32 to vector<64x64xf32>
    %124 = arith.mulf %123, %68 : vector<64x64xf32>
    %125 = arith.addf %121, %124 : vector<64x64xf32>
    %c8_30 = arith.constant 8 : index
    %126 = memref.load %arg8[%c8_30] : memref<96xf32, #tpu.memory_space<smem>>
    %127 = vector.broadcast %126 : f32 to vector<64x64xf32>
    %128 = arith.mulf %127, %84 : vector<64x64xf32>
    %129 = arith.addf %125, %128 : vector<64x64xf32>
    %130 = arith.addf %129, %36 : vector<64x64xf32>
    %cst_31 = arith.constant dense<0xFF800000> : vector<64xf32>
    %131 = vector.multi_reduction <maximumf>, %130, %cst_31 [1] : vector<64x64xf32> to vector<64xf32>
    %132 = vector.shape_cast %131 : vector<64xf32> to vector<64x1xf32>
    %c2_32 = arith.constant 2 : index
    %133 = memref.load %arg9[%c2_32] : memref<32xf32, #tpu.memory_space<smem>>
    %134 = vector.broadcast %133 : f32 to vector<64x1xf32>
    %135 = arith.addf %132, %134 : vector<64x1xf32>
    %c9 = arith.constant 9 : index
    %136 = memref.load %arg8[%c9] : memref<96xf32, #tpu.memory_space<smem>>
    %137 = vector.broadcast %136 : f32 to vector<64x64xf32>
    %138 = arith.mulf %137, %52 : vector<64x64xf32>
    %c10 = arith.constant 10 : index
    %139 = memref.load %arg8[%c10] : memref<96xf32, #tpu.memory_space<smem>>
    %140 = vector.broadcast %139 : f32 to vector<64x64xf32>
    %141 = arith.mulf %140, %68 : vector<64x64xf32>
    %142 = arith.addf %138, %141 : vector<64x64xf32>
    %c11 = arith.constant 11 : index
    %143 = memref.load %arg8[%c11] : memref<96xf32, #tpu.memory_space<smem>>
    %144 = vector.broadcast %143 : f32 to vector<64x64xf32>
    %145 = arith.mulf %144, %84 : vector<64x64xf32>
    %146 = arith.addf %142, %145 : vector<64x64xf32>
    %147 = arith.addf %146, %36 : vector<64x64xf32>
    %cst_33 = arith.constant dense<0xFF800000> : vector<64xf32>
    %148 = vector.multi_reduction <maximumf>, %147, %cst_33 [1] : vector<64x64xf32> to vector<64xf32>
    %149 = vector.shape_cast %148 : vector<64xf32> to vector<64x1xf32>
    %c3_34 = arith.constant 3 : index
    %150 = memref.load %arg9[%c3_34] : memref<32xf32, #tpu.memory_space<smem>>
    %151 = vector.broadcast %150 : f32 to vector<64x1xf32>
    %152 = arith.addf %149, %151 : vector<64x1xf32>
    %c12 = arith.constant 12 : index
    %153 = memref.load %arg8[%c12] : memref<96xf32, #tpu.memory_space<smem>>
    %154 = vector.broadcast %153 : f32 to vector<64x64xf32>
    %155 = arith.mulf %154, %52 : vector<64x64xf32>
    %c13 = arith.constant 13 : index
    %156 = memref.load %arg8[%c13] : memref<96xf32, #tpu.memory_space<smem>>
    %157 = vector.broadcast %156 : f32 to vector<64x64xf32>
    %158 = arith.mulf %157, %68 : vector<64x64xf32>
    %159 = arith.addf %155, %158 : vector<64x64xf32>
    %c14 = arith.constant 14 : index
    %160 = memref.load %arg8[%c14] : memref<96xf32, #tpu.memory_space<smem>>
    %161 = vector.broadcast %160 : f32 to vector<64x64xf32>
    %162 = arith.mulf %161, %84 : vector<64x64xf32>
    %163 = arith.addf %159, %162 : vector<64x64xf32>
    %164 = arith.addf %163, %36 : vector<64x64xf32>
    %cst_35 = arith.constant dense<0xFF800000> : vector<64xf32>
    %165 = vector.multi_reduction <maximumf>, %164, %cst_35 [1] : vector<64x64xf32> to vector<64xf32>
    %166 = vector.shape_cast %165 : vector<64xf32> to vector<64x1xf32>
    %c4_36 = arith.constant 4 : index
    %167 = memref.load %arg9[%c4_36] : memref<32xf32, #tpu.memory_space<smem>>
    %168 = vector.broadcast %167 : f32 to vector<64x1xf32>
    %169 = arith.addf %166, %168 : vector<64x1xf32>
    %c15 = arith.constant 15 : index
    %170 = memref.load %arg8[%c15] : memref<96xf32, #tpu.memory_space<smem>>
    %171 = vector.broadcast %170 : f32 to vector<64x64xf32>
    %172 = arith.mulf %171, %52 : vector<64x64xf32>
    %c16 = arith.constant 16 : index
    %173 = memref.load %arg8[%c16] : memref<96xf32, #tpu.memory_space<smem>>
    %174 = vector.broadcast %173 : f32 to vector<64x64xf32>
    %175 = arith.mulf %174, %68 : vector<64x64xf32>
    %176 = arith.addf %172, %175 : vector<64x64xf32>
    %c17 = arith.constant 17 : index
    %177 = memref.load %arg8[%c17] : memref<96xf32, #tpu.memory_space<smem>>
    %178 = vector.broadcast %177 : f32 to vector<64x64xf32>
    %179 = arith.mulf %178, %84 : vector<64x64xf32>
    %180 = arith.addf %176, %179 : vector<64x64xf32>
    %181 = arith.addf %180, %36 : vector<64x64xf32>
    %cst_37 = arith.constant dense<0xFF800000> : vector<64xf32>
    %182 = vector.multi_reduction <maximumf>, %181, %cst_37 [1] : vector<64x64xf32> to vector<64xf32>
    %183 = vector.shape_cast %182 : vector<64xf32> to vector<64x1xf32>
    %c5_38 = arith.constant 5 : index
    %184 = memref.load %arg9[%c5_38] : memref<32xf32, #tpu.memory_space<smem>>
    %185 = vector.broadcast %184 : f32 to vector<64x1xf32>
    %186 = arith.addf %183, %185 : vector<64x1xf32>
    %c18 = arith.constant 18 : index
    %187 = memref.load %arg8[%c18] : memref<96xf32, #tpu.memory_space<smem>>
    %188 = vector.broadcast %187 : f32 to vector<64x64xf32>
    %189 = arith.mulf %188, %52 : vector<64x64xf32>
    %c19 = arith.constant 19 : index
    %190 = memref.load %arg8[%c19] : memref<96xf32, #tpu.memory_space<smem>>
    %191 = vector.broadcast %190 : f32 to vector<64x64xf32>
    %192 = arith.mulf %191, %68 : vector<64x64xf32>
    %193 = arith.addf %189, %192 : vector<64x64xf32>
    %c20 = arith.constant 20 : index
    %194 = memref.load %arg8[%c20] : memref<96xf32, #tpu.memory_space<smem>>
    %195 = vector.broadcast %194 : f32 to vector<64x64xf32>
    %196 = arith.mulf %195, %84 : vector<64x64xf32>
    %197 = arith.addf %193, %196 : vector<64x64xf32>
    %198 = arith.addf %197, %36 : vector<64x64xf32>
    %cst_39 = arith.constant dense<0xFF800000> : vector<64xf32>
    %199 = vector.multi_reduction <maximumf>, %198, %cst_39 [1] : vector<64x64xf32> to vector<64xf32>
    %200 = vector.shape_cast %199 : vector<64xf32> to vector<64x1xf32>
    %c6_40 = arith.constant 6 : index
    %201 = memref.load %arg9[%c6_40] : memref<32xf32, #tpu.memory_space<smem>>
    %202 = vector.broadcast %201 : f32 to vector<64x1xf32>
    %203 = arith.addf %200, %202 : vector<64x1xf32>
    %c21 = arith.constant 21 : index
    %204 = memref.load %arg8[%c21] : memref<96xf32, #tpu.memory_space<smem>>
    %205 = vector.broadcast %204 : f32 to vector<64x64xf32>
    %206 = arith.mulf %205, %52 : vector<64x64xf32>
    %c22 = arith.constant 22 : index
    %207 = memref.load %arg8[%c22] : memref<96xf32, #tpu.memory_space<smem>>
    %208 = vector.broadcast %207 : f32 to vector<64x64xf32>
    %209 = arith.mulf %208, %68 : vector<64x64xf32>
    %210 = arith.addf %206, %209 : vector<64x64xf32>
    %c23 = arith.constant 23 : index
    %211 = memref.load %arg8[%c23] : memref<96xf32, #tpu.memory_space<smem>>
    %212 = vector.broadcast %211 : f32 to vector<64x64xf32>
    %213 = arith.mulf %212, %84 : vector<64x64xf32>
    %214 = arith.addf %210, %213 : vector<64x64xf32>
    %215 = arith.addf %214, %36 : vector<64x64xf32>
    %cst_41 = arith.constant dense<0xFF800000> : vector<64xf32>
    %216 = vector.multi_reduction <maximumf>, %215, %cst_41 [1] : vector<64x64xf32> to vector<64xf32>
    %217 = vector.shape_cast %216 : vector<64xf32> to vector<64x1xf32>
    %c7_42 = arith.constant 7 : index
    %218 = memref.load %arg9[%c7_42] : memref<32xf32, #tpu.memory_space<smem>>
    %219 = vector.broadcast %218 : f32 to vector<64x1xf32>
    %220 = arith.addf %217, %219 : vector<64x1xf32>
    %c24 = arith.constant 24 : index
    %221 = memref.load %arg8[%c24] : memref<96xf32, #tpu.memory_space<smem>>
    %222 = vector.broadcast %221 : f32 to vector<64x64xf32>
    %223 = arith.mulf %222, %52 : vector<64x64xf32>
    %c25 = arith.constant 25 : index
    %224 = memref.load %arg8[%c25] : memref<96xf32, #tpu.memory_space<smem>>
    %225 = vector.broadcast %224 : f32 to vector<64x64xf32>
    %226 = arith.mulf %225, %68 : vector<64x64xf32>
    %227 = arith.addf %223, %226 : vector<64x64xf32>
    %c26 = arith.constant 26 : index
    %228 = memref.load %arg8[%c26] : memref<96xf32, #tpu.memory_space<smem>>
    %229 = vector.broadcast %228 : f32 to vector<64x64xf32>
    %230 = arith.mulf %229, %84 : vector<64x64xf32>
    %231 = arith.addf %227, %230 : vector<64x64xf32>
    %232 = arith.addf %231, %36 : vector<64x64xf32>
    %cst_43 = arith.constant dense<0xFF800000> : vector<64xf32>
    %233 = vector.multi_reduction <maximumf>, %232, %cst_43 [1] : vector<64x64xf32> to vector<64xf32>
    %234 = vector.shape_cast %233 : vector<64xf32> to vector<64x1xf32>
    %c8_44 = arith.constant 8 : index
    %235 = memref.load %arg9[%c8_44] : memref<32xf32, #tpu.memory_space<smem>>
    %236 = vector.broadcast %235 : f32 to vector<64x1xf32>
    %237 = arith.addf %234, %236 : vector<64x1xf32>
    %c27 = arith.constant 27 : index
    %238 = memref.load %arg8[%c27] : memref<96xf32, #tpu.memory_space<smem>>
    %239 = vector.broadcast %238 : f32 to vector<64x64xf32>
    %240 = arith.mulf %239, %52 : vector<64x64xf32>
    %c28 = arith.constant 28 : index
    %241 = memref.load %arg8[%c28] : memref<96xf32, #tpu.memory_space<smem>>
    %242 = vector.broadcast %241 : f32 to vector<64x64xf32>
    %243 = arith.mulf %242, %68 : vector<64x64xf32>
    %244 = arith.addf %240, %243 : vector<64x64xf32>
    %c29 = arith.constant 29 : index
    %245 = memref.load %arg8[%c29] : memref<96xf32, #tpu.memory_space<smem>>
    %246 = vector.broadcast %245 : f32 to vector<64x64xf32>
    %247 = arith.mulf %246, %84 : vector<64x64xf32>
    %248 = arith.addf %244, %247 : vector<64x64xf32>
    %249 = arith.addf %248, %36 : vector<64x64xf32>
    %cst_45 = arith.constant dense<0xFF800000> : vector<64xf32>
    %250 = vector.multi_reduction <maximumf>, %249, %cst_45 [1] : vector<64x64xf32> to vector<64xf32>
    %251 = vector.shape_cast %250 : vector<64xf32> to vector<64x1xf32>
    %c9_46 = arith.constant 9 : index
    %252 = memref.load %arg9[%c9_46] : memref<32xf32, #tpu.memory_space<smem>>
    %253 = vector.broadcast %252 : f32 to vector<64x1xf32>
    %254 = arith.addf %251, %253 : vector<64x1xf32>
    %c30 = arith.constant 30 : index
    %255 = memref.load %arg8[%c30] : memref<96xf32, #tpu.memory_space<smem>>
    %256 = vector.broadcast %255 : f32 to vector<64x64xf32>
    %257 = arith.mulf %256, %52 : vector<64x64xf32>
    %c31 = arith.constant 31 : index
    %258 = memref.load %arg8[%c31] : memref<96xf32, #tpu.memory_space<smem>>
    %259 = vector.broadcast %258 : f32 to vector<64x64xf32>
    %260 = arith.mulf %259, %68 : vector<64x64xf32>
    %261 = arith.addf %257, %260 : vector<64x64xf32>
    %c32 = arith.constant 32 : index
    %262 = memref.load %arg8[%c32] : memref<96xf32, #tpu.memory_space<smem>>
    %263 = vector.broadcast %262 : f32 to vector<64x64xf32>
    %264 = arith.mulf %263, %84 : vector<64x64xf32>
    %265 = arith.addf %261, %264 : vector<64x64xf32>
    %266 = arith.addf %265, %36 : vector<64x64xf32>
    %cst_47 = arith.constant dense<0xFF800000> : vector<64xf32>
    %267 = vector.multi_reduction <maximumf>, %266, %cst_47 [1] : vector<64x64xf32> to vector<64xf32>
    %268 = vector.shape_cast %267 : vector<64xf32> to vector<64x1xf32>
    %c10_48 = arith.constant 10 : index
    %269 = memref.load %arg9[%c10_48] : memref<32xf32, #tpu.memory_space<smem>>
    %270 = vector.broadcast %269 : f32 to vector<64x1xf32>
    %271 = arith.addf %268, %270 : vector<64x1xf32>
    %c33 = arith.constant 33 : index
    %272 = memref.load %arg8[%c33] : memref<96xf32, #tpu.memory_space<smem>>
    %273 = vector.broadcast %272 : f32 to vector<64x64xf32>
    %274 = arith.mulf %273, %52 : vector<64x64xf32>
    %c34 = arith.constant 34 : index
    %275 = memref.load %arg8[%c34] : memref<96xf32, #tpu.memory_space<smem>>
    %276 = vector.broadcast %275 : f32 to vector<64x64xf32>
    %277 = arith.mulf %276, %68 : vector<64x64xf32>
    %278 = arith.addf %274, %277 : vector<64x64xf32>
    %c35 = arith.constant 35 : index
    %279 = memref.load %arg8[%c35] : memref<96xf32, #tpu.memory_space<smem>>
    %280 = vector.broadcast %279 : f32 to vector<64x64xf32>
    %281 = arith.mulf %280, %84 : vector<64x64xf32>
    %282 = arith.addf %278, %281 : vector<64x64xf32>
    %283 = arith.addf %282, %36 : vector<64x64xf32>
    %cst_49 = arith.constant dense<0xFF800000> : vector<64xf32>
    %284 = vector.multi_reduction <maximumf>, %283, %cst_49 [1] : vector<64x64xf32> to vector<64xf32>
    %285 = vector.shape_cast %284 : vector<64xf32> to vector<64x1xf32>
    %c11_50 = arith.constant 11 : index
    %286 = memref.load %arg9[%c11_50] : memref<32xf32, #tpu.memory_space<smem>>
    %287 = vector.broadcast %286 : f32 to vector<64x1xf32>
    %288 = arith.addf %285, %287 : vector<64x1xf32>
    %c36 = arith.constant 36 : index
    %289 = memref.load %arg8[%c36] : memref<96xf32, #tpu.memory_space<smem>>
    %290 = vector.broadcast %289 : f32 to vector<64x64xf32>
    %291 = arith.mulf %290, %52 : vector<64x64xf32>
    %c37 = arith.constant 37 : index
    %292 = memref.load %arg8[%c37] : memref<96xf32, #tpu.memory_space<smem>>
    %293 = vector.broadcast %292 : f32 to vector<64x64xf32>
    %294 = arith.mulf %293, %68 : vector<64x64xf32>
    %295 = arith.addf %291, %294 : vector<64x64xf32>
    %c38 = arith.constant 38 : index
    %296 = memref.load %arg8[%c38] : memref<96xf32, #tpu.memory_space<smem>>
    %297 = vector.broadcast %296 : f32 to vector<64x64xf32>
    %298 = arith.mulf %297, %84 : vector<64x64xf32>
    %299 = arith.addf %295, %298 : vector<64x64xf32>
    %300 = arith.addf %299, %36 : vector<64x64xf32>
    %cst_51 = arith.constant dense<0xFF800000> : vector<64xf32>
    %301 = vector.multi_reduction <maximumf>, %300, %cst_51 [1] : vector<64x64xf32> to vector<64xf32>
    %302 = vector.shape_cast %301 : vector<64xf32> to vector<64x1xf32>
    %c12_52 = arith.constant 12 : index
    %303 = memref.load %arg9[%c12_52] : memref<32xf32, #tpu.memory_space<smem>>
    %304 = vector.broadcast %303 : f32 to vector<64x1xf32>
    %305 = arith.addf %302, %304 : vector<64x1xf32>
    %c39 = arith.constant 39 : index
    %306 = memref.load %arg8[%c39] : memref<96xf32, #tpu.memory_space<smem>>
    %307 = vector.broadcast %306 : f32 to vector<64x64xf32>
    %308 = arith.mulf %307, %52 : vector<64x64xf32>
    %c40 = arith.constant 40 : index
    %309 = memref.load %arg8[%c40] : memref<96xf32, #tpu.memory_space<smem>>
    %310 = vector.broadcast %309 : f32 to vector<64x64xf32>
    %311 = arith.mulf %310, %68 : vector<64x64xf32>
    %312 = arith.addf %308, %311 : vector<64x64xf32>
    %c41 = arith.constant 41 : index
    %313 = memref.load %arg8[%c41] : memref<96xf32, #tpu.memory_space<smem>>
    %314 = vector.broadcast %313 : f32 to vector<64x64xf32>
    %315 = arith.mulf %314, %84 : vector<64x64xf32>
    %316 = arith.addf %312, %315 : vector<64x64xf32>
    %317 = arith.addf %316, %36 : vector<64x64xf32>
    %cst_53 = arith.constant dense<0xFF800000> : vector<64xf32>
    %318 = vector.multi_reduction <maximumf>, %317, %cst_53 [1] : vector<64x64xf32> to vector<64xf32>
    %319 = vector.shape_cast %318 : vector<64xf32> to vector<64x1xf32>
    %c13_54 = arith.constant 13 : index
    %320 = memref.load %arg9[%c13_54] : memref<32xf32, #tpu.memory_space<smem>>
    %321 = vector.broadcast %320 : f32 to vector<64x1xf32>
    %322 = arith.addf %319, %321 : vector<64x1xf32>
    %c42 = arith.constant 42 : index
    %323 = memref.load %arg8[%c42] : memref<96xf32, #tpu.memory_space<smem>>
    %324 = vector.broadcast %323 : f32 to vector<64x64xf32>
    %325 = arith.mulf %324, %52 : vector<64x64xf32>
    %c43 = arith.constant 43 : index
    %326 = memref.load %arg8[%c43] : memref<96xf32, #tpu.memory_space<smem>>
    %327 = vector.broadcast %326 : f32 to vector<64x64xf32>
    %328 = arith.mulf %327, %68 : vector<64x64xf32>
    %329 = arith.addf %325, %328 : vector<64x64xf32>
    %c44 = arith.constant 44 : index
    %330 = memref.load %arg8[%c44] : memref<96xf32, #tpu.memory_space<smem>>
    %331 = vector.broadcast %330 : f32 to vector<64x64xf32>
    %332 = arith.mulf %331, %84 : vector<64x64xf32>
    %333 = arith.addf %329, %332 : vector<64x64xf32>
    %334 = arith.addf %333, %36 : vector<64x64xf32>
    %cst_55 = arith.constant dense<0xFF800000> : vector<64xf32>
    %335 = vector.multi_reduction <maximumf>, %334, %cst_55 [1] : vector<64x64xf32> to vector<64xf32>
    %336 = vector.shape_cast %335 : vector<64xf32> to vector<64x1xf32>
    %c14_56 = arith.constant 14 : index
    %337 = memref.load %arg9[%c14_56] : memref<32xf32, #tpu.memory_space<smem>>
    %338 = vector.broadcast %337 : f32 to vector<64x1xf32>
    %339 = arith.addf %336, %338 : vector<64x1xf32>
    %c45 = arith.constant 45 : index
    %340 = memref.load %arg8[%c45] : memref<96xf32, #tpu.memory_space<smem>>
    %341 = vector.broadcast %340 : f32 to vector<64x64xf32>
    %342 = arith.mulf %341, %52 : vector<64x64xf32>
    %c46 = arith.constant 46 : index
    %343 = memref.load %arg8[%c46] : memref<96xf32, #tpu.memory_space<smem>>
    %344 = vector.broadcast %343 : f32 to vector<64x64xf32>
    %345 = arith.mulf %344, %68 : vector<64x64xf32>
    %346 = arith.addf %342, %345 : vector<64x64xf32>
    %c47 = arith.constant 47 : index
    %347 = memref.load %arg8[%c47] : memref<96xf32, #tpu.memory_space<smem>>
    %348 = vector.broadcast %347 : f32 to vector<64x64xf32>
    %349 = arith.mulf %348, %84 : vector<64x64xf32>
    %350 = arith.addf %346, %349 : vector<64x64xf32>
    %351 = arith.addf %350, %36 : vector<64x64xf32>
    %cst_57 = arith.constant dense<0xFF800000> : vector<64xf32>
    %352 = vector.multi_reduction <maximumf>, %351, %cst_57 [1] : vector<64x64xf32> to vector<64xf32>
    %353 = vector.shape_cast %352 : vector<64xf32> to vector<64x1xf32>
    %c15_58 = arith.constant 15 : index
    %354 = memref.load %arg9[%c15_58] : memref<32xf32, #tpu.memory_space<smem>>
    %355 = vector.broadcast %354 : f32 to vector<64x1xf32>
    %356 = arith.addf %353, %355 : vector<64x1xf32>
    %c48 = arith.constant 48 : index
    %357 = memref.load %arg8[%c48] : memref<96xf32, #tpu.memory_space<smem>>
    %358 = vector.broadcast %357 : f32 to vector<64x64xf32>
    %359 = arith.mulf %358, %52 : vector<64x64xf32>
    %c49 = arith.constant 49 : index
    %360 = memref.load %arg8[%c49] : memref<96xf32, #tpu.memory_space<smem>>
    %361 = vector.broadcast %360 : f32 to vector<64x64xf32>
    %362 = arith.mulf %361, %68 : vector<64x64xf32>
    %363 = arith.addf %359, %362 : vector<64x64xf32>
    %c50 = arith.constant 50 : index
    %364 = memref.load %arg8[%c50] : memref<96xf32, #tpu.memory_space<smem>>
    %365 = vector.broadcast %364 : f32 to vector<64x64xf32>
    %366 = arith.mulf %365, %84 : vector<64x64xf32>
    %367 = arith.addf %363, %366 : vector<64x64xf32>
    %368 = arith.addf %367, %36 : vector<64x64xf32>
    %cst_59 = arith.constant dense<0xFF800000> : vector<64xf32>
    %369 = vector.multi_reduction <maximumf>, %368, %cst_59 [1] : vector<64x64xf32> to vector<64xf32>
    %370 = vector.shape_cast %369 : vector<64xf32> to vector<64x1xf32>
    %c16_60 = arith.constant 16 : index
    %371 = memref.load %arg9[%c16_60] : memref<32xf32, #tpu.memory_space<smem>>
    %372 = vector.broadcast %371 : f32 to vector<64x1xf32>
    %373 = arith.addf %370, %372 : vector<64x1xf32>
    %c51 = arith.constant 51 : index
    %374 = memref.load %arg8[%c51] : memref<96xf32, #tpu.memory_space<smem>>
    %375 = vector.broadcast %374 : f32 to vector<64x64xf32>
    %376 = arith.mulf %375, %52 : vector<64x64xf32>
    %c52 = arith.constant 52 : index
    %377 = memref.load %arg8[%c52] : memref<96xf32, #tpu.memory_space<smem>>
    %378 = vector.broadcast %377 : f32 to vector<64x64xf32>
    %379 = arith.mulf %378, %68 : vector<64x64xf32>
    %380 = arith.addf %376, %379 : vector<64x64xf32>
    %c53 = arith.constant 53 : index
    %381 = memref.load %arg8[%c53] : memref<96xf32, #tpu.memory_space<smem>>
    %382 = vector.broadcast %381 : f32 to vector<64x64xf32>
    %383 = arith.mulf %382, %84 : vector<64x64xf32>
    %384 = arith.addf %380, %383 : vector<64x64xf32>
    %385 = arith.addf %384, %36 : vector<64x64xf32>
    %cst_61 = arith.constant dense<0xFF800000> : vector<64xf32>
    %386 = vector.multi_reduction <maximumf>, %385, %cst_61 [1] : vector<64x64xf32> to vector<64xf32>
    %387 = vector.shape_cast %386 : vector<64xf32> to vector<64x1xf32>
    %c17_62 = arith.constant 17 : index
    %388 = memref.load %arg9[%c17_62] : memref<32xf32, #tpu.memory_space<smem>>
    %389 = vector.broadcast %388 : f32 to vector<64x1xf32>
    %390 = arith.addf %387, %389 : vector<64x1xf32>
    %c54 = arith.constant 54 : index
    %391 = memref.load %arg8[%c54] : memref<96xf32, #tpu.memory_space<smem>>
    %392 = vector.broadcast %391 : f32 to vector<64x64xf32>
    %393 = arith.mulf %392, %52 : vector<64x64xf32>
    %c55 = arith.constant 55 : index
    %394 = memref.load %arg8[%c55] : memref<96xf32, #tpu.memory_space<smem>>
    %395 = vector.broadcast %394 : f32 to vector<64x64xf32>
    %396 = arith.mulf %395, %68 : vector<64x64xf32>
    %397 = arith.addf %393, %396 : vector<64x64xf32>
    %c56 = arith.constant 56 : index
    %398 = memref.load %arg8[%c56] : memref<96xf32, #tpu.memory_space<smem>>
    %399 = vector.broadcast %398 : f32 to vector<64x64xf32>
    %400 = arith.mulf %399, %84 : vector<64x64xf32>
    %401 = arith.addf %397, %400 : vector<64x64xf32>
    %402 = arith.addf %401, %36 : vector<64x64xf32>
    %cst_63 = arith.constant dense<0xFF800000> : vector<64xf32>
    %403 = vector.multi_reduction <maximumf>, %402, %cst_63 [1] : vector<64x64xf32> to vector<64xf32>
    %404 = vector.shape_cast %403 : vector<64xf32> to vector<64x1xf32>
    %c18_64 = arith.constant 18 : index
    %405 = memref.load %arg9[%c18_64] : memref<32xf32, #tpu.memory_space<smem>>
    %406 = vector.broadcast %405 : f32 to vector<64x1xf32>
    %407 = arith.addf %404, %406 : vector<64x1xf32>
    %c57 = arith.constant 57 : index
    %408 = memref.load %arg8[%c57] : memref<96xf32, #tpu.memory_space<smem>>
    %409 = vector.broadcast %408 : f32 to vector<64x64xf32>
    %410 = arith.mulf %409, %52 : vector<64x64xf32>
    %c58 = arith.constant 58 : index
    %411 = memref.load %arg8[%c58] : memref<96xf32, #tpu.memory_space<smem>>
    %412 = vector.broadcast %411 : f32 to vector<64x64xf32>
    %413 = arith.mulf %412, %68 : vector<64x64xf32>
    %414 = arith.addf %410, %413 : vector<64x64xf32>
    %c59 = arith.constant 59 : index
    %415 = memref.load %arg8[%c59] : memref<96xf32, #tpu.memory_space<smem>>
    %416 = vector.broadcast %415 : f32 to vector<64x64xf32>
    %417 = arith.mulf %416, %84 : vector<64x64xf32>
    %418 = arith.addf %414, %417 : vector<64x64xf32>
    %419 = arith.addf %418, %36 : vector<64x64xf32>
    %cst_65 = arith.constant dense<0xFF800000> : vector<64xf32>
    %420 = vector.multi_reduction <maximumf>, %419, %cst_65 [1] : vector<64x64xf32> to vector<64xf32>
    %421 = vector.shape_cast %420 : vector<64xf32> to vector<64x1xf32>
    %c19_66 = arith.constant 19 : index
    %422 = memref.load %arg9[%c19_66] : memref<32xf32, #tpu.memory_space<smem>>
    %423 = vector.broadcast %422 : f32 to vector<64x1xf32>
    %424 = arith.addf %421, %423 : vector<64x1xf32>
    %c60 = arith.constant 60 : index
    %425 = memref.load %arg8[%c60] : memref<96xf32, #tpu.memory_space<smem>>
    %426 = vector.broadcast %425 : f32 to vector<64x64xf32>
    %427 = arith.mulf %426, %52 : vector<64x64xf32>
    %c61 = arith.constant 61 : index
    %428 = memref.load %arg8[%c61] : memref<96xf32, #tpu.memory_space<smem>>
    %429 = vector.broadcast %428 : f32 to vector<64x64xf32>
    %430 = arith.mulf %429, %68 : vector<64x64xf32>
    %431 = arith.addf %427, %430 : vector<64x64xf32>
    %c62 = arith.constant 62 : index
    %432 = memref.load %arg8[%c62] : memref<96xf32, #tpu.memory_space<smem>>
    %433 = vector.broadcast %432 : f32 to vector<64x64xf32>
    %434 = arith.mulf %433, %84 : vector<64x64xf32>
    %435 = arith.addf %431, %434 : vector<64x64xf32>
    %436 = arith.addf %435, %36 : vector<64x64xf32>
    %cst_67 = arith.constant dense<0xFF800000> : vector<64xf32>
    %437 = vector.multi_reduction <maximumf>, %436, %cst_67 [1] : vector<64x64xf32> to vector<64xf32>
    %438 = vector.shape_cast %437 : vector<64xf32> to vector<64x1xf32>
    %c20_68 = arith.constant 20 : index
    %439 = memref.load %arg9[%c20_68] : memref<32xf32, #tpu.memory_space<smem>>
    %440 = vector.broadcast %439 : f32 to vector<64x1xf32>
    %441 = arith.addf %438, %440 : vector<64x1xf32>
    %c63 = arith.constant 63 : index
    %442 = memref.load %arg8[%c63] : memref<96xf32, #tpu.memory_space<smem>>
    %443 = vector.broadcast %442 : f32 to vector<64x64xf32>
    %444 = arith.mulf %443, %52 : vector<64x64xf32>
    %c64 = arith.constant 64 : index
    %445 = memref.load %arg8[%c64] : memref<96xf32, #tpu.memory_space<smem>>
    %446 = vector.broadcast %445 : f32 to vector<64x64xf32>
    %447 = arith.mulf %446, %68 : vector<64x64xf32>
    %448 = arith.addf %444, %447 : vector<64x64xf32>
    %c65 = arith.constant 65 : index
    %449 = memref.load %arg8[%c65] : memref<96xf32, #tpu.memory_space<smem>>
    %450 = vector.broadcast %449 : f32 to vector<64x64xf32>
    %451 = arith.mulf %450, %84 : vector<64x64xf32>
    %452 = arith.addf %448, %451 : vector<64x64xf32>
    %453 = arith.addf %452, %36 : vector<64x64xf32>
    %cst_69 = arith.constant dense<0xFF800000> : vector<64xf32>
    %454 = vector.multi_reduction <maximumf>, %453, %cst_69 [1] : vector<64x64xf32> to vector<64xf32>
    %455 = vector.shape_cast %454 : vector<64xf32> to vector<64x1xf32>
    %c21_70 = arith.constant 21 : index
    %456 = memref.load %arg9[%c21_70] : memref<32xf32, #tpu.memory_space<smem>>
    %457 = vector.broadcast %456 : f32 to vector<64x1xf32>
    %458 = arith.addf %455, %457 : vector<64x1xf32>
    %c66 = arith.constant 66 : index
    %459 = memref.load %arg8[%c66] : memref<96xf32, #tpu.memory_space<smem>>
    %460 = vector.broadcast %459 : f32 to vector<64x64xf32>
    %461 = arith.mulf %460, %52 : vector<64x64xf32>
    %c67 = arith.constant 67 : index
    %462 = memref.load %arg8[%c67] : memref<96xf32, #tpu.memory_space<smem>>
    %463 = vector.broadcast %462 : f32 to vector<64x64xf32>
    %464 = arith.mulf %463, %68 : vector<64x64xf32>
    %465 = arith.addf %461, %464 : vector<64x64xf32>
    %c68 = arith.constant 68 : index
    %466 = memref.load %arg8[%c68] : memref<96xf32, #tpu.memory_space<smem>>
    %467 = vector.broadcast %466 : f32 to vector<64x64xf32>
    %468 = arith.mulf %467, %84 : vector<64x64xf32>
    %469 = arith.addf %465, %468 : vector<64x64xf32>
    %470 = arith.addf %469, %36 : vector<64x64xf32>
    %cst_71 = arith.constant dense<0xFF800000> : vector<64xf32>
    %471 = vector.multi_reduction <maximumf>, %470, %cst_71 [1] : vector<64x64xf32> to vector<64xf32>
    %472 = vector.shape_cast %471 : vector<64xf32> to vector<64x1xf32>
    %c22_72 = arith.constant 22 : index
    %473 = memref.load %arg9[%c22_72] : memref<32xf32, #tpu.memory_space<smem>>
    %474 = vector.broadcast %473 : f32 to vector<64x1xf32>
    %475 = arith.addf %472, %474 : vector<64x1xf32>
    %c69 = arith.constant 69 : index
    %476 = memref.load %arg8[%c69] : memref<96xf32, #tpu.memory_space<smem>>
    %477 = vector.broadcast %476 : f32 to vector<64x64xf32>
    %478 = arith.mulf %477, %52 : vector<64x64xf32>
    %c70 = arith.constant 70 : index
    %479 = memref.load %arg8[%c70] : memref<96xf32, #tpu.memory_space<smem>>
    %480 = vector.broadcast %479 : f32 to vector<64x64xf32>
    %481 = arith.mulf %480, %68 : vector<64x64xf32>
    %482 = arith.addf %478, %481 : vector<64x64xf32>
    %c71 = arith.constant 71 : index
    %483 = memref.load %arg8[%c71] : memref<96xf32, #tpu.memory_space<smem>>
    %484 = vector.broadcast %483 : f32 to vector<64x64xf32>
    %485 = arith.mulf %484, %84 : vector<64x64xf32>
    %486 = arith.addf %482, %485 : vector<64x64xf32>
    %487 = arith.addf %486, %36 : vector<64x64xf32>
    %cst_73 = arith.constant dense<0xFF800000> : vector<64xf32>
    %488 = vector.multi_reduction <maximumf>, %487, %cst_73 [1] : vector<64x64xf32> to vector<64xf32>
    %489 = vector.shape_cast %488 : vector<64xf32> to vector<64x1xf32>
    %c23_74 = arith.constant 23 : index
    %490 = memref.load %arg9[%c23_74] : memref<32xf32, #tpu.memory_space<smem>>
    %491 = vector.broadcast %490 : f32 to vector<64x1xf32>
    %492 = arith.addf %489, %491 : vector<64x1xf32>
    %c72 = arith.constant 72 : index
    %493 = memref.load %arg8[%c72] : memref<96xf32, #tpu.memory_space<smem>>
    %494 = vector.broadcast %493 : f32 to vector<64x64xf32>
    %495 = arith.mulf %494, %52 : vector<64x64xf32>
    %c73 = arith.constant 73 : index
    %496 = memref.load %arg8[%c73] : memref<96xf32, #tpu.memory_space<smem>>
    %497 = vector.broadcast %496 : f32 to vector<64x64xf32>
    %498 = arith.mulf %497, %68 : vector<64x64xf32>
    %499 = arith.addf %495, %498 : vector<64x64xf32>
    %c74 = arith.constant 74 : index
    %500 = memref.load %arg8[%c74] : memref<96xf32, #tpu.memory_space<smem>>
    %501 = vector.broadcast %500 : f32 to vector<64x64xf32>
    %502 = arith.mulf %501, %84 : vector<64x64xf32>
    %503 = arith.addf %499, %502 : vector<64x64xf32>
    %504 = arith.addf %503, %36 : vector<64x64xf32>
    %cst_75 = arith.constant dense<0xFF800000> : vector<64xf32>
    %505 = vector.multi_reduction <maximumf>, %504, %cst_75 [1] : vector<64x64xf32> to vector<64xf32>
    %506 = vector.shape_cast %505 : vector<64xf32> to vector<64x1xf32>
    %c24_76 = arith.constant 24 : index
    %507 = memref.load %arg9[%c24_76] : memref<32xf32, #tpu.memory_space<smem>>
    %508 = vector.broadcast %507 : f32 to vector<64x1xf32>
    %509 = arith.addf %506, %508 : vector<64x1xf32>
    %c75 = arith.constant 75 : index
    %510 = memref.load %arg8[%c75] : memref<96xf32, #tpu.memory_space<smem>>
    %511 = vector.broadcast %510 : f32 to vector<64x64xf32>
    %512 = arith.mulf %511, %52 : vector<64x64xf32>
    %c76 = arith.constant 76 : index
    %513 = memref.load %arg8[%c76] : memref<96xf32, #tpu.memory_space<smem>>
    %514 = vector.broadcast %513 : f32 to vector<64x64xf32>
    %515 = arith.mulf %514, %68 : vector<64x64xf32>
    %516 = arith.addf %512, %515 : vector<64x64xf32>
    %c77 = arith.constant 77 : index
    %517 = memref.load %arg8[%c77] : memref<96xf32, #tpu.memory_space<smem>>
    %518 = vector.broadcast %517 : f32 to vector<64x64xf32>
    %519 = arith.mulf %518, %84 : vector<64x64xf32>
    %520 = arith.addf %516, %519 : vector<64x64xf32>
    %521 = arith.addf %520, %36 : vector<64x64xf32>
    %cst_77 = arith.constant dense<0xFF800000> : vector<64xf32>
    %522 = vector.multi_reduction <maximumf>, %521, %cst_77 [1] : vector<64x64xf32> to vector<64xf32>
    %523 = vector.shape_cast %522 : vector<64xf32> to vector<64x1xf32>
    %c25_78 = arith.constant 25 : index
    %524 = memref.load %arg9[%c25_78] : memref<32xf32, #tpu.memory_space<smem>>
    %525 = vector.broadcast %524 : f32 to vector<64x1xf32>
    %526 = arith.addf %523, %525 : vector<64x1xf32>
    %c78 = arith.constant 78 : index
    %527 = memref.load %arg8[%c78] : memref<96xf32, #tpu.memory_space<smem>>
    %528 = vector.broadcast %527 : f32 to vector<64x64xf32>
    %529 = arith.mulf %528, %52 : vector<64x64xf32>
    %c79 = arith.constant 79 : index
    %530 = memref.load %arg8[%c79] : memref<96xf32, #tpu.memory_space<smem>>
    %531 = vector.broadcast %530 : f32 to vector<64x64xf32>
    %532 = arith.mulf %531, %68 : vector<64x64xf32>
    %533 = arith.addf %529, %532 : vector<64x64xf32>
    %c80 = arith.constant 80 : index
    %534 = memref.load %arg8[%c80] : memref<96xf32, #tpu.memory_space<smem>>
    %535 = vector.broadcast %534 : f32 to vector<64x64xf32>
    %536 = arith.mulf %535, %84 : vector<64x64xf32>
    %537 = arith.addf %533, %536 : vector<64x64xf32>
    %538 = arith.addf %537, %36 : vector<64x64xf32>
    %cst_79 = arith.constant dense<0xFF800000> : vector<64xf32>
    %539 = vector.multi_reduction <maximumf>, %538, %cst_79 [1] : vector<64x64xf32> to vector<64xf32>
    %540 = vector.shape_cast %539 : vector<64xf32> to vector<64x1xf32>
    %c26_80 = arith.constant 26 : index
    %541 = memref.load %arg9[%c26_80] : memref<32xf32, #tpu.memory_space<smem>>
    %542 = vector.broadcast %541 : f32 to vector<64x1xf32>
    %543 = arith.addf %540, %542 : vector<64x1xf32>
    %c81 = arith.constant 81 : index
    %544 = memref.load %arg8[%c81] : memref<96xf32, #tpu.memory_space<smem>>
    %545 = vector.broadcast %544 : f32 to vector<64x64xf32>
    %546 = arith.mulf %545, %52 : vector<64x64xf32>
    %c82 = arith.constant 82 : index
    %547 = memref.load %arg8[%c82] : memref<96xf32, #tpu.memory_space<smem>>
    %548 = vector.broadcast %547 : f32 to vector<64x64xf32>
    %549 = arith.mulf %548, %68 : vector<64x64xf32>
    %550 = arith.addf %546, %549 : vector<64x64xf32>
    %c83 = arith.constant 83 : index
    %551 = memref.load %arg8[%c83] : memref<96xf32, #tpu.memory_space<smem>>
    %552 = vector.broadcast %551 : f32 to vector<64x64xf32>
    %553 = arith.mulf %552, %84 : vector<64x64xf32>
    %554 = arith.addf %550, %553 : vector<64x64xf32>
    %555 = arith.addf %554, %36 : vector<64x64xf32>
    %cst_81 = arith.constant dense<0xFF800000> : vector<64xf32>
    %556 = vector.multi_reduction <maximumf>, %555, %cst_81 [1] : vector<64x64xf32> to vector<64xf32>
    %557 = vector.shape_cast %556 : vector<64xf32> to vector<64x1xf32>
    %c27_82 = arith.constant 27 : index
    %558 = memref.load %arg9[%c27_82] : memref<32xf32, #tpu.memory_space<smem>>
    %559 = vector.broadcast %558 : f32 to vector<64x1xf32>
    %560 = arith.addf %557, %559 : vector<64x1xf32>
    %c84 = arith.constant 84 : index
    %561 = memref.load %arg8[%c84] : memref<96xf32, #tpu.memory_space<smem>>
    %562 = vector.broadcast %561 : f32 to vector<64x64xf32>
    %563 = arith.mulf %562, %52 : vector<64x64xf32>
    %c85 = arith.constant 85 : index
    %564 = memref.load %arg8[%c85] : memref<96xf32, #tpu.memory_space<smem>>
    %565 = vector.broadcast %564 : f32 to vector<64x64xf32>
    %566 = arith.mulf %565, %68 : vector<64x64xf32>
    %567 = arith.addf %563, %566 : vector<64x64xf32>
    %c86 = arith.constant 86 : index
    %568 = memref.load %arg8[%c86] : memref<96xf32, #tpu.memory_space<smem>>
    %569 = vector.broadcast %568 : f32 to vector<64x64xf32>
    %570 = arith.mulf %569, %84 : vector<64x64xf32>
    %571 = arith.addf %567, %570 : vector<64x64xf32>
    %572 = arith.addf %571, %36 : vector<64x64xf32>
    %cst_83 = arith.constant dense<0xFF800000> : vector<64xf32>
    %573 = vector.multi_reduction <maximumf>, %572, %cst_83 [1] : vector<64x64xf32> to vector<64xf32>
    %574 = vector.shape_cast %573 : vector<64xf32> to vector<64x1xf32>
    %c28_84 = arith.constant 28 : index
    %575 = memref.load %arg9[%c28_84] : memref<32xf32, #tpu.memory_space<smem>>
    %576 = vector.broadcast %575 : f32 to vector<64x1xf32>
    %577 = arith.addf %574, %576 : vector<64x1xf32>
    %c87 = arith.constant 87 : index
    %578 = memref.load %arg8[%c87] : memref<96xf32, #tpu.memory_space<smem>>
    %579 = vector.broadcast %578 : f32 to vector<64x64xf32>
    %580 = arith.mulf %579, %52 : vector<64x64xf32>
    %c88 = arith.constant 88 : index
    %581 = memref.load %arg8[%c88] : memref<96xf32, #tpu.memory_space<smem>>
    %582 = vector.broadcast %581 : f32 to vector<64x64xf32>
    %583 = arith.mulf %582, %68 : vector<64x64xf32>
    %584 = arith.addf %580, %583 : vector<64x64xf32>
    %c89 = arith.constant 89 : index
    %585 = memref.load %arg8[%c89] : memref<96xf32, #tpu.memory_space<smem>>
    %586 = vector.broadcast %585 : f32 to vector<64x64xf32>
    %587 = arith.mulf %586, %84 : vector<64x64xf32>
    %588 = arith.addf %584, %587 : vector<64x64xf32>
    %589 = arith.addf %588, %36 : vector<64x64xf32>
    %cst_85 = arith.constant dense<0xFF800000> : vector<64xf32>
    %590 = vector.multi_reduction <maximumf>, %589, %cst_85 [1] : vector<64x64xf32> to vector<64xf32>
    %591 = vector.shape_cast %590 : vector<64xf32> to vector<64x1xf32>
    %c29_86 = arith.constant 29 : index
    %592 = memref.load %arg9[%c29_86] : memref<32xf32, #tpu.memory_space<smem>>
    %593 = vector.broadcast %592 : f32 to vector<64x1xf32>
    %594 = arith.addf %591, %593 : vector<64x1xf32>
    %c90 = arith.constant 90 : index
    %595 = memref.load %arg8[%c90] : memref<96xf32, #tpu.memory_space<smem>>
    %596 = vector.broadcast %595 : f32 to vector<64x64xf32>
    %597 = arith.mulf %596, %52 : vector<64x64xf32>
    %c91 = arith.constant 91 : index
    %598 = memref.load %arg8[%c91] : memref<96xf32, #tpu.memory_space<smem>>
    %599 = vector.broadcast %598 : f32 to vector<64x64xf32>
    %600 = arith.mulf %599, %68 : vector<64x64xf32>
    %601 = arith.addf %597, %600 : vector<64x64xf32>
    %c92 = arith.constant 92 : index
    %602 = memref.load %arg8[%c92] : memref<96xf32, #tpu.memory_space<smem>>
    %603 = vector.broadcast %602 : f32 to vector<64x64xf32>
    %604 = arith.mulf %603, %84 : vector<64x64xf32>
    %605 = arith.addf %601, %604 : vector<64x64xf32>
    %606 = arith.addf %605, %36 : vector<64x64xf32>
    %cst_87 = arith.constant dense<0xFF800000> : vector<64xf32>
    %607 = vector.multi_reduction <maximumf>, %606, %cst_87 [1] : vector<64x64xf32> to vector<64xf32>
    %608 = vector.shape_cast %607 : vector<64xf32> to vector<64x1xf32>
    %c30_88 = arith.constant 30 : index
    %609 = memref.load %arg9[%c30_88] : memref<32xf32, #tpu.memory_space<smem>>
    %610 = vector.broadcast %609 : f32 to vector<64x1xf32>
    %611 = arith.addf %608, %610 : vector<64x1xf32>
    %c93 = arith.constant 93 : index
    %612 = memref.load %arg8[%c93] : memref<96xf32, #tpu.memory_space<smem>>
    %613 = vector.broadcast %612 : f32 to vector<64x64xf32>
    %614 = arith.mulf %613, %52 : vector<64x64xf32>
    %c94 = arith.constant 94 : index
    %615 = memref.load %arg8[%c94] : memref<96xf32, #tpu.memory_space<smem>>
    %616 = vector.broadcast %615 : f32 to vector<64x64xf32>
    %617 = arith.mulf %616, %68 : vector<64x64xf32>
    %618 = arith.addf %614, %617 : vector<64x64xf32>
    %c95 = arith.constant 95 : index
    %619 = memref.load %arg8[%c95] : memref<96xf32, #tpu.memory_space<smem>>
    %620 = vector.broadcast %619 : f32 to vector<64x64xf32>
    %621 = arith.mulf %620, %84 : vector<64x64xf32>
    %622 = arith.addf %618, %621 : vector<64x64xf32>
    %623 = arith.addf %622, %36 : vector<64x64xf32>
    %cst_89 = arith.constant dense<0xFF800000> : vector<64xf32>
    %624 = vector.multi_reduction <maximumf>, %623, %cst_89 [1] : vector<64x64xf32> to vector<64xf32>
    %625 = vector.shape_cast %624 : vector<64xf32> to vector<64x1xf32>
    %c31_90 = arith.constant 31 : index
    %626 = memref.load %arg9[%c31_90] : memref<32xf32, #tpu.memory_space<smem>>
    %627 = vector.broadcast %626 : f32 to vector<64x1xf32>
    %628 = arith.addf %625, %627 : vector<64x1xf32>
    %629 = tpu.concatenate %101, %118, %135, %152, %169, %186, %203, %220, %237, %254, %271, %288, %305, %322, %339, %356 in 1 : vector<64x1xf32>, vector<64x1xf32>, vector<64x1xf32>, vector<64x1xf32>, vector<64x1xf32>, vector<64x1xf32>, vector<64x1xf32>, vector<64x1xf32>, vector<64x1xf32>, vector<64x1xf32>, vector<64x1xf32>, vector<64x1xf32>, vector<64x1xf32>, vector<64x1xf32>, vector<64x1xf32>, vector<64x1xf32> -> vector<64x16xf32>
    %630 = tpu.concatenate %373, %390, %407, %424, %441, %458, %475, %492, %509, %526, %543, %560, %577, %594, %611, %628 in 1 : vector<64x1xf32>, vector<64x1xf32>, vector<64x1xf32>, vector<64x1xf32>, vector<64x1xf32>, vector<64x1xf32>, vector<64x1xf32>, vector<64x1xf32>, vector<64x1xf32>, vector<64x1xf32>, vector<64x1xf32>, vector<64x1xf32>, vector<64x1xf32>, vector<64x1xf32>, vector<64x1xf32>, vector<64x1xf32> -> vector<64x16xf32>
    %631 = tpu.concatenate %629, %630 in 1 : vector<64x16xf32>, vector<64x16xf32> -> vector<64x32xf32>
    %c0_91 = arith.constant 0 : index
    %c0_92 = arith.constant 0 : index
    %c0_93 = arith.constant 0 : index
    %632 = vector.load %arg5[%c0_91, %c0_92, %c0_93] : memref<1x64x32xf32, #tpu.memory_space<vmem>>, vector<1x64x32xf32>
    %633 = vector.shape_cast %632 : vector<1x64x32xf32> to vector<64x32xf32>
    %634 = arith.addf %633, %631 : vector<64x32xf32>
    %c0_94 = arith.constant 0 : index
    %c0_95 = arith.constant 0 : index
    %c0_96 = arith.constant 0 : index
    %635 = vector.load %arg10[%c0_94, %c0_95, %c0_96] : memref<1x64x32xf32, #tpu.memory_space<vmem>>, vector<1x64x32xf32>
    %636 = vector.shape_cast %635 : vector<1x64x32xf32> to vector<64x32xf32>
    %637 = vector.shape_cast %634 : vector<64x32xf32> to vector<1x64x32xf32>
    tpu.vector_store %arg10[%c0_94, %c0_95, %c0_96], %637 {strides = array<i32>} : memref<1x64x32xf32, #tpu.memory_space<vmem>>, vector<1x64x32xf32>,
    return
  }
  func.func @transform_0(%arg0: i32, %arg1: i32) -> (i32, i32, i32) {
    %c0_i32 = arith.constant 0 : i32
    %c0_i32_0 = arith.constant 0 : i32
    return %arg0, %arg1, %c0_i32 : i32, i32, i32
  }
  func.func @transform_1(%arg0: i32, %arg1: i32) -> (i32, i32, i32) {
    %c0_i32 = arith.constant 0 : i32
    %c0_i32_0 = arith.constant 0 : i32
    %c0_i32_1 = arith.constant 0 : i32
    return %arg0, %c0_i32, %c0_i32_0 : i32, i32, i32
  }
  func.func @transform_2(%arg0: i32, %arg1: i32) -> (i32, i32) {
    %c0_i32 = arith.constant 0 : i32
    %c0_i32_0 = arith.constant 0 : i32
    %c0_i32_1 = arith.constant 0 : i32
    return %c0_i32, %c0_i32_0 : i32, i32
  }
  func.func @transform_3(%arg0: i32, %arg1: i32) -> (i32, i32, i32) {
    %c0_i32 = arith.constant 0 : i32
    %c0_i32_0 = arith.constant 0 : i32
    return %arg0, %arg1, %c0_i32 : i32, i32, i32
  }
  func.func @transform_4(%arg0: i32, %arg1: i32) -> i32 {
    %c0_i32 = arith.constant 0 : i32
    %c0_i32_0 = arith.constant 0 : i32
    return %c0_i32 : i32
  }
  func.func @transform_5(%arg0: i32, %arg1: i32) -> i32 {
    %c0_i32 = arith.constant 0 : i32
    %c0_i32_0 = arith.constant 0 : i32
    return %c0_i32 : i32
  }
  func.func @transform_6(%arg0: i32, %arg1: i32) -> i32 {
    %c0_i32 = arith.constant 0 : i32
    %c0_i32_0 = arith.constant 0 : i32
    return %c0_i32 : i32
  }
  func.func @transform_7(%arg0: i32, %arg1: i32) -> i32 {
    %c0_i32 = arith.constant 0 : i32
    %c0_i32_0 = arith.constant 0 : i32
    return %c0_i32 : i32
  }
  func.func @transform_8(%arg0: i32, %arg1: i32) -> (i32, i32, i32) {
    %c0_i32 = arith.constant 0 : i32
    %c0_i32_0 = arith.constant 0 : i32
    return %arg0, %arg1, %c0_i32 : i32, i32, i32
  }
}

</mosaic_0001>

<llo_original>
// kernel: tpu_custom_call.1
$region0: #{tpu_custom_call.1}
  #allocation0 [shape = 'u32[]', space=smem, size = 0x4, offset = 0x4, fixed_abs, tag = 'smem constant byte address 0x4 - core index']
  #allocation1 [shape = 'u32[144,128]{1,0:T(1,128)}', space=vmem, size = 0x12000, scoped, tag = 'internal scratch']
  %s0 = inlined_call_operand.vmem [shape: f32[2,64,3], index: 0, kind: input, shape index: {}]
  %s1 = inlined_call_operand.vmem [shape: f32[2,3,64], index: 1, kind: input, shape index: {}]
  %s2 = inlined_call_operand.vmem [shape: bf16[64,64], index: 2, kind: input, shape index: {}]
  %s3 = inlined_call_operand.vmem [shape: f32[2,64,32], index: 3, kind: input, shape index: {}]
  %s4 = inlined_call_operand.vmem [shape: f32[9], index: 4, kind: input, shape index: {}]
  %s5 = inlined_call_operand.vmem [shape: f32[3], index: 5, kind: input, shape index: {}]
  %s6 = inlined_call_operand.vmem [shape: f32[96], index: 6, kind: input, shape index: {}]
  %s7 = inlined_call_operand.vmem [shape: f32[32], index: 7, kind: input, shape index: {}]
  %s8 = inlined_call_operand.vmem [shape: f32[2,64,32], index: 8, kind: output, shape index: {}]
  %s9 = sld [smem:[#allocation0]]
  $region81: #{tpu_custom_call.1} parent=0
    _
  %s11 = ssub.s32 1, %s9
  %s12 = scalar_select 0, %s11, %s9
  $region1: #{tpu_custom_call.1} parent=0
    #allocation2 [shape = 'u8[512]{0}', space=smem, size = 0x200, scoped, tag = 'input window, operand 4, single buffered']
    #allocation3 [shape = 's32[2]{0}', space=sflag, size = 0x8, scoped, tag = 'scoped memory for tpu_custom_call.1']
    #allocation4 [shape = 'u8[512]{0}', space=smem, size = 0x200, scoped, tag = 'input window, operand 5, single buffered']
    #allocation5 [shape = 's32[1]{0}', space=sflag, size = 0x4, scoped, tag = 'scoped memory for tpu_custom_call.1']
    #allocation6 [shape = 'u8[512]{0}', space=smem, size = 0x200, scoped, tag = 'input window, operand 6, single buffered']
    #allocation7 [shape = 'u8[512]{0}', space=smem, size = 0x200, scoped, tag = 'input window, operand 7, single buffered']
    #allocation8 [shape = 's32[1]{0}', space=sflag, size = 0x4, scoped, tag = 'scoped memory for tpu_custom_call.1']
    %13 = vsyncpa [#allocation3], 0
    %14 = vsyncpa [#allocation5], 0
    %15 = vsyncpa [#allocation8], 0
    loop: start=0, step=1, limit=4
    $region2: #{tpu_custom_call.1} parent=1 // loop_pre_header
      _
    $region3: #{tpu_custom_call.1} parent=1 // loop_header
      %s17 = sphi 0, %s21
      %p18 = scmp.ge.s32.totalorder %s17, 4
      %s24 = sphi 0, %s36
      %s25 = sphi 0, %s32
      %s26 = sphi 0, %s24
      %s27 = sphi 0, %s25
      %s28 = sphi 0, %s26
      %s29 = sphi 0, %s27
      %s41 = sphi 0, %s43
      %s44 = sphi 0, %s41
      %s45 = sphi 0, %s44
      %s61 = sphi 0, %s45
      %s67 = sphi 0, %s69
      %s70 = sphi 0, %s67
      %s71 = sphi 0, %s70
      %s87 = sphi 0, %s71
      %s91 = sphi 0, %s91
      %s93 = sphi 0, %s91
      %s94 = sphi 0, %s93
      %s108 = sphi 0, %s94
      %s116 = sphi 0, %s118
      %s119 = sphi 0, %s116
      %s120 = sphi 0, %s119
      %s136 = sphi 0, %s120
      %s140 = sphi 0, %s140
      %s142 = sphi 0, %s140
      %s143 = sphi 0, %s142
      %s157 = sphi 0, %s143
      %s161 = sphi 0, %s161
      %s163 = sphi 0, %s161
      %s164 = sphi 0, %s163
      %s178 = sphi 0, %s164
      %s182 = sphi 0, %s182
      %s184 = sphi 0, %s182
      %s185 = sphi 0, %s184
      %s199 = sphi 0, %s185
      %s203 = sphi 0, %s203
      %s205 = sphi 0, %s203
      %s206 = sphi 0, %s205
      %s220 = sphi 0, %s206
      %s228 = sphi 0, %s230
      %s231 = sphi 0, %s228
      %s232 = sphi 0, %s231
      %s248 = sphi 0, %s232
    $region4: #{tpu_custom_call.1} parent=1 // loop_header_branch
      %20 = sbr.rel (%p18) target = $region8
    $region5: #{tpu_custom_call.1} parent=1 // loop_body
      %s22 = ssub.s32 %s17, 1
      %s23 = ssub.s32 %s17, 2
      %s30 = sadd.s32 1, %s25
      %p31 = scmp.ge.s32.totalorder %s30, 1
      %s32 = scalar_select %p31, 0, %s30
      %s33 = sadd.s32 1, %s24
      %s34 = scalar_select %p31, %s33, %s24
      %p35 = scmp.ge.s32.totalorder %s34, 2
      %s36 = scalar_select %p35, 0, %s34
      %s37 = ssub.s32 %s24, %s36
      %s38 = ssub.s32 %s25, %s32
      %s39 = sor.u32 %s37, %s38
      %p40 = scmp.eq.s32.totalorder %s39, 0
      %s42 = sadd.s32 %s41, 1
      %s43 = scalar_select %p40, %s41, %s42
      %p46 = pneg %p40
      %p47 = scmp.eq.s32.totalorder %s17, 1
      %p48 = por %p46, %p47
      %p49 = scmp.ne.s32.totalorder %s41, %s44
      %p50 = scmp.eq.s32.totalorder %s17, 0
      %p51 = por %p49, %p50
      %p52 = scmp.ne.s32.totalorder %s41, %s44
      %p53 = scmp.eq.s32.totalorder %s22, 1
      %p54 = por %p52, %p53
      %p55 = scmp.ne.s32.totalorder %s44, %s45
      %p56 = scmp.eq.s32.totalorder %s22, 0
      %p57 = por %p55, %p56
      %p58 = scmp.ne.s32.totalorder %s44, %s45
      %p59 = scmp.eq.s32.totalorder %s23, 1
      %p60 = por %p58, %p59
      %p62 = scmp.ne.s32.totalorder %s45, %s61
      %p63 = scmp.eq.s32.totalorder %s23, 0
      %p64 = por %p62, %p63
      %s65 = ssub.s32 %s24, %s36
      %p66 = scmp.eq.s32.totalorder %s65, 0
      %s68 = sadd.s32 %s67, 1
      %s69 = scalar_select %p66, %s67, %s68
      %p72 = pneg %p66
      %p73 = scmp.eq.s32.totalorder %s17, 1
      %p74 = por %p72, %p73
      %p75 = scmp.ne.s32.totalorder %s67, %s70
      %p76 = scmp.eq.s32.totalorder %s17, 0
      %p77 = por %p75, %p76
      %p78 = scmp.ne.s32.totalorder %s67, %s70
      %p79 = scmp.eq.s32.totalorder %s22, 1
      %p80 = por %p78, %p79
      %p81 = scmp.ne.s32.totalorder %s70, %s71
      %p82 = scmp.eq.s32.totalorder %s22, 0
      %p83 = por %p81, %p82
      %p84 = scmp.ne.s32.totalorder %s70, %s71
      %p85 = scmp.eq.s32.totalorder %s23, 1
      %p86 = por %p84, %p85
      %p88 = scmp.ne.s32.totalorder %s71, %s87
      %p89 = scmp.eq.s32.totalorder %s23, 0
      %p90 = por %p88, %p89
      %s92 = sadd.s32 %s91, 1
      %p95 = scmp.eq.s32.totalorder %s17, 1
      %p96 = scmp.ne.s32.totalorder %s91, %s93
      %p97 = scmp.eq.s32.totalorder %s17, 0
      %p98 = por %p96, %p97
      %p99 = scmp.ne.s32.totalorder %s91, %s93
      %p100 = scmp.eq.s32.totalorder %s22, 1
      %p101 = por %p99, %p100
      %p102 = scmp.ne.s32.totalorder %s93, %s94
      %p103 = scmp.eq.s32.totalorder %s22, 0
      %p104 = por %p102, %p103
      %p105 = scmp.ne.s32.totalorder %s93, %s94
      %p106 = scmp.eq.s32.totalorder %s23, 1
      %p107 = por %p105, %p106
      %p109 = scmp.ne.s32.totalorder %s94, %s108
      %p110 = scmp.eq.s32.totalorder %s23, 0
      %p111 = por %p109, %p110
      %s112 = ssub.s32 %s24, %s36
      %s113 = ssub.s32 %s25, %s32
      %s114 = sor.u32 %s112, %s113
      %p115 = scmp.eq.s32.totalorder %s114, 0
      %s117 = sadd.s32 %s116, 1
      %s118 = scalar_select %p115, %s116, %s117
      %p121 = pneg %p115
      %p122 = scmp.eq.s32.totalorder %s17, 1
      %p123 = por %p121, %p122
      %p124 = scmp.ne.s32.totalorder %s116, %s119
      %p125 = scmp.eq.s32.totalorder %s17, 0
      %p126 = por %p124, %p125
      %p127 = scmp.ne.s32.totalorder %s116, %s119
      %p128 = scmp.eq.s32.totalorder %s22, 1
      %p129 = por %p127, %p128
      %p130 = scmp.ne.s32.totalorder %s119, %s120
      %p131 = scmp.eq.s32.totalorder %s22, 0
      %p132 = por %p130, %p131
      %p133 = scmp.ne.s32.totalorder %s119, %s120
      %p134 = scmp.eq.s32.totalorder %s23, 1
      %p135 = por %p133, %p134
      %p137 = scmp.ne.s32.totalorder %s120, %s136
      %p138 = scmp.eq.s32.totalorder %s23, 0
      %p139 = por %p137, %p138
      %s141 = sadd.s32 %s140, 1
      %p144 = scmp.eq.s32.totalorder %s17, 1
      %p145 = scmp.ne.s32.totalorder %s140, %s142
      %p146 = scmp.eq.s32.totalorder %s17, 0
      %p147 = por %p145, %p146
      %p148 = scmp.ne.s32.totalorder %s140, %s142
      %p149 = scmp.eq.s32.totalorder %s22, 1
      %p150 = por %p148, %p149
      %p151 = scmp.ne.s32.totalorder %s142, %s143
      %p152 = scmp.eq.s32.totalorder %s22, 0
      %p153 = por %p151, %p152
      %p154 = scmp.ne.s32.totalorder %s142, %s143
      %p155 = scmp.eq.s32.totalorder %s23, 1
      %p156 = por %p154, %p155
      %p158 = scmp.ne.s32.totalorder %s143, %s157
      %p159 = scmp.eq.s32.totalorder %s23, 0
      %p160 = por %p158, %p159
      %s162 = sadd.s32 %s161, 1
      %p165 = scmp.eq.s32.totalorder %s17, 1
      %p166 = scmp.ne.s32.totalorder %s161, %s163
      %p167 = scmp.eq.s32.totalorder %s17, 0
      %p168 = por %p166, %p167
      %p169 = scmp.ne.s32.totalorder %s161, %s163
      %p170 = scmp.eq.s32.totalorder %s22, 1
      %p171 = por %p169, %p170
      %p172 = scmp.ne.s32.totalorder %s163, %s164
      %p173 = scmp.eq.s32.totalorder %s22, 0
      %p174 = por %p172, %p173
      %p175 = scmp.ne.s32.totalorder %s163, %s164
      %p176 = scmp.eq.s32.totalorder %s23, 1
      %p177 = por %p175, %p176
      %p179 = scmp.ne.s32.totalorder %s164, %s178
      %p180 = scmp.eq.s32.totalorder %s23, 0
      %p181 = por %p179, %p180
      %s183 = sadd.s32 %s182, 1
      %p186 = scmp.eq.s32.totalorder %s17, 1
      %p187 = scmp.ne.s32.totalorder %s182, %s184
      %p188 = scmp.eq.s32.totalorder %s17, 0
      %p189 = por %p187, %p188
      %p190 = scmp.ne.s32.totalorder %s182, %s184
      %p191 = scmp.eq.s32.totalorder %s22, 1
      %p192 = por %p190, %p191
      %p193 = scmp.ne.s32.totalorder %s184, %s185
      %p194 = scmp.eq.s32.totalorder %s22, 0
      %p195 = por %p193, %p194
      %p196 = scmp.ne.s32.totalorder %s184, %s185
      %p197 = scmp.eq.s32.totalorder %s23, 1
      %p198 = por %p196, %p197
      %p200 = scmp.ne.s32.totalorder %s185, %s199
      %p201 = scmp.eq.s32.totalorder %s23, 0
      %p202 = por %p200, %p201
      %s204 = sadd.s32 %s203, 1
      %p207 = scmp.eq.s32.totalorder %s17, 1
      %p208 = scmp.ne.s32.totalorder %s203, %s205
      %p209 = scmp.eq.s32.totalorder %s17, 0
      %p210 = por %p208, %p209
      %p211 = scmp.ne.s32.totalorder %s203, %s205
      %p212 = scmp.eq.s32.totalorder %s22, 1
      %p213 = por %p211, %p212
      %p214 = scmp.ne.s32.totalorder %s205, %s206
      %p215 = scmp.eq.s32.totalorder %s22, 0
      %p216 = por %p214, %p215
      %p217 = scmp.ne.s32.totalorder %s205, %s206
      %p218 = scmp.eq.s32.totalorder %s23, 1
      %p219 = por %p217, %p218
      %p221 = scmp.ne.s32.totalorder %s206, %s220
      %p222 = scmp.eq.s32.totalorder %s23, 0
      %p223 = por %p221, %p222
      %s224 = ssub.s32 %s24, %s36
      %s225 = ssub.s32 %s25, %s32
      %s226 = sor.u32 %s224, %s225
      %p227 = scmp.eq.s32.totalorder %s226, 0
      %s229 = sadd.s32 %s228, 1
      %s230 = scalar_select %p227, %s228, %s229
      %p233 = pneg %p227
      %p234 = scmp.eq.s32.totalorder %s17, 1
      %p235 = por %p233, %p234
      %p236 = scmp.ne.s32.totalorder %s228, %s231
      %p237 = scmp.eq.s32.totalorder %s17, 0
      %p238 = por %p236, %p237
      %p239 = scmp.ne.s32.totalorder %s228, %s231
      %p240 = scmp.eq.s32.totalorder %s22, 1
      %p241 = por %p239, %p240
      %p242 = scmp.ne.s32.totalorder %s231, %s232
      %p243 = scmp.eq.s32.totalorder %s22, 0
      %p244 = por %p242, %p243
      %p245 = scmp.ne.s32.totalorder %s231, %s232
      %p246 = scmp.eq.s32.totalorder %s23, 1
      %p247 = por %p245, %p246
      %p249 = scmp.ne.s32.totalorder %s232, %s248
      %p250 = scmp.eq.s32.totalorder %s23, 0
      %p251 = por %p249, %p250
      %p252 = scmp.le.s32.totalorder 1, %s17
      %p253 = scmp.lt.s32.totalorder %s17, 3
      %p254 = pnand %p252, %p253
      %p255 = pneg %p254
      // Predicated region
      $region9: #{tpu_custom_call.1} parent=5 // pred_check
        _
      $region10: #{tpu_custom_call.1} parent=5 // pred_check_branch
        %257 = sbr.rel (%p254) target = $region12
      $region11: #{tpu_custom_call.1} parent=5 // pred_region
        %s258 = ssub.s32 %s17, 1
        // Predicated region
        $region13: #{tpu_custom_call.1} parent=11 // pred_check
          %p259 = pneg %p104
        $region14: #{tpu_custom_call.1} parent=11 // pred_check_branch
          %261 = sbr.rel (%p259) target = $region16
        $region15: #{tpu_custom_call.1} parent=11 // pred_region
          _
        $region16: #{tpu_custom_call.1} parent=11 // pred_fallthru
          _
        // Predicated region
        $region17: #{tpu_custom_call.1} parent=11 // pred_check
          %p262 = pneg %p153
        $region18: #{tpu_custom_call.1} parent=11 // pred_check_branch
          %264 = sbr.rel (%p262) target = $region20
        $region19: #{tpu_custom_call.1} parent=11 // pred_region
          %s266 = ssub.s32 16, 16
          %267 = vsyncadd [#allocation3], %s266
          %s269 = sshll.u32 %s4, 4
          %s270 = int_to_ptr.vmem [resolvable:$true] %s269
          %272 = dma.vmem_to_smem %s270, 16, [#allocation2], [#allocation3]
        $region20: #{tpu_custom_call.1} parent=11 // pred_fallthru
          _
        // Predicated region
        $region21: #{tpu_custom_call.1} parent=11 // pred_check
          %p273 = pneg %p174
        $region22: #{tpu_custom_call.1} parent=11 // pred_check_branch
          %275 = sbr.rel (%p273) target = $region24
        $region23: #{tpu_custom_call.1} parent=11 // pred_region
          %s277 = ssub.s32 16, 16
          %278 = vsyncadd [#allocation5], %s277
          %s280 = sshll.u32 %s5, 4
          %s281 = int_to_ptr.vmem [resolvable:$true] %s280
          %283 = dma.vmem_to_smem %s281, 16, [#allocation4], [#allocation5]
        $region24: #{tpu_custom_call.1} parent=11 // pred_fallthru
          _
        // Predicated region
        $region25: #{tpu_custom_call.1} parent=11 // pred_check
          %p284 = pneg %p195
        $region26: #{tpu_custom_call.1} parent=11 // pred_check_branch
          %286 = sbr.rel (%p284) target = $region28
        $region27: #{tpu_custom_call.1} parent=11 // pred_region
          %s288 = ssub.s32 16, 16
          %289 = vsyncadd [#allocation5], %s288
          %s291 = sshll.u32 %s6, 4
          %s292 = int_to_ptr.vmem [resolvable:$true] %s291
          %294 = dma.vmem_to_smem %s292, 16, [#allocation6], [#allocation5]
        $region28: #{tpu_custom_call.1} parent=11 // pred_fallthru
          _
        // Predicated region
        $region29: #{tpu_custom_call.1} parent=11 // pred_check
          %p295 = pneg %p216
        $region30: #{tpu_custom_call.1} parent=11 // pred_check_branch
          %297 = sbr.rel (%p295) target = $region32
        $region31: #{tpu_custom_call.1} parent=11 // pred_region
          %s299 = ssub.s32 16, 16
          %300 = vsyncadd [#allocation8], %s299
          %s302 = sshll.u32 %s7, 4
          %s303 = int_to_ptr.vmem [resolvable:$true] %s302
          %305 = dma.vmem_to_smem %s303, 16, [#allocation7], [#allocation8]
        $region32: #{tpu_custom_call.1} parent=11 // pred_fallthru
          _
      $region12: #{tpu_custom_call.1} parent=5 // pred_fallthru
        _
      %p306 = scmp.lt.s32.totalorder %s17, 2
      // Predicated region
      $region33: #{tpu_custom_call.1} parent=5 // pred_check
        %p307 = pneg %p306
      $region34: #{tpu_custom_call.1} parent=5 // pred_check_branch
        %309 = sbr.rel (%p307) target = $region36
      $region35: #{tpu_custom_call.1} parent=5 // pred_region
        // Predicated region
        $region37: #{tpu_custom_call.1} parent=35 // pred_check
          %p310 = pneg %p51
        $region38: #{tpu_custom_call.1} parent=35 // pred_check_branch
          %312 = sbr.rel (%p310) target = $region40
        $region39: #{tpu_custom_call.1} parent=35 // pred_region
          %s313 = smul.u32 8, %s25
          %p314 = scmp.lt.s32.totalorder %s24, 1
          %s315 = scalar_select %p314, %s24, 1
          %p316 = scmp.lt.s32.totalorder %s313, 7
          %s317 = scalar_select %p316, %s313, 7
          %s318 = smul.addr %s315, 8
          %s319 = sadd.s32 %s317, %s318
          %s320 = smul.addr %s319, 8
          %s321 = scalar_lea.vmem %s0, %s320
          %s322 = smul.u32 8, %s25
        $region40: #{tpu_custom_call.1} parent=35 // pred_fallthru
          _
        // Predicated region
        $region41: #{tpu_custom_call.1} parent=35 // pred_check
          %p323 = pneg %p77
        $region42: #{tpu_custom_call.1} parent=35 // pred_check_branch
          %325 = sbr.rel (%p323) target = $region44
        $region43: #{tpu_custom_call.1} parent=35 // pred_region
          %p326 = scmp.lt.s32.totalorder %s24, 1
          %s327 = scalar_select %p326, %s24, 1
          %s328 = smul.addr %s327, 4
          %s329 = scalar_lea.vmem %s1, %s328
        $region44: #{tpu_custom_call.1} parent=35 // pred_fallthru
          _
        // Predicated region
        $region45: #{tpu_custom_call.1} parent=35 // pred_check
          %p330 = pneg %p126
        $region46: #{tpu_custom_call.1} parent=35 // pred_check_branch
          %332 = sbr.rel (%p330) target = $region48
        $region47: #{tpu_custom_call.1} parent=35 // pred_region
          %s333 = smul.u32 8, %s25
          %p334 = scmp.lt.s32.totalorder %s24, 1
          %s335 = scalar_select %p334, %s24, 1
          %p336 = scmp.lt.s32.totalorder %s333, 7
          %s337 = scalar_select %p336, %s333, 7
          %s338 = smul.addr %s335, 8
          %s339 = sadd.s32 %s337, %s338
          %s340 = smul.addr %s339, 8
          %s341 = scalar_lea.vmem %s3, %s340
          %s342 = smul.u32 8, %s25
        $region48: #{tpu_custom_call.1} parent=35 // pred_fallthru
          _
      $region36: #{tpu_custom_call.1} parent=5 // pred_fallthru
        _
      %p343 = scmp.le.s32.totalorder 1, %s17
      %p344 = scmp.lt.s32.totalorder %s17, 3
      %p345 = pnand %p343, %p344
      %p346 = pneg %p345
      // Predicated region
      $region49: #{tpu_custom_call.1} parent=5 // pred_check
        _
      $region50: #{tpu_custom_call.1} parent=5 // pred_check_branch
        %348 = sbr.rel (%p345) target = $region52
      $region51: #{tpu_custom_call.1} parent=5 // pred_region
        %s349 = ssub.s32 %s17, 1
        // Predicated region
        $region53: #{tpu_custom_call.1} parent=51 // pred_check
          %p350 = pneg %p153
        $region54: #{tpu_custom_call.1} parent=51 // pred_check_branch
          %352 = sbr.rel (%p350) target = $region56
        $region55: #{tpu_custom_call.1} parent=51 // pred_region
          %353 = dma.done [#allocation3], 16
        $region56: #{tpu_custom_call.1} parent=51 // pred_fallthru
          _
        // Predicated region
        $region57: #{tpu_custom_call.1} parent=51 // pred_check
          %p354 = pneg %p174
        $region58: #{tpu_custom_call.1} parent=51 // pred_check_branch
          %356 = sbr.rel (%p354) target = $region60
        $region59: #{tpu_custom_call.1} parent=51 // pred_region
          %357 = dma.done [#allocation5], 16
        $region60: #{tpu_custom_call.1} parent=51 // pred_fallthru
          _
        // Predicated region
        $region61: #{tpu_custom_call.1} parent=51 // pred_check
          %p358 = pneg %p195
        $region62: #{tpu_custom_call.1} parent=51 // pred_check_branch
          %360 = sbr.rel (%p358) target = $region64
        $region63: #{tpu_custom_call.1} parent=51 // pred_region
          %361 = dma.done [#allocation5], 16
        $region64: #{tpu_custom_call.1} parent=51 // pred_fallthru
          _
        // Predicated region
        $region65: #{tpu_custom_call.1} parent=51 // pred_check
          %p362 = pneg %p216
        $region66: #{tpu_custom_call.1} parent=51 // pred_check_branch
          %364 = sbr.rel (%p362) target = $region68
        $region67: #{tpu_custom_call.1} parent=51 // pred_region
          %365 = dma.done [#allocation8], 16
        $region68: #{tpu_custom_call.1} parent=51 // pred_fallthru
          _
        %366 = sfence
        %s367 = smul.u32 8, %s27
        %p368 = scmp.lt.s32.totalorder %s26, 1
        %s369 = scalar_select %p368, %s26, 1
        %p370 = scmp.lt.s32.totalorder %s367, 7
        %s371 = scalar_select %p370, %s367, 7
        %s372 = smul.addr %s369, 8
        %s373 = sadd.s32 %s371, %s372
        %s374 = smul.addr %s373, 8
        %s375 = scalar_lea.vmem %s0, %s374
        %p376 = pneg %p57
        %p377 = pneg %p54
        %p378 = scmp.lt.s32.totalorder %s26, 1
        %s379 = scalar_select %p378, %s26, 1
        %s380 = smul.addr %s379, 4
        %s381 = scalar_lea.vmem %s1, %s380
        %p382 = pneg %p83
        %p383 = pneg %p80
        %p384 = pneg %p104
        %p385 = pneg %p101
        %s386 = smul.u32 8, %s27
        %p387 = scmp.lt.s32.totalorder %s26, 1
        %s388 = scalar_select %p387, %s26, 1
        %p389 = scmp.lt.s32.totalorder %s386, 7
        %s390 = scalar_select %p389, %s386, 7
        %s391 = smul.addr %s388, 8
        %s392 = sadd.s32 %s390, %s391
        %s393 = smul.addr %s392, 8
        %s394 = scalar_lea.vmem %s3, %s393
        %p395 = pneg %p132
        %p396 = pneg %p129
        %p397 = pneg %p153
        %p398 = pneg %p150
        %p399 = pneg %p174
        %p400 = pneg %p171
        %p401 = pneg %p195
        %p402 = pneg %p192
        %p403 = pneg %p216
        %p404 = pneg %p213
        %p405 = pneg %p244
        %p406 = pneg %p241
        %s407 = smul.u32 8, %s27
        %p408 = scmp.lt.s32.totalorder %s26, 1
        %s409 = scalar_select %p408, %s26, 1
        %p410 = scmp.lt.s32.totalorder %s407, 7
        %s411 = scalar_select %p410, %s407, 7
        %s412 = smul.addr %s409, 8
        %s413 = sadd.s32 %s411, %s412
        %s414 = smul.addr %s413, 8
        %s415 = scalar_lea.vmem %s8, %s414
        %s416 = smul.u32 8, %s27
        %p417 = scmp.lt.s32.totalorder %s26, 1
        %s418 = scalar_select %p417, %s26, 1
        %p419 = scmp.lt.s32.totalorder %s416, 7
        %s420 = scalar_select %p419, %s416, 7
        %s421 = smul.addr %s418, 8
        %s422 = sadd.s32 %s420, %s421
        %s423 = smul.addr %s422, 8
        %s424 = scalar_lea.vmem %s0, %s423
        %s425 = smul.u32 8, %s27
        %p426 = scmp.lt.s32.totalorder %s26, 1
        %s427 = scalar_select %p426, %s26, 1
        %s428 = smul.addr %s427, 4
        %s429 = scalar_lea.vmem %s1, %s428
        %s430 = smul.u32 8, %s27
        %p431 = scmp.lt.s32.totalorder %s26, 1
        %s432 = scalar_select %p431, %s26, 1
        %p433 = scmp.lt.s32.totalorder %s430, 7
        %s434 = scalar_select %p433, %s430, 7
        %s435 = smul.addr %s432, 8
        %s436 = sadd.s32 %s434, %s435
        %s437 = smul.addr %s436, 8
        %s438 = scalar_lea.vmem %s3, %s437
        %s439 = smul.u32 8, %s27
        %s440 = smul.u32 8, %s27
        %p441 = scmp.lt.s32.totalorder %s26, 1
        %s442 = scalar_select %p441, %s26, 1
        %p443 = scmp.lt.s32.totalorder %s440, 7
        %s444 = scalar_select %p443, %s440, 7
        %s445 = smul.addr %s442, 8
        %s446 = sadd.s32 %s444, %s445
        %s447 = smul.addr %s446, 8
        %s448 = scalar_lea.vmem %s8, %s447
        %s449 = smul.u32 8, %s27
        %v451 = vld [vmem:[%s424] sm:$0xff]
        %v452 = vld [vmem:[%s424 + $0x8] sm:$0xff]
        %v453 = vld [vmem:[%s424 + $0x10] sm:$0xff]
        %v454 = vld [vmem:[%s424 + $0x18] sm:$0xff]
        %v455 = vld [vmem:[%s424 + $0x20] sm:$0xff]
        %v456 = vld [vmem:[%s424 + $0x28] sm:$0xff]
        %v457 = vld [vmem:[%s424 + $0x30] sm:$0xff]
        %v458 = vld [vmem:[%s424 + $0x38] sm:$0xff]
        %v459 = vld [vmem:[%s429] sm:$0x7]
        %v460 = vlaneseq
        %v461 = vshrl.u32 %v460, 7
        %v462 = vsub.s32 0, %v461
        %v463 = vrot.slane %v459, %v462
        %465 = vset.pattern.permute.xlu0 0
        %466 = vperm.xlu0 %465, %v451
        %v467 = vpop.permute.xlu0 %466
        %470 = vset.pattern.permute.xlu0 0
        %471 = vperm.xlu0 %470, %v452
        %v472 = vpop.permute.xlu0 %471
        %475 = vset.pattern.permute.xlu0 0
        %476 = vperm.xlu0 %475, %v453
        %v477 = vpop.permute.xlu0 %476
        %480 = vset.pattern.permute.xlu0 0
        %481 = vperm.xlu0 %480, %v454
        %v482 = vpop.permute.xlu0 %481
        %485 = vset.pattern.permute.xlu0 0
        %486 = vperm.xlu0 %485, %v455
        %v487 = vpop.permute.xlu0 %486
        %490 = vset.pattern.permute.xlu0 0
        %491 = vperm.xlu0 %490, %v456
        %v492 = vpop.permute.xlu0 %491
        %495 = vset.pattern.permute.xlu0 0
        %496 = vperm.xlu0 %495, %v457
        %v497 = vpop.permute.xlu0 %496
        %500 = vset.pattern.permute.xlu0 0
        %501 = vperm.xlu0 %500, %v458
        %v502 = vpop.permute.xlu0 %501
        %v504 = vsub.f32 %v463, %v467
        %v505 = vsub.f32 %v463, %v472
        %v506 = vsub.f32 %v463, %v477
        %v507 = vsub.f32 %v463, %v482
        %v508 = vsub.f32 %v463, %v487
        %v509 = vsub.f32 %v463, %v492
        %v510 = vsub.f32 %v463, %v497
        %v511 = vsub.f32 %v463, %v502
        %v512 = vlaneseq
        %v513 = vshrl.u32 %v512, 7
        %v514 = vsub.s32 1, %v513
        %v515 = vrot.slane %v459, %v514
        %516 = vset.pattern.permute.xlu0 1
        %517 = vperm.xlu0 %516, %v451
        %v518 = vpop.permute.xlu0 %517
        %520 = vset.pattern.permute.xlu0 1
        %521 = vperm.xlu0 %520, %v452
        %v522 = vpop.permute.xlu0 %521
        %524 = vset.pattern.permute.xlu0 1
        %525 = vperm.xlu0 %524, %v453
        %v526 = vpop.permute.xlu0 %525
        %528 = vset.pattern.permute.xlu0 1
        %529 = vperm.xlu0 %528, %v454
        %v530 = vpop.permute.xlu0 %529
        %532 = vset.pattern.permute.xlu0 1
        %533 = vperm.xlu0 %532, %v455
        %v534 = vpop.permute.xlu0 %533
        %536 = vset.pattern.permute.xlu0 1
        %537 = vperm.xlu0 %536, %v456
        %v538 = vpop.permute.xlu0 %537
        %540 = vset.pattern.permute.xlu0 1
        %541 = vperm.xlu0 %540, %v457
        %v542 = vpop.permute.xlu0 %541
        %544 = vset.pattern.permute.xlu0 1
        %545 = vperm.xlu0 %544, %v458
        %v546 = vpop.permute.xlu0 %545
        %v548 = vsub.f32 %v515, %v518
        %v549 = vsub.f32 %v515, %v522
        %v550 = vsub.f32 %v515, %v526
        %v551 = vsub.f32 %v515, %v530
        %v552 = vsub.f32 %v515, %v534
        %v553 = vsub.f32 %v515, %v538
        %v554 = vsub.f32 %v515, %v542
        %v555 = vsub.f32 %v515, %v546
        %v556 = vlaneseq
        %v557 = vshrl.u32 %v556, 7
        %v558 = vsub.s32 2, %v557
        %v559 = vrot.slane %v459, %v558
        %560 = vset.pattern.permute.xlu0 2
        %561 = vperm.xlu0 %560, %v451
        %v562 = vpop.permute.xlu0 %561
        %564 = vset.pattern.permute.xlu0 2
        %565 = vperm.xlu0 %564, %v452
        %v566 = vpop.permute.xlu0 %565
        %568 = vset.pattern.permute.xlu0 2
        %569 = vperm.xlu0 %568, %v453
        %v570 = vpop.permute.xlu0 %569
        %572 = vset.pattern.permute.xlu0 2
        %573 = vperm.xlu0 %572, %v454
        %v574 = vpop.permute.xlu0 %573
        %576 = vset.pattern.permute.xlu0 2
        %577 = vperm.xlu0 %576, %v455
        %v578 = vpop.permute.xlu0 %577
        %580 = vset.pattern.permute.xlu0 2
        %581 = vperm.xlu0 %580, %v456
        %v582 = vpop.permute.xlu0 %581
        %584 = vset.pattern.permute.xlu0 2
        %585 = vperm.xlu0 %584, %v457
        %v586 = vpop.permute.xlu0 %585
        %588 = vset.pattern.permute.xlu0 2
        %589 = vperm.xlu0 %588, %v458
        %v590 = vpop.permute.xlu0 %589
        %v592 = vsub.f32 %v559, %v562
        %v593 = vsub.f32 %v559, %v566
        %v594 = vsub.f32 %v559, %v570
        %v595 = vsub.f32 %v559, %v574
        %v596 = vsub.f32 %v559, %v578
        %v597 = vsub.f32 %v559, %v582
        %v598 = vsub.f32 %v559, %v586
        %v599 = vsub.f32 %v559, %v590
        %v600 = vmul.f32 %v504, %v504
        %v601 = vmul.f32 %v505, %v505
        %v602 = vmul.f32 %v506, %v506
        %v603 = vmul.f32 %v507, %v507
        %v604 = vmul.f32 %v508, %v508
        %v605 = vmul.f32 %v509, %v509
        %v606 = vmul.f32 %v510, %v510
        %v607 = vmul.f32 %v511, %v511
        %v608 = vmul.f32 %v548, %v548
        %v609 = vmul.f32 %v549, %v549
        %v610 = vmul.f32 %v550, %v550
        %v611 = vmul.f32 %v551, %v551
        %v612 = vmul.f32 %v552, %v552
        %v613 = vmul.f32 %v553, %v553
        %v614 = vmul.f32 %v554, %v554
        %v615 = vmul.f32 %v555, %v555
        %v616 = vadd.f32 %v600, %v608
        %v617 = vadd.f32 %v601, %v609
        %v618 = vadd.f32 %v602, %v610
        %v619 = vadd.f32 %v603, %v611
        %v620 = vadd.f32 %v604, %v612
        %v621 = vadd.f32 %v605, %v613
        %v622 = vadd.f32 %v606, %v614
        %v623 = vadd.f32 %v607, %v615
        %v624 = vmul.f32 %v592, %v592
        %v625 = vmul.f32 %v593, %v593
        %v626 = vmul.f32 %v594, %v594
        %v627 = vmul.f32 %v595, %v595
        %v628 = vmul.f32 %v596, %v596
        %v629 = vmul.f32 %v597, %v597
        %v630 = vmul.f32 %v598, %v598
        %v631 = vmul.f32 %v599, %v599
        %v632 = vadd.f32 %v616, %v624
        %v633 = vadd.f32 %v617, %v625
        %v634 = vadd.f32 %v618, %v626
        %v635 = vadd.f32 %v619, %v627
        %v636 = vadd.f32 %v620, %v628
        %v637 = vadd.f32 %v621, %v629
        %v638 = vadd.f32 %v622, %v630
        %v639 = vadd.f32 %v623, %v631
        %vm640 = vcmp.lt.f32.partialorder %v632, 0.1225
        %vm641 = vcmp.lt.f32.partialorder %v633, 0.1225
        %vm642 = vcmp.lt.f32.partialorder %v634, 0.1225
        %vm643 = vcmp.lt.f32.partialorder %v635, 0.1225
        %vm644 = vcmp.lt.f32.partialorder %v636, 0.1225
        %vm645 = vcmp.lt.f32.partialorder %v637, 0.1225
        %vm646 = vcmp.lt.f32.partialorder %v638, 0.1225
        %vm647 = vcmp.lt.f32.partialorder %v639, 0.1225
        %v648 = vsel %vm640, 1, 0
        %v649 = vsel %vm641, 1, 0
        %v650 = vsel %vm642, 1, 0
        %v651 = vsel %vm643, 1, 0
        %v652 = vsel %vm644, 1, 0
        %v653 = vsel %vm645, 1, 0
        %v654 = vsel %vm646, 1, 0
        %v655 = vsel %vm647, 1, 0
        %v656 = vcvt.s32.f32 %v648
        %v657 = vcvt.s32.f32 %v649
        %v658 = vcvt.s32.f32 %v650
        %v659 = vcvt.s32.f32 %v651
        %v660 = vcvt.s32.f32 %v652
        %v661 = vcvt.s32.f32 %v653
        %v662 = vcvt.s32.f32 %v654
        %v663 = vcvt.s32.f32 %v655
        %v664 = vpack.c.bf16 %v657, %v656
        %v665 = vpack.c.bf16 %v659, %v658
        %v666 = vpack.c.bf16 %v661, %v660
        %v667 = vpack.c.bf16 %v663, %v662
        %v668 = vld [vmem:[%s2] sm:$0xf]
        %v669 = vld [vmem:[%s2 + $0x4] sm:$0xf]
        %v670 = vld [vmem:[%s2 + $0x8] sm:$0xf]
        %v671 = vld [vmem:[%s2 + $0xc] sm:$0xf]
        %v672 = vld [vmem:[%s2 + $0x10] sm:$0xf]
        %v673 = vld [vmem:[%s2 + $0x14] sm:$0xf]
        %v674 = vld [vmem:[%s2 + $0x18] sm:$0xf]
        %v675 = vld [vmem:[%s2 + $0x1c] sm:$0xf]
        %v684 = vunpack.c.l.b16 %v668
        %v685 = vunpack.c.l.b16 %v669
        %v686 = vunpack.c.l.b16 %v670
        %v687 = vunpack.c.l.b16 %v671
        %v688 = vunpack.c.l.b16 %v672
        %v689 = vunpack.c.l.b16 %v673
        %v690 = vunpack.c.l.b16 %v674
        %v691 = vunpack.c.l.b16 %v675
        %v692 = vpack.c.b16 %v685, %v684
        %v693 = vpack.c.b16 %v687, %v686
        %v694 = vpack.c.b16 %v689, %v688
        %v695 = vpack.c.b16 %v691, %v690
        %vm700 = vcmask 523264
        %v702 = vsel %vm700, %v664, 0
        %v705 = vsel %vm700, %v665, 0
        %v708 = vsel %vm700, %v666, 0
        %v711 = vsel %vm700, %v667, 0
        %713 = vmatprep.subr.bf16.mxu0 0
        %714 = vmatpush1.bf16.msra.mxu0 %v692
        %715 = vmatprep.subr.bf16.mxu0 0
        %716 = vmatpush1.bf16.msra.mxu0 %v693
        %717 = vmatprep.subr.bf16.mxu0 0
        %718 = vmatpush1.bf16.msra.mxu0 %v694
        %719 = vmatprep.subr.bf16.mxu0 0
        %720 = vmatpush1.bf16.msra.mxu0 %v695
        %721 = vmatprep.subr.bf16.mxu0 0
        %722 = vmatpush1.bf16.msra.mxu0 0
        %723 = vmatprep.subr.bf16.mxu0 0
        %724 = vmatpush1.bf16.msra.mxu0 0
        %725 = vmatprep.subr.bf16.mxu0 0
        %726 = vmatpush1.bf16.msra.mxu0 0
        %727 = vmatprep.subr.bf16.mxu0 0
        %728 = vmatpush1.bf16.msra.mxu0 0
        %729 = vmatprep.subr.bf16.mxu0 0
        %730 = vmatpush1.bf16.msra.mxu0 0
        %731 = vmatprep.subr.bf16.mxu0 0
        %732 = vmatpush1.bf16.msra.mxu0 0
        %733 = vmatprep.subr.bf16.mxu0 0
        %734 = vmatpush1.bf16.msra.mxu0 0
        %735 = vmatprep.subr.bf16.mxu0 0
        %736 = vmatpush1.bf16.msra.mxu0 0
        %737 = vmatprep.subr.bf16.mxu0 0
        %738 = vmatpush1.bf16.msra.mxu0 0
        %739 = vmatprep.subr.bf16.mxu0 0
        %740 = vmatpush1.bf16.msra.mxu0 0
        %741 = vmatprep.subr.bf16.mxu0 0
        %742 = vmatpush1.bf16.msra.mxu0 0
        %743 = vmatprep.subr.bf16.mxu0 0
        %744 = vmatpush1.bf16.msra.mxu0 0
        %745 = vmatprep.mubr.bf16.mxu0 0
        %746 = vmatmul.mubr.bf16.gmra.mrb[0].mxu0 %v702
        %v747 = vpop.f32.mrb[0].mxu0
        %v748 = vadd.f32 0.0, %v747
        %v749 = vpop.f32.mrb[0].mxu0
        %v750 = vpop.f32.mrb[0].mxu0
        %v751 = vadd.f32 0.0, %v750
        %v752 = vpop.f32.mrb[0].mxu0
        %753 = vmatprep.mubr.bf16.mxu0 0
        %754 = vmatmul.mubr.bf16.gmra.mrb[0].mxu0 %v705
        %v755 = vpop.f32.mrb[0].mxu0
        %v756 = vadd.f32 0.0, %v755
        %v757 = vpop.f32.mrb[0].mxu0
        %v758 = vpop.f32.mrb[0].mxu0
        %v759 = vadd.f32 0.0, %v758
        %v760 = vpop.f32.mrb[0].mxu0
        %761 = vmatprep.mubr.bf16.mxu0 0
        %762 = vmatmul.mubr.bf16.gmra.mrb[0].mxu0 %v708
        %v763 = vpop.f32.mrb[0].mxu0
        %v764 = vadd.f32 0.0, %v763
        %v765 = vpop.f32.mrb[0].mxu0
        %v766 = vpop.f32.mrb[0].mxu0
        %v767 = vadd.f32 0.0, %v766
        %v768 = vpop.f32.mrb[0].mxu0
        %769 = vmatprep.mubr.bf16.mxu0 0
        %770 = vmatmul.mubr.bf16.gmra.mrb[0].mxu0 %v711
        %v771 = vpop.f32.mrb[0].mxu0
        %v772 = vadd.f32 0.0, %v771
        %v773 = vpop.f32.mrb[0].mxu0
        %v774 = vpop.f32.mrb[0].mxu0
        %v775 = vadd.f32 0.0, %v774
        %v776 = vpop.f32.mrb[0].mxu0
        %777 = vdwg.mxu0
        %vm778 = vcmp.le.f32.partialorder %v748, 8.0
        %vm779 = vcmp.le.f32.partialorder %v751, 8.0
        %vm780 = vcmp.le.f32.partialorder %v756, 8.0
        %vm781 = vcmp.le.f32.partialorder %v759, 8.0
        %vm782 = vcmp.le.f32.partialorder %v764, 8.0
        %vm783 = vcmp.le.f32.partialorder %v767, 8.0
        %vm784 = vcmp.le.f32.partialorder %v772, 8.0
        %vm785 = vcmp.le.f32.partialorder %v775, 8.0
        %vm786 = vmand %vm640, %vm778
        %vm787 = vmand %vm641, %vm779
        %vm788 = vmand %vm642, %vm780
        %vm789 = vmand %vm643, %vm781
        %vm790 = vmand %vm644, %vm782
        %vm791 = vmand %vm645, %vm783
        %vm792 = vmand %vm646, %vm784
        %vm793 = vmand %vm647, %vm785
        %v794 = vsel %vm786, 0.0, -1e+30
        %v795 = vsel %vm787, 0.0, -1e+30
        %v796 = vsel %vm788, 0.0, -1e+30
        %v797 = vsel %vm789, 0.0, -1e+30
        %v798 = vsel %vm790, 0.0, -1e+30
        %v799 = vsel %vm791, 0.0, -1e+30
        %v800 = vsel %vm792, 0.0, -1e+30
        %v801 = vsel %vm793, 0.0, -1e+30
        %s802 = sld [smem:[#allocation4]]
        %s803 = sld [smem:[#allocation2]]
        %v804 = vstv %s803
        %v805 = vmul.f32 %v804, %v504
        %v806 = vmul.f32 %v804, %v505
        %v807 = vmul.f32 %v804, %v506
        %v808 = vmul.f32 %v804, %v507
        %v809 = vmul.f32 %v804, %v508
        %v810 = vmul.f32 %v804, %v509
        %v811 = vmul.f32 %v804, %v510
        %v812 = vmul.f32 %v804, %v511
        %v813 = vstv %s802
        %v814 = vadd.f32 %v813, %v805
        %v815 = vadd.f32 %v813, %v806
        %v816 = vadd.f32 %v813, %v807
        %v817 = vadd.f32 %v813, %v808
        %v818 = vadd.f32 %v813, %v809
        %v819 = vadd.f32 %v813, %v810
        %v820 = vadd.f32 %v813, %v811
        %v821 = vadd.f32 %v813, %v812
        %s822 = sld [smem:[#allocation2 + $0x1]]
        %v823 = vstv %s822
        %v824 = vmul.f32 %v823, %v548
        %v825 = vmul.f32 %v823, %v549
        %v826 = vmul.f32 %v823, %v550
        %v827 = vmul.f32 %v823, %v551
        %v828 = vmul.f32 %v823, %v552
        %v829 = vmul.f32 %v823, %v553
        %v830 = vmul.f32 %v823, %v554
        %v831 = vmul.f32 %v823, %v555
        %v832 = vadd.f32 %v814, %v824
        %v833 = vadd.f32 %v815, %v825
        %v834 = vadd.f32 %v816, %v826
        %v835 = vadd.f32 %v817, %v827
        %v836 = vadd.f32 %v818, %v828
        %v837 = vadd.f32 %v819, %v829
        %v838 = vadd.f32 %v820, %v830
        %v839 = vadd.f32 %v821, %v831
        %s840 = sld [smem:[#allocation2 + $0x2]]
        %v841 = vstv %s840
        %v842 = vmul.f32 %v841, %v592
        %v843 = vmul.f32 %v841, %v593
        %v844 = vmul.f32 %v841, %v594
        %v845 = vmul.f32 %v841, %v595
        %v846 = vmul.f32 %v841, %v596
        %v847 = vmul.f32 %v841, %v597
        %v848 = vmul.f32 %v841, %v598
        %v849 = vmul.f32 %v841, %v599
        %v850 = vadd.f32 %v832, %v842
        %v851 = vadd.f32 %v833, %v843
        %v852 = vadd.f32 %v834, %v844
        %v853 = vadd.f32 %v835, %v845
        %v854 = vadd.f32 %v836, %v846
        %v855 = vadd.f32 %v837, %v847
        %v856 = vadd.f32 %v838, %v848
        %v857 = vadd.f32 %v839, %v849
        %v858 = vmax.f32 %v850, 0.0
        %v859 = vmax.f32 %v851, 0.0
        %v860 = vmax.f32 %v852, 0.0
        %v861 = vmax.f32 %v853, 0.0
        %v862 = vmax.f32 %v854, 0.0
        %v863 = vmax.f32 %v855, 0.0
        %v864 = vmax.f32 %v856, 0.0
        %v865 = vmax.f32 %v857, 0.0
        %s866 = sld [smem:[#allocation4 + $0x1]]
        %s867 = sld [smem:[#allocation2 + $0x3]]
        %v868 = vstv %s867
        %v869 = vmul.f32 %v868, %v504
        %v870 = vmul.f32 %v868, %v505
        %v871 = vmul.f32 %v868, %v506
        %v872 = vmul.f32 %v868, %v507
        %v873 = vmul.f32 %v868, %v508
        %v874 = vmul.f32 %v868, %v509
        %v875 = vmul.f32 %v868, %v510
        %v876 = vmul.f32 %v868, %v511
        %v877 = vstv %s866
        %v878 = vadd.f32 %v877, %v869
        %v879 = vadd.f32 %v877, %v870
        %v880 = vadd.f32 %v877, %v871
        %v881 = vadd.f32 %v877, %v872
        %v882 = vadd.f32 %v877, %v873
        %v883 = vadd.f32 %v877, %v874
        %v884 = vadd.f32 %v877, %v875
        %v885 = vadd.f32 %v877, %v876
        %s886 = sld [smem:[#allocation2 + $0x4]]
        %v887 = vstv %s886
        %v888 = vmul.f32 %v887, %v548
        %v889 = vmul.f32 %v887, %v549
        %v890 = vmul.f32 %v887, %v550
        %v891 = vmul.f32 %v887, %v551
        %v892 = vmul.f32 %v887, %v552
        %v893 = vmul.f32 %v887, %v553
        %v894 = vmul.f32 %v887, %v554
        %v895 = vmul.f32 %v887, %v555
        %v896 = vadd.f32 %v878, %v888
        %v897 = vadd.f32 %v879, %v889
        %v898 = vadd.f32 %v880, %v890
        %v899 = vadd.f32 %v881, %v891
        %v900 = vadd.f32 %v882, %v892
        %v901 = vadd.f32 %v883, %v893
        %v902 = vadd.f32 %v884, %v894
        %v903 = vadd.f32 %v885, %v895
        %s904 = sld [smem:[#allocation2 + $0x5]]
        %v905 = vstv %s904
        %v906 = vmul.f32 %v905, %v592
        %v907 = vmul.f32 %v905, %v593
        %v908 = vmul.f32 %v905, %v594
        %v909 = vmul.f32 %v905, %v595
        %v910 = vmul.f32 %v905, %v596
        %v911 = vmul.f32 %v905, %v597
        %v912 = vmul.f32 %v905, %v598
        %v913 = vmul.f32 %v905, %v599
        %v914 = vadd.f32 %v896, %v906
        %v915 = vadd.f32 %v897, %v907
        %v916 = vadd.f32 %v898, %v908
        %v917 = vadd.f32 %v899, %v909
        %v918 = vadd.f32 %v900, %v910
        %v919 = vadd.f32 %v901, %v911
        %v920 = vadd.f32 %v902, %v912
        %v921 = vadd.f32 %v903, %v913
        %v922 = vmax.f32 %v914, 0.0
        %v923 = vmax.f32 %v915, 0.0
        %v924 = vmax.f32 %v916, 0.0
        %v925 = vmax.f32 %v917, 0.0
        %v926 = vmax.f32 %v918, 0.0
        %v927 = vmax.f32 %v919, 0.0
        %v928 = vmax.f32 %v920, 0.0
        %v929 = vmax.f32 %v921, 0.0
        %s930 = sld [smem:[#allocation4 + $0x2]]
        %s931 = sld [smem:[#allocation2 + $0x6]]
        %v932 = vstv %s931
        %v933 = vmul.f32 %v932, %v504
        %v934 = vmul.f32 %v932, %v505
        %v935 = vmul.f32 %v932, %v506
        %v936 = vmul.f32 %v932, %v507
        %v937 = vmul.f32 %v932, %v508
        %v938 = vmul.f32 %v932, %v509
        %v939 = vmul.f32 %v932, %v510
        %v940 = vmul.f32 %v932, %v511
        %v941 = vstv %s930
        %v942 = vadd.f32 %v941, %v933
        %v943 = vadd.f32 %v941, %v934
        %v944 = vadd.f32 %v941, %v935
        %v945 = vadd.f32 %v941, %v936
        %v946 = vadd.f32 %v941, %v937
        %v947 = vadd.f32 %v941, %v938
        %v948 = vadd.f32 %v941, %v939
        %v949 = vadd.f32 %v941, %v940
        %s950 = sld [smem:[#allocation2 + $0x7]]
        %v951 = vstv %s950
        %v952 = vmul.f32 %v951, %v548
        %v953 = vmul.f32 %v951, %v549
        %v954 = vmul.f32 %v951, %v550
        %v955 = vmul.f32 %v951, %v551
        %v956 = vmul.f32 %v951, %v552
        %v957 = vmul.f32 %v951, %v553
        %v958 = vmul.f32 %v951, %v554
        %v959 = vmul.f32 %v951, %v555
        %v960 = vadd.f32 %v942, %v952
        %v961 = vadd.f32 %v943, %v953
        %v962 = vadd.f32 %v944, %v954
        %v963 = vadd.f32 %v945, %v955
        %v964 = vadd.f32 %v946, %v956
        %v965 = vadd.f32 %v947, %v957
        %v966 = vadd.f32 %v948, %v958
        %v967 = vadd.f32 %v949, %v959
        %s968 = sld [smem:[#allocation2 + $0x8]]
        %v969 = vstv %s968
        %v970 = vmul.f32 %v969, %v592
        %v971 = vmul.f32 %v969, %v593
        %v972 = vmul.f32 %v969, %v594
        %v973 = vmul.f32 %v969, %v595
        %v974 = vmul.f32 %v969, %v596
        %v975 = vmul.f32 %v969, %v597
        %v976 = vmul.f32 %v969, %v598
        %v977 = vmul.f32 %v969, %v599
        %v978 = vadd.f32 %v960, %v970
        %v979 = vadd.f32 %v961, %v971
        %v980 = vadd.f32 %v962, %v972
        %v981 = vadd.f32 %v963, %v973
        %v982 = vadd.f32 %v964, %v974
        %v983 = vadd.f32 %v965, %v975
        %v984 = vadd.f32 %v966, %v976
        %v985 = vadd.f32 %v967, %v977
        %v986 = vmax.f32 %v978, 0.0
        %v987 = vmax.f32 %v979, 0.0
        %v988 = vmax.f32 %v980, 0.0
        %v989 = vmax.f32 %v981, 0.0
        %v990 = vmax.f32 %v982, 0.0
        %v991 = vmax.f32 %v983, 0.0
        %v992 = vmax.f32 %v984, 0.0
        %v993 = vmax.f32 %v985, 0.0
        %s994 = sld [smem:[#allocation6]]
        %v995 = vstv %s994
        %v996 = vmul.f32 %v995, %v858
        %v997 = vmul.f32 %v995, %v859
        %v998 = vmul.f32 %v995, %v860
        %v999 = vmul.f32 %v995, %v861
        %v1000 = vmul.f32 %v995, %v862
        %v1001 = vmul.f32 %v995, %v863
        %v1002 = vmul.f32 %v995, %v864
        %v1003 = vmul.f32 %v995, %v865
        %s1004 = sld [smem:[#allocation6 + $0x1]]
        %v1005 = vstv %s1004
        %v1006 = vmul.f32 %v1005, %v922
        %v1007 = vmul.f32 %v1005, %v923
        %v1008 = vmul.f32 %v1005, %v924
        %v1009 = vmul.f32 %v1005, %v925
        %v1010 = vmul.f32 %v1005, %v926
        %v1011 = vmul.f32 %v1005, %v927
        %v1012 = vmul.f32 %v1005, %v928
        %v1013 = vmul.f32 %v1005, %v929
        %v1014 = vadd.f32 %v996, %v1006
        %v1015 = vadd.f32 %v997, %v1007
        %v1016 = vadd.f32 %v998, %v1008
        %v1017 = vadd.f32 %v999, %v1009
        %v1018 = vadd.f32 %v1000, %v1010
        %v1019 = vadd.f32 %v1001, %v1011
        %v1020 = vadd.f32 %v1002, %v1012
        %v1021 = vadd.f32 %v1003, %v1013
        %s1022 = sld [smem:[#allocation6 + $0x2]]
        %v1023 = vstv %s1022
        %v1024 = vmul.f32 %v1023, %v986
        %v1025 = vmul.f32 %v1023, %v987
        %v1026 = vmul.f32 %v1023, %v988
        %v1027 = vmul.f32 %v1023, %v989
        %v1028 = vmul.f32 %v1023, %v990
        %v1029 = vmul.f32 %v1023, %v991
        %v1030 = vmul.f32 %v1023, %v992
        %v1031 = vmul.f32 %v1023, %v993
        %v1032 = vadd.f32 %v1014, %v1024
        %v1033 = vadd.f32 %v1015, %v1025
        %v1034 = vadd.f32 %v1016, %v1026
        %v1035 = vadd.f32 %v1017, %v1027
        %v1036 = vadd.f32 %v1018, %v1028
        %v1037 = vadd.f32 %v1019, %v1029
        %v1038 = vadd.f32 %v1020, %v1030
        %v1039 = vadd.f32 %v1021, %v1031
        %v1040 = vadd.f32 %v1032, %v794
        %v1041 = vadd.f32 %v1033, %v795
        %v1042 = vadd.f32 %v1034, %v796
        %v1043 = vadd.f32 %v1035, %v797
        %v1044 = vadd.f32 %v1036, %v798
        %v1045 = vadd.f32 %v1037, %v799
        %v1046 = vadd.f32 %v1038, %v800
        %v1047 = vadd.f32 %v1039, %v801
        %v1048 = vsel %vm700, %v1040, -inf
        %1049 = vmax.xlane.f32.xlu0 %v1048
        %v1050 = vpop.xlane.xlu0 %1049
        %v1051 = vsel %vm700, %v1041, -inf
        %1052 = vmax.xlane.f32.xlu0 %v1051
        %v1053 = vpop.xlane.xlu0 %1052
        %v1054 = vsel %vm700, %v1042, -inf
        %1055 = vmax.xlane.f32.xlu0 %v1054
        %v1056 = vpop.xlane.xlu0 %1055
        %v1057 = vsel %vm700, %v1043, -inf
        %1058 = vmax.xlane.f32.xlu0 %v1057
        %v1059 = vpop.xlane.xlu0 %1058
        %v1060 = vsel %vm700, %v1044, -inf
        %1061 = vmax.xlane.f32.xlu0 %v1060
        %v1062 = vpop.xlane.xlu0 %1061
        %v1063 = vsel %vm700, %v1045, -inf
        %1064 = vmax.xlane.f32.xlu0 %v1063
        %v1065 = vpop.xlane.xlu0 %1064
        %v1066 = vsel %vm700, %v1046, -inf
        %1067 = vmax.xlane.f32.xlu0 %v1066
        %v1068 = vpop.xlane.xlu0 %1067
        %v1069 = vsel %vm700, %v1047, -inf
        %1070 = vmax.xlane.f32.xlu0 %v1069
        %v1071 = vpop.xlane.xlu0 %1070
        %s1072 = sld [smem:[#allocation7]]
        %v1073 = vstv %s1072
        %v1074 = vadd.f32 %v1050, %v1073
        %v1075 = vadd.f32 %v1053, %v1073
        %v1076 = vadd.f32 %v1056, %v1073
        %v1077 = vadd.f32 %v1059, %v1073
        %v1078 = vadd.f32 %v1062, %v1073
        %v1079 = vadd.f32 %v1065, %v1073
        %v1080 = vadd.f32 %v1068, %v1073
        %v1081 = vadd.f32 %v1071, %v1073
        %s1082 = sld [smem:[#allocation6 + $0x3]]
        %v1083 = vstv %s1082
        %v1084 = vmul.f32 %v1083, %v858
        %v1085 = vmul.f32 %v1083, %v859
        %v1086 = vmul.f32 %v1083, %v860
        %v1087 = vmul.f32 %v1083, %v861
        %v1088 = vmul.f32 %v1083, %v862
        %v1089 = vmul.f32 %v1083, %v863
        %v1090 = vmul.f32 %v1083, %v864
        %v1091 = vmul.f32 %v1083, %v865
        %s1092 = sld [smem:[#allocation6 + $0x4]]
        %v1093 = vstv %s1092
        %v1094 = vmul.f32 %v1093, %v922
        %v1095 = vmul.f32 %v1093, %v923
        %v1096 = vmul.f32 %v1093, %v924
        %v1097 = vmul.f32 %v1093, %v925
        %v1098 = vmul.f32 %v1093, %v926
        %v1099 = vmul.f32 %v1093, %v927
        %v1100 = vmul.f32 %v1093, %v928
        %v1101 = vmul.f32 %v1093, %v929
        %v1102 = vadd.f32 %v1084, %v1094
        %v1103 = vadd.f32 %v1085, %v1095
        %v1104 = vadd.f32 %v1086, %v1096
        %v1105 = vadd.f32 %v1087, %v1097
        %v1106 = vadd.f32 %v1088, %v1098
        %v1107 = vadd.f32 %v1089, %v1099
        %v1108 = vadd.f32 %v1090, %v1100
        %v1109 = vadd.f32 %v1091, %v1101
        %s1110 = sld [smem:[#allocation6 + $0x5]]
        %v1111 = vstv %s1110
        %v1112 = vmul.f32 %v1111, %v986
        %v1113 = vmul.f32 %v1111, %v987
        %v1114 = vmul.f32 %v1111, %v988
        %v1115 = vmul.f32 %v1111, %v989
        %v1116 = vmul.f32 %v1111, %v990
        %v1117 = vmul.f32 %v1111, %v991
        %v1118 = vmul.f32 %v1111, %v992
        %v1119 = vmul.f32 %v1111, %v993
        %v1120 = vadd.f32 %v1102, %v1112
        %v1121 = vadd.f32 %v1103, %v1113
        %v1122 = vadd.f32 %v1104, %v1114
        %v1123 = vadd.f32 %v1105, %v1115
        %v1124 = vadd.f32 %v1106, %v1116
        %v1125 = vadd.f32 %v1107, %v1117
        %v1126 = vadd.f32 %v1108, %v1118
        %v1127 = vadd.f32 %v1109, %v1119
        %v1128 = vadd.f32 %v1120, %v794
        %v1129 = vadd.f32 %v1121, %v795
        %v1130 = vadd.f32 %v1122, %v796
        %v1131 = vadd.f32 %v1123, %v797
        %v1132 = vadd.f32 %v1124, %v798
        %v1133 = vadd.f32 %v1125, %v799
        %v1134 = vadd.f32 %v1126, %v800
        %v1135 = vadd.f32 %v1127, %v801
        %v1136 = vsel %vm700, %v1128, -inf
        %1137 = vmax.xlane.f32.xlu0 %v1136
        %v1138 = vpop.xlane.xlu0 %1137
        %v1139 = vsel %vm700, %v1129, -inf
        %1140 = vmax.xlane.f32.xlu0 %v1139
        %v1141 = vpop.xlane.xlu0 %1140
        %v1142 = vsel %vm700, %v1130, -inf
        %1143 = vmax.xlane.f32.xlu0 %v1142
        %v1144 = vpop.xlane.xlu0 %1143
        %v1145 = vsel %vm700, %v1131, -inf
        %1146 = vmax.xlane.f32.xlu0 %v1145
        %v1147 = vpop.xlane.xlu0 %1146
        %v1148 = vsel %vm700, %v1132, -inf
        %1149 = vmax.xlane.f32.xlu0 %v1148
        %v1150 = vpop.xlane.xlu0 %1149
        %v1151 = vsel %vm700, %v1133, -inf
        %1152 = vmax.xlane.f32.xlu0 %v1151
        %v1153 = vpop.xlane.xlu0 %1152
        %v1154 = vsel %vm700, %v1134, -inf
        %1155 = vmax.xlane.f32.xlu0 %v1154
        %v1156 = vpop.xlane.xlu0 %1155
        %v1157 = vsel %vm700, %v1135, -inf
        %1158 = vmax.xlane.f32.xlu0 %v1157
        %v1159 = vpop.xlane.xlu0 %1158
        %s1160 = sld [smem:[#allocation7 + $0x1]]
        %v1161 = vstv %s1160
        %v1162 = vadd.f32 %v1138, %v1161
        %v1163 = vadd.f32 %v1141, %v1161
        %v1164 = vadd.f32 %v1144, %v1161
        %v1165 = vadd.f32 %v1147, %v1161
        %v1166 = vadd.f32 %v1150, %v1161
        %v1167 = vadd.f32 %v1153, %v1161
        %v1168 = vadd.f32 %v1156, %v1161
        %v1169 = vadd.f32 %v1159, %v1161
        %s1170 = sld [smem:[#allocation6 + $0x6]]
        %v1171 = vstv %s1170
        %v1172 = vmul.f32 %v1171, %v858
        %v1173 = vmul.f32 %v1171, %v859
        %v1174 = vmul.f32 %v1171, %v860
        %v1175 = vmul.f32 %v1171, %v861
        %v1176 = vmul.f32 %v1171, %v862
        %v1177 = vmul.f32 %v1171, %v863
        %v1178 = vmul.f32 %v1171, %v864
        %v1179 = vmul.f32 %v1171, %v865
        %s1180 = sld [smem:[#allocation6 + $0x7]]
        %v1181 = vstv %s1180
        %v1182 = vmul.f32 %v1181, %v922
        %v1183 = vmul.f32 %v1181, %v923
        %v1184 = vmul.f32 %v1181, %v924
        %v1185 = vmul.f32 %v1181, %v925
        %v1186 = vmul.f32 %v1181, %v926
        %v1187 = vmul.f32 %v1181, %v927
        %v1188 = vmul.f32 %v1181, %v928
        %v1189 = vmul.f32 %v1181, %v929
        %v1190 = vadd.f32 %v1172, %v1182
        %v1191 = vadd.f32 %v1173, %v1183
        %v1192 = vadd.f32 %v1174, %v1184
        %v1193 = vadd.f32 %v1175, %v1185
        %v1194 = vadd.f32 %v1176, %v1186
        %v1195 = vadd.f32 %v1177, %v1187
        %v1196 = vadd.f32 %v1178, %v1188
        %v1197 = vadd.f32 %v1179, %v1189
        %s1198 = sld [smem:[#allocation6 + $0x8]]
        %v1199 = vstv %s1198
        %v1200 = vmul.f32 %v1199, %v986
        %v1201 = vmul.f32 %v1199, %v987
        %v1202 = vmul.f32 %v1199, %v988
        %v1203 = vmul.f32 %v1199, %v989
        %v1204 = vmul.f32 %v1199, %v990
        %v1205 = vmul.f32 %v1199, %v991
        %v1206 = vmul.f32 %v1199, %v992
        %v1207 = vmul.f32 %v1199, %v993
        %v1208 = vadd.f32 %v1190, %v1200
        %v1209 = vadd.f32 %v1191, %v1201
        %v1210 = vadd.f32 %v1192, %v1202
        %v1211 = vadd.f32 %v1193, %v1203
        %v1212 = vadd.f32 %v1194, %v1204
        %v1213 = vadd.f32 %v1195, %v1205
        %v1214 = vadd.f32 %v1196, %v1206
        %v1215 = vadd.f32 %v1197, %v1207
        %v1216 = vadd.f32 %v1208, %v794
        %v1217 = vadd.f32 %v1209, %v795
        %v1218 = vadd.f32 %v1210, %v796
        %v1219 = vadd.f32 %v1211, %v797
        %v1220 = vadd.f32 %v1212, %v798
        %v1221 = vadd.f32 %v1213, %v799
        %v1222 = vadd.f32 %v1214, %v800
        %v1223 = vadd.f32 %v1215, %v801
        %v1224 = vsel %vm700, %v1216, -inf
        %1225 = vmax.xlane.f32.xlu0 %v1224
        %v1226 = vpop.xlane.xlu0 %1225
        %v1227 = vsel %vm700, %v1217, -inf
        %1228 = vmax.xlane.f32.xlu0 %v1227
        %v1229 = vpop.xlane.xlu0 %1228
        %v1230 = vsel %vm700, %v1218, -inf
        %1231 = vmax.xlane.f32.xlu0 %v1230
        %v1232 = vpop.xlane.xlu0 %1231
        %v1233 = vsel %vm700, %v1219, -inf
        %1234 = vmax.xlane.f32.xlu0 %v1233
        %v1235 = vpop.xlane.xlu0 %1234
        %v1236 = vsel %vm700, %v1220, -inf
        %1237 = vmax.xlane.f32.xlu0 %v1236
        %v1238 = vpop.xlane.xlu0 %1237
        %v1239 = vsel %vm700, %v1221, -inf
        %1240 = vmax.xlane.f32.xlu0 %v1239
        %v1241 = vpop.xlane.xlu0 %1240
        %v1242 = vsel %vm700, %v1222, -inf
        %1243 = vmax.xlane.f32.xlu0 %v1242
        %v1244 = vpop.xlane.xlu0 %1243
        %v1245 = vsel %vm700, %v1223, -inf
        %1246 = vmax.xlane.f32.xlu0 %v1245
        %v1247 = vpop.xlane.xlu0 %1246
        %s1248 = sld [smem:[#allocation7 + $0x2]]
        %v1249 = vstv %s1248
        %v1250 = vadd.f32 %v1226, %v1249
        %v1251 = vadd.f32 %v1229, %v1249
        %v1252 = vadd.f32 %v1232, %v1249
        %v1253 = vadd.f32 %v1235, %v1249
        %v1254 = vadd.f32 %v1238, %v1249
        %v1255 = vadd.f32 %v1241, %v1249
        %v1256 = vadd.f32 %v1244, %v1249
        %v1257 = vadd.f32 %v1247, %v1249
        %s1258 = sld [smem:[#allocation6 + $0x9]]
        %v1259 = vstv %s1258
        %v1260 = vmul.f32 %v1259, %v858
        %v1261 = vmul.f32 %v1259, %v859
        %v1262 = vmul.f32 %v1259, %v860
        %v1263 = vmul.f32 %v1259, %v861
        %v1264 = vmul.f32 %v1259, %v862
        %v1265 = vmul.f32 %v1259, %v863
        %v1266 = vmul.f32 %v1259, %v864
        %v1267 = vmul.f32 %v1259, %v865
        %s1268 = sld [smem:[#allocation6 + $0xa]]
        %v1269 = vstv %s1268
        %v1270 = vmul.f32 %v1269, %v922
        %v1271 = vmul.f32 %v1269, %v923
        %v1272 = vmul.f32 %v1269, %v924
        %v1273 = vmul.f32 %v1269, %v925
        %v1274 = vmul.f32 %v1269, %v926
        %v1275 = vmul.f32 %v1269, %v927
        %v1276 = vmul.f32 %v1269, %v928
        %v1277 = vmul.f32 %v1269, %v929
        %v1278 = vadd.f32 %v1260, %v1270
        %v1279 = vadd.f32 %v1261, %v1271
        %v1280 = vadd.f32 %v1262, %v1272
        %v1281 = vadd.f32 %v1263, %v1273
        %v1282 = vadd.f32 %v1264, %v1274
        %v1283 = vadd.f32 %v1265, %v1275
        %v1284 = vadd.f32 %v1266, %v1276
        %v1285 = vadd.f32 %v1267, %v1277
        %s1286 = sld [smem:[#allocation6 + $0xb]]
        %v1287 = vstv %s1286
        %v1288 = vmul.f32 %v1287, %v986
        %v1289 = vmul.f32 %v1287, %v987
        %v1290 = vmul.f32 %v1287, %v988
        %v1291 = vmul.f32 %v1287, %v989
        %v1292 = vmul.f32 %v1287, %v990
        %v1293 = vmul.f32 %v1287, %v991
        %v1294 = vmul.f32 %v1287, %v992
        %v1295 = vmul.f32 %v1287, %v993
        %v1296 = vadd.f32 %v1278, %v1288
        %v1297 = vadd.f32 %v1279, %v1289
        %v1298 = vadd.f32 %v1280, %v1290
        %v1299 = vadd.f32 %v1281, %v1291
        %v1300 = vadd.f32 %v1282, %v1292
        %v1301 = vadd.f32 %v1283, %v1293
        %v1302 = vadd.f32 %v1284, %v1294
        %v1303 = vadd.f32 %v1285, %v1295
        %v1304 = vadd.f32 %v1296, %v794
        %v1305 = vadd.f32 %v1297, %v795
        %v1306 = vadd.f32 %v1298, %v796
        %v1307 = vadd.f32 %v1299, %v797
        %v1308 = vadd.f32 %v1300, %v798
        %v1309 = vadd.f32 %v1301, %v799
        %v1310 = vadd.f32 %v1302, %v800
        %v1311 = vadd.f32 %v1303, %v801
        %v1312 = vsel %vm700, %v1304, -inf
        %1313 = vmax.xlane.f32.xlu0 %v1312
        %v1314 = vpop.xlane.xlu0 %1313
        %v1315 = vsel %vm700, %v1305, -inf
        %1316 = vmax.xlane.f32.xlu0 %v1315
        %v1317 = vpop.xlane.xlu0 %1316
        %v1318 = vsel %vm700, %v1306, -inf
        %1319 = vmax.xlane.f32.xlu0 %v1318
        %v1320 = vpop.xlane.xlu0 %1319
        %v1321 = vsel %vm700, %v1307, -inf
        %1322 = vmax.xlane.f32.xlu0 %v1321
        %v1323 = vpop.xlane.xlu0 %1322
        %v1324 = vsel %vm700, %v1308, -inf
        %1325 = vmax.xlane.f32.xlu0 %v1324
        %v1326 = vpop.xlane.xlu0 %1325
        %v1327 = vsel %vm700, %v1309, -inf
        %1328 = vmax.xlane.f32.xlu0 %v1327
        %v1329 = vpop.xlane.xlu0 %1328
        %v1330 = vsel %vm700, %v1310, -inf
        %1331 = vmax.xlane.f32.xlu0 %v1330
        %v1332 = vpop.xlane.xlu0 %1331
        %v1333 = vsel %vm700, %v1311, -inf
        %1334 = vmax.xlane.f32.xlu0 %v1333
        %v1335 = vpop.xlane.xlu0 %1334
        %s1336 = sld [smem:[#allocation7 + $0x3]]
        %v1337 = vstv %s1336
        %v1338 = vadd.f32 %v1314, %v1337
        %v1339 = vadd.f32 %v1317, %v1337
        %v1340 = vadd.f32 %v1320, %v1337
        %v1341 = vadd.f32 %v1323, %v1337
        %v1342 = vadd.f32 %v1326, %v1337
        %v1343 = vadd.f32 %v1329, %v1337
        %v1344 = vadd.f32 %v1332, %v1337
        %v1345 = vadd.f32 %v1335, %v1337
        %s1346 = sld [smem:[#allocation6 + $0xc]]
        %v1347 = vstv %s1346
        %v1348 = vmul.f32 %v1347, %v858
        %v1349 = vmul.f32 %v1347, %v859
        %v1350 = vmul.f32 %v1347, %v860
        %v1351 = vmul.f32 %v1347, %v861
        %v1352 = vmul.f32 %v1347, %v862
        %v1353 = vmul.f32 %v1347, %v863
        %v1354 = vmul.f32 %v1347, %v864
        %v1355 = vmul.f32 %v1347, %v865
        %s1356 = sld [smem:[#allocation6 + $0xd]]
        %v1357 = vstv %s1356
        %v1358 = vmul.f32 %v1357, %v922
        %v1359 = vmul.f32 %v1357, %v923
        %v1360 = vmul.f32 %v1357, %v924
        %v1361 = vmul.f32 %v1357, %v925
        %v1362 = vmul.f32 %v1357, %v926
        %v1363 = vmul.f32 %v1357, %v927
        %v1364 = vmul.f32 %v1357, %v928
        %v1365 = vmul.f32 %v1357, %v929
        %v1366 = vadd.f32 %v1348, %v1358
        %v1367 = vadd.f32 %v1349, %v1359
        %v1368 = vadd.f32 %v1350, %v1360
        %v1369 = vadd.f32 %v1351, %v1361
        %v1370 = vadd.f32 %v1352, %v1362
        %v1371 = vadd.f32 %v1353, %v1363
        %v1372 = vadd.f32 %v1354, %v1364
        %v1373 = vadd.f32 %v1355, %v1365
        %s1374 = sld [smem:[#allocation6 + $0xe]]
        %v1375 = vstv %s1374
        %v1376 = vmul.f32 %v1375, %v986
        %v1377 = vmul.f32 %v1375, %v987
        %v1378 = vmul.f32 %v1375, %v988
        %v1379 = vmul.f32 %v1375, %v989
        %v1380 = vmul.f32 %v1375, %v990
        %v1381 = vmul.f32 %v1375, %v991
        %v1382 = vmul.f32 %v1375, %v992
        %v1383 = vmul.f32 %v1375, %v993
        %v1384 = vadd.f32 %v1366, %v1376
        %v1385 = vadd.f32 %v1367, %v1377
        %v1386 = vadd.f32 %v1368, %v1378
        %v1387 = vadd.f32 %v1369, %v1379
        %v1388 = vadd.f32 %v1370, %v1380
        %v1389 = vadd.f32 %v1371, %v1381
        %v1390 = vadd.f32 %v1372, %v1382
        %v1391 = vadd.f32 %v1373, %v1383
        %v1392 = vadd.f32 %v1384, %v794
        %v1393 = vadd.f32 %v1385, %v795
        %v1394 = vadd.f32 %v1386, %v796
        %v1395 = vadd.f32 %v1387, %v797
        %v1396 = vadd.f32 %v1388, %v798
        %v1397 = vadd.f32 %v1389, %v799
        %v1398 = vadd.f32 %v1390, %v800
        %v1399 = vadd.f32 %v1391, %v801
        %v1400 = vsel %vm700, %v1392, -inf
        %1401 = vmax.xlane.f32.xlu0 %v1400
        %v1402 = vpop.xlane.xlu0 %1401
        %v1403 = vsel %vm700, %v1393, -inf
        %1404 = vmax.xlane.f32.xlu0 %v1403
        %v1405 = vpop.xlane.xlu0 %1404
        %v1406 = vsel %vm700, %v1394, -inf
        %1407 = vmax.xlane.f32.xlu0 %v1406
        %v1408 = vpop.xlane.xlu0 %1407
        %v1409 = vsel %vm700, %v1395, -inf
        %1410 = vmax.xlane.f32.xlu0 %v1409
        %v1411 = vpop.xlane.xlu0 %1410
        %v1412 = vsel %vm700, %v1396, -inf
        %1413 = vmax.xlane.f32.xlu0 %v1412
        %v1414 = vpop.xlane.xlu0 %1413
        %v1415 = vsel %vm700, %v1397, -inf
        %1416 = vmax.xlane.f32.xlu0 %v1415
        %v1417 = vpop.xlane.xlu0 %1416
        %v1418 = vsel %vm700, %v1398, -inf
        %1419 = vmax.xlane.f32.xlu0 %v1418
        %v1420 = vpop.xlane.xlu0 %1419
        %v1421 = vsel %vm700, %v1399, -inf
        %1422 = vmax.xlane.f32.xlu0 %v1421
        %v1423 = vpop.xlane.xlu0 %1422
        %s1424 = sld [smem:[#allocation7 + $0x4]]
        %v1425 = vstv %s1424
        %v1426 = vadd.f32 %v1402, %v1425
        %v1427 = vadd.f32 %v1405, %v1425
        %v1428 = vadd.f32 %v1408, %v1425
        %v1429 = vadd.f32 %v1411, %v1425
        %v1430 = vadd.f32 %v1414, %v1425
        %v1431 = vadd.f32 %v1417, %v1425
        %v1432 = vadd.f32 %v1420, %v1425
        %v1433 = vadd.f32 %v1423, %v1425
        %s1434 = sld [smem:[#allocation6 + $0xf]]
        %v1435 = vstv %s1434
        %v1436 = vmul.f32 %v1435, %v858
        %v1437 = vmul.f32 %v1435, %v859
        %v1438 = vmul.f32 %v1435, %v860
        %v1439 = vmul.f32 %v1435, %v861
        %v1440 = vmul.f32 %v1435, %v862
        %v1441 = vmul.f32 %v1435, %v863
        %v1442 = vmul.f32 %v1435, %v864
        %v1443 = vmul.f32 %v1435, %v865
        %s1444 = sld [smem:[#allocation6 + $0x10]]
        %v1445 = vstv %s1444
        %v1446 = vmul.f32 %v1445, %v922
        %v1447 = vmul.f32 %v1445, %v923
        %v1448 = vmul.f32 %v1445, %v924
        %v1449 = vmul.f32 %v1445, %v925
        %v1450 = vmul.f32 %v1445, %v926
        %v1451 = vmul.f32 %v1445, %v927
        %v1452 = vmul.f32 %v1445, %v928
        %v1453 = vmul.f32 %v1445, %v929
        %v1454 = vadd.f32 %v1436, %v1446
        %v1455 = vadd.f32 %v1437, %v1447
        %v1456 = vadd.f32 %v1438, %v1448
        %v1457 = vadd.f32 %v1439, %v1449
        %v1458 = vadd.f32 %v1440, %v1450
        %v1459 = vadd.f32 %v1441, %v1451
        %v1460 = vadd.f32 %v1442, %v1452
        %v1461 = vadd.f32 %v1443, %v1453
        %s1462 = sld [smem:[#allocation6 + $0x11]]
        %v1463 = vstv %s1462
        %v1464 = vmul.f32 %v1463, %v986
        %v1465 = vmul.f32 %v1463, %v987
        %v1466 = vmul.f32 %v1463, %v988
        %v1467 = vmul.f32 %v1463, %v989
        %v1468 = vmul.f32 %v1463, %v990
        %v1469 = vmul.f32 %v1463, %v991
        %v1470 = vmul.f32 %v1463, %v992
        %v1471 = vmul.f32 %v1463, %v993
        %v1472 = vadd.f32 %v1454, %v1464
        %v1473 = vadd.f32 %v1455, %v1465
        %v1474 = vadd.f32 %v1456, %v1466
        %v1475 = vadd.f32 %v1457, %v1467
        %v1476 = vadd.f32 %v1458, %v1468
        %v1477 = vadd.f32 %v1459, %v1469
        %v1478 = vadd.f32 %v1460, %v1470
        %v1479 = vadd.f32 %v1461, %v1471
        %v1480 = vadd.f32 %v1472, %v794
        %v1481 = vadd.f32 %v1473, %v795
        %v1482 = vadd.f32 %v1474, %v796
        %v1483 = vadd.f32 %v1475, %v797
        %v1484 = vadd.f32 %v1476, %v798
        %v1485 = vadd.f32 %v1477, %v799
        %v1486 = vadd.f32 %v1478, %v800
        %v1487 = vadd.f32 %v1479, %v801
        %v1488 = vsel %vm700, %v1480, -inf
        %1489 = vmax.xlane.f32.xlu0 %v1488
        %v1490 = vpop.xlane.xlu0 %1489
        %v1491 = vsel %vm700, %v1481, -inf
        %1492 = vmax.xlane.f32.xlu0 %v1491
        %v1493 = vpop.xlane.xlu0 %1492
        %v1494 = vsel %vm700, %v1482, -inf
        %1495 = vmax.xlane.f32.xlu0 %v1494
        %v1496 = vpop.xlane.xlu0 %1495
        %v1497 = vsel %vm700, %v1483, -inf
        %1498 = vmax.xlane.f32.xlu0 %v1497
        %v1499 = vpop.xlane.xlu0 %1498
        %v1500 = vsel %vm700, %v1484, -inf
        %1501 = vmax.xlane.f32.xlu0 %v1500
        %v1502 = vpop.xlane.xlu0 %1501
        %v1503 = vsel %vm700, %v1485, -inf
        %1504 = vmax.xlane.f32.xlu0 %v1503
        %v1505 = vpop.xlane.xlu0 %1504
        %v1506 = vsel %vm700, %v1486, -inf
        %1507 = vmax.xlane.f32.xlu0 %v1506
        %v1508 = vpop.xlane.xlu0 %1507
        %v1509 = vsel %vm700, %v1487, -inf
        %1510 = vmax.xlane.f32.xlu0 %v1509
        %v1511 = vpop.xlane.xlu0 %1510
        %s1512 = sld [smem:[#allocation7 + $0x5]]
        %v1513 = vstv %s1512
        %v1514 = vadd.f32 %v1490, %v1513
        %v1515 = vadd.f32 %v1493, %v1513
        %v1516 = vadd.f32 %v1496, %v1513
        %v1517 = vadd.f32 %v1499, %v1513
        %v1518 = vadd.f32 %v1502, %v1513
        %v1519 = vadd.f32 %v1505, %v1513
        %v1520 = vadd.f32 %v1508, %v1513
        %v1521 = vadd.f32 %v1511, %v1513
        %s1522 = sld [smem:[#allocation6 + $0x12]]
        %v1523 = vstv %s1522
        %v1524 = vmul.f32 %v1523, %v858
        %v1525 = vmul.f32 %v1523, %v859
        %v1526 = vmul.f32 %v1523, %v860
        %v1527 = vmul.f32 %v1523, %v861
        %v1528 = vmul.f32 %v1523, %v862
        %v1529 = vmul.f32 %v1523, %v863
        %v1530 = vmul.f32 %v1523, %v864
        %v1531 = vmul.f32 %v1523, %v865
        %s1532 = sld [smem:[#allocation6 + $0x13]]
        %v1533 = vstv %s1532
        %v1534 = vmul.f32 %v1533, %v922
        %v1535 = vmul.f32 %v1533, %v923
        %v1536 = vmul.f32 %v1533, %v924
        %v1537 = vmul.f32 %v1533, %v925
        %v1538 = vmul.f32 %v1533, %v926
        %v1539 = vmul.f32 %v1533, %v927
        %v1540 = vmul.f32 %v1533, %v928
        %v1541 = vmul.f32 %v1533, %v929
        %v1542 = vadd.f32 %v1524, %v1534
        %v1543 = vadd.f32 %v1525, %v1535
        %v1544 = vadd.f32 %v1526, %v1536
        %v1545 = vadd.f32 %v1527, %v1537
        %v1546 = vadd.f32 %v1528, %v1538
        %v1547 = vadd.f32 %v1529, %v1539
        %v1548 = vadd.f32 %v1530, %v1540
        %v1549 = vadd.f32 %v1531, %v1541
        %s1550 = sld [smem:[#allocation6 + $0x14]]
        %v1551 = vstv %s1550
        %v1552 = vmul.f32 %v1551, %v986
        %v1553 = vmul.f32 %v1551, %v987
        %v1554 = vmul.f32 %v1551, %v988
        %v1555 = vmul.f32 %v1551, %v989
        %v1556 = vmul.f32 %v1551, %v990
        %v1557 = vmul.f32 %v1551, %v991
        %v1558 = vmul.f32 %v1551, %v992
        %v1559 = vmul.f32 %v1551, %v993
        %v1560 = vadd.f32 %v1542, %v1552
        %v1561 = vadd.f32 %v1543, %v1553
        %v1562 = vadd.f32 %v1544, %v1554
        %v1563 = vadd.f32 %v1545, %v1555
        %v1564 = vadd.f32 %v1546, %v1556
        %v1565 = vadd.f32 %v1547, %v1557
        %v1566 = vadd.f32 %v1548, %v1558
        %v1567 = vadd.f32 %v1549, %v1559
        %v1568 = vadd.f32 %v1560, %v794
        %v1569 = vadd.f32 %v1561, %v795
        %v1570 = vadd.f32 %v1562, %v796
        %v1571 = vadd.f32 %v1563, %v797
        %v1572 = vadd.f32 %v1564, %v798
        %v1573 = vadd.f32 %v1565, %v799
        %v1574 = vadd.f32 %v1566, %v800
        %v1575 = vadd.f32 %v1567, %v801
        %v1576 = vsel %vm700, %v1568, -inf
        %1577 = vmax.xlane.f32.xlu0 %v1576
        %v1578 = vpop.xlane.xlu0 %1577
        %v1579 = vsel %vm700, %v1569, -inf
        %1580 = vmax.xlane.f32.xlu0 %v1579
        %v1581 = vpop.xlane.xlu0 %1580
        %v1582 = vsel %vm700, %v1570, -inf
        %1583 = vmax.xlane.f32.xlu0 %v1582
        %v1584 = vpop.xlane.xlu0 %1583
        %v1585 = vsel %vm700, %v1571, -inf
        %1586 = vmax.xlane.f32.xlu0 %v1585
        %v1587 = vpop.xlane.xlu0 %1586
        %v1588 = vsel %vm700, %v1572, -inf
        %1589 = vmax.xlane.f32.xlu0 %v1588
        %v1590 = vpop.xlane.xlu0 %1589
        %v1591 = vsel %vm700, %v1573, -inf
        %1592 = vmax.xlane.f32.xlu0 %v1591
        %v1593 = vpop.xlane.xlu0 %1592
        %v1594 = vsel %vm700, %v1574, -inf
        %1595 = vmax.xlane.f32.xlu0 %v1594
        %v1596 = vpop.xlane.xlu0 %1595
        %v1597 = vsel %vm700, %v1575, -inf
        %1598 = vmax.xlane.f32.xlu0 %v1597
        %v1599 = vpop.xlane.xlu0 %1598
        %s1600 = sld [smem:[#allocation7 + $0x6]]
        %v1601 = vstv %s1600
        %v1602 = vadd.f32 %v1578, %v1601
        %v1603 = vadd.f32 %v1581, %v1601
        %v1604 = vadd.f32 %v1584, %v1601
        %v1605 = vadd.f32 %v1587, %v1601
        %v1606 = vadd.f32 %v1590, %v1601
        %v1607 = vadd.f32 %v1593, %v1601
        %v1608 = vadd.f32 %v1596, %v1601
        %v1609 = vadd.f32 %v1599, %v1601
        %s1610 = sld [smem:[#allocation6 + $0x15]]
        %v1611 = vstv %s1610
        %v1612 = vmul.f32 %v1611, %v858
        %v1613 = vmul.f32 %v1611, %v859
        %v1614 = vmul.f32 %v1611, %v860
        %v1615 = vmul.f32 %v1611, %v861
        %v1616 = vmul.f32 %v1611, %v862
        %v1617 = vmul.f32 %v1611, %v863
        %v1618 = vmul.f32 %v1611, %v864
        %v1619 = vmul.f32 %v1611, %v865
        %s1620 = sld [smem:[#allocation6 + $0x16]]
        %v1621 = vstv %s1620
        %v1622 = vmul.f32 %v1621, %v922
        %v1623 = vmul.f32 %v1621, %v923
        %v1624 = vmul.f32 %v1621, %v924
        %v1625 = vmul.f32 %v1621, %v925
        %v1626 = vmul.f32 %v1621, %v926
        %v1627 = vmul.f32 %v1621, %v927
        %v1628 = vmul.f32 %v1621, %v928
        %v1629 = vmul.f32 %v1621, %v929
        %v1630 = vadd.f32 %v1612, %v1622
        %v1631 = vadd.f32 %v1613, %v1623
        %v1632 = vadd.f32 %v1614, %v1624
        %v1633 = vadd.f32 %v1615, %v1625
        %v1634 = vadd.f32 %v1616, %v1626
        %v1635 = vadd.f32 %v1617, %v1627
        %v1636 = vadd.f32 %v1618, %v1628
        %v1637 = vadd.f32 %v1619, %v1629
        %s1638 = sld [smem:[#allocation6 + $0x17]]
        %v1639 = vstv %s1638
        %v1640 = vmul.f32 %v1639, %v986
        %v1641 = vmul.f32 %v1639, %v987
        %v1642 = vmul.f32 %v1639, %v988
        %v1643 = vmul.f32 %v1639, %v989
        %v1644 = vmul.f32 %v1639, %v990
        %v1645 = vmul.f32 %v1639, %v991
        %v1646 = vmul.f32 %v1639, %v992
        %v1647 = vmul.f32 %v1639, %v993
        %v1648 = vadd.f32 %v1630, %v1640
        %v1649 = vadd.f32 %v1631, %v1641
        %v1650 = vadd.f32 %v1632, %v1642
        %v1651 = vadd.f32 %v1633, %v1643
        %v1652 = vadd.f32 %v1634, %v1644
        %v1653 = vadd.f32 %v1635, %v1645
        %v1654 = vadd.f32 %v1636, %v1646
        %v1655 = vadd.f32 %v1637, %v1647
        %v1656 = vadd.f32 %v1648, %v794
        %v1657 = vadd.f32 %v1649, %v795
        %v1658 = vadd.f32 %v1650, %v796
        %v1659 = vadd.f32 %v1651, %v797
        %v1660 = vadd.f32 %v1652, %v798
        %v1661 = vadd.f32 %v1653, %v799
        %v1662 = vadd.f32 %v1654, %v800
        %v1663 = vadd.f32 %v1655, %v801
        %v1664 = vsel %vm700, %v1656, -inf
        %1665 = vmax.xlane.f32.xlu0 %v1664
        %v1666 = vpop.xlane.xlu0 %1665
        %v1667 = vsel %vm700, %v1657, -inf
        %1668 = vmax.xlane.f32.xlu0 %v1667
        %v1669 = vpop.xlane.xlu0 %1668
        %v1670 = vsel %vm700, %v1658, -inf
        %1671 = vmax.xlane.f32.xlu0 %v1670
        %v1672 = vpop.xlane.xlu0 %1671
        %v1673 = vsel %vm700, %v1659, -inf
        %1674 = vmax.xlane.f32.xlu0 %v1673
        %v1675 = vpop.xlane.xlu0 %1674
        %v1676 = vsel %vm700, %v1660, -inf
        %1677 = vmax.xlane.f32.xlu0 %v1676
        %v1678 = vpop.xlane.xlu0 %1677
        %v1679 = vsel %vm700, %v1661, -inf
        %1680 = vmax.xlane.f32.xlu0 %v1679
        %v1681 = vpop.xlane.xlu0 %1680
        %v1682 = vsel %vm700, %v1662, -inf
        %1683 = vmax.xlane.f32.xlu0 %v1682
        %v1684 = vpop.xlane.xlu0 %1683
        %v1685 = vsel %vm700, %v1663, -inf
        %1686 = vmax.xlane.f32.xlu0 %v1685
        %v1687 = vpop.xlane.xlu0 %1686
        %s1688 = sld [smem:[#allocation7 + $0x7]]
        %v1689 = vstv %s1688
        %v1690 = vadd.f32 %v1666, %v1689
        %v1691 = vadd.f32 %v1669, %v1689
        %v1692 = vadd.f32 %v1672, %v1689
        %v1693 = vadd.f32 %v1675, %v1689
        %v1694 = vadd.f32 %v1678, %v1689
        %v1695 = vadd.f32 %v1681, %v1689
        %v1696 = vadd.f32 %v1684, %v1689
        %v1697 = vadd.f32 %v1687, %v1689
        %s1698 = sld [smem:[#allocation6 + $0x18]]
        %v1699 = vstv %s1698
        %v1700 = vmul.f32 %v1699, %v858
        %v1701 = vmul.f32 %v1699, %v859
        %v1702 = vmul.f32 %v1699, %v860
        %v1703 = vmul.f32 %v1699, %v861
        %v1704 = vmul.f32 %v1699, %v862
        %v1705 = vmul.f32 %v1699, %v863
        %v1706 = vmul.f32 %v1699, %v864
        %v1707 = vmul.f32 %v1699, %v865
        %s1708 = sld [smem:[#allocation6 + $0x19]]
        %v1709 = vstv %s1708
        %v1710 = vmul.f32 %v1709, %v922
        %v1711 = vmul.f32 %v1709, %v923
        %v1712 = vmul.f32 %v1709, %v924
        %v1713 = vmul.f32 %v1709, %v925
        %v1714 = vmul.f32 %v1709, %v926
        %v1715 = vmul.f32 %v1709, %v927
        %v1716 = vmul.f32 %v1709, %v928
        %v1717 = vmul.f32 %v1709, %v929
        %v1718 = vadd.f32 %v1700, %v1710
        %v1719 = vadd.f32 %v1701, %v1711
        %v1720 = vadd.f32 %v1702, %v1712
        %v1721 = vadd.f32 %v1703, %v1713
        %v1722 = vadd.f32 %v1704, %v1714
        %v1723 = vadd.f32 %v1705, %v1715
        %v1724 = vadd.f32 %v1706, %v1716
        %v1725 = vadd.f32 %v1707, %v1717
        %s1726 = sld [smem:[#allocation6 + $0x1a]]
        %v1727 = vstv %s1726
        %v1728 = vmul.f32 %v1727, %v986
        %v1729 = vmul.f32 %v1727, %v987
        %v1730 = vmul.f32 %v1727, %v988
        %v1731 = vmul.f32 %v1727, %v989
        %v1732 = vmul.f32 %v1727, %v990
        %v1733 = vmul.f32 %v1727, %v991
        %v1734 = vmul.f32 %v1727, %v992
        %v1735 = vmul.f32 %v1727, %v993
        %v1736 = vadd.f32 %v1718, %v1728
        %v1737 = vadd.f32 %v1719, %v1729
        %v1738 = vadd.f32 %v1720, %v1730
        %v1739 = vadd.f32 %v1721, %v1731
        %v1740 = vadd.f32 %v1722, %v1732
        %v1741 = vadd.f32 %v1723, %v1733
        %v1742 = vadd.f32 %v1724, %v1734
        %v1743 = vadd.f32 %v1725, %v1735
        %v1744 = vadd.f32 %v1736, %v794
        %v1745 = vadd.f32 %v1737, %v795
        %v1746 = vadd.f32 %v1738, %v796
        %v1747 = vadd.f32 %v1739, %v797
        %v1748 = vadd.f32 %v1740, %v798
        %v1749 = vadd.f32 %v1741, %v799
        %v1750 = vadd.f32 %v1742, %v800
        %v1751 = vadd.f32 %v1743, %v801
        %v1752 = vsel %vm700, %v1744, -inf
        %1753 = vmax.xlane.f32.xlu0 %v1752
        %v1754 = vpop.xlane.xlu0 %1753
        %v1755 = vsel %vm700, %v1745, -inf
        %1756 = vmax.xlane.f32.xlu0 %v1755
        %v1757 = vpop.xlane.xlu0 %1756
        %v1758 = vsel %vm700, %v1746, -inf
        %1759 = vmax.xlane.f32.xlu0 %v1758
        %v1760 = vpop.xlane.xlu0 %1759
        %v1761 = vsel %vm700, %v1747, -inf
        %1762 = vmax.xlane.f32.xlu0 %v1761
        %v1763 = vpop.xlane.xlu0 %1762
        %v1764 = vsel %vm700, %v1748, -inf
        %1765 = vmax.xlane.f32.xlu0 %v1764
        %v1766 = vpop.xlane.xlu0 %1765
        %v1767 = vsel %vm700, %v1749, -inf
        %1768 = vmax.xlane.f32.xlu0 %v1767
        %v1769 = vpop.xlane.xlu0 %1768
        %v1770 = vsel %vm700, %v1750, -inf
        %1771 = vmax.xlane.f32.xlu0 %v1770
        %v1772 = vpop.xlane.xlu0 %1771
        %v1773 = vsel %vm700, %v1751, -inf
        %1774 = vmax.xlane.f32.xlu0 %v1773
        %v1775 = vpop.xlane.xlu0 %1774
        %s1776 = sld [smem:[#allocation7 + $0x8]]
        %v1777 = vstv %s1776
        %v1778 = vadd.f32 %v1754, %v1777
        %v1779 = vadd.f32 %v1757, %v1777
        %v1780 = vadd.f32 %v1760, %v1777
        %v1781 = vadd.f32 %v1763, %v1777
        %v1782 = vadd.f32 %v1766, %v1777
        %v1783 = vadd.f32 %v1769, %v1777
        %v1784 = vadd.f32 %v1772, %v1777
        %v1785 = vadd.f32 %v1775, %v1777
        %s1786 = sld [smem:[#allocation6 + $0x1b]]
        %v1787 = vstv %s1786
        %v1788 = vmul.f32 %v1787, %v858
        %v1789 = vmul.f32 %v1787, %v859
        %v1790 = vmul.f32 %v1787, %v860
        %v1791 = vmul.f32 %v1787, %v861
        %v1792 = vmul.f32 %v1787, %v862
        %v1793 = vmul.f32 %v1787, %v863
        %v1794 = vmul.f32 %v1787, %v864
        %v1795 = vmul.f32 %v1787, %v865
        %s1796 = sld [smem:[#allocation6 + $0x1c]]
        %v1797 = vstv %s1796
        %v1798 = vmul.f32 %v1797, %v922
        %v1799 = vmul.f32 %v1797, %v923
        %v1800 = vmul.f32 %v1797, %v924
        %v1801 = vmul.f32 %v1797, %v925
        %v1802 = vmul.f32 %v1797, %v926
        %v1803 = vmul.f32 %v1797, %v927
        %v1804 = vmul.f32 %v1797, %v928
        %v1805 = vmul.f32 %v1797, %v929
        %v1806 = vadd.f32 %v1788, %v1798
        %v1807 = vadd.f32 %v1789, %v1799
        %v1808 = vadd.f32 %v1790, %v1800
        %v1809 = vadd.f32 %v1791, %v1801
        %v1810 = vadd.f32 %v1792, %v1802
        %v1811 = vadd.f32 %v1793, %v1803
        %v1812 = vadd.f32 %v1794, %v1804
        %v1813 = vadd.f32 %v1795, %v1805
        %s1814 = sld [smem:[#allocation6 + $0x1d]]
        %v1815 = vstv %s1814
        %v1816 = vmul.f32 %v1815, %v986
        %v1817 = vmul.f32 %v1815, %v987
        %v1818 = vmul.f32 %v1815, %v988
        %v1819 = vmul.f32 %v1815, %v989
        %v1820 = vmul.f32 %v1815, %v990
        %v1821 = vmul.f32 %v1815, %v991
        %v1822 = vmul.f32 %v1815, %v992
        %v1823 = vmul.f32 %v1815, %v993
        %v1824 = vadd.f32 %v1806, %v1816
        %v1825 = vadd.f32 %v1807, %v1817
        %v1826 = vadd.f32 %v1808, %v1818
        %v1827 = vadd.f32 %v1809, %v1819
        %v1828 = vadd.f32 %v1810, %v1820
        %v1829 = vadd.f32 %v1811, %v1821
        %v1830 = vadd.f32 %v1812, %v1822
        %v1831 = vadd.f32 %v1813, %v1823
        %v1832 = vadd.f32 %v1824, %v794
        %v1833 = vadd.f32 %v1825, %v795
        %v1834 = vadd.f32 %v1826, %v796
        %v1835 = vadd.f32 %v1827, %v797
        %v1836 = vadd.f32 %v1828, %v798
        %v1837 = vadd.f32 %v1829, %v799
        %v1838 = vadd.f32 %v1830, %v800
        %v1839 = vadd.f32 %v1831, %v801
        %v1840 = vsel %vm700, %v1832, -inf
        %1841 = vmax.xlane.f32.xlu0 %v1840
        %v1842 = vpop.xlane.xlu0 %1841
        %v1843 = vsel %vm700, %v1833, -inf
        %1844 = vmax.xlane.f32.xlu0 %v1843
        %v1845 = vpop.xlane.xlu0 %1844
        %v1846 = vsel %vm700, %v1834, -inf
        %1847 = vmax.xlane.f32.xlu0 %v1846
        %v1848 = vpop.xlane.xlu0 %1847
        %v1849 = vsel %vm700, %v1835, -inf
        %1850 = vmax.xlane.f32.xlu0 %v1849
        %v1851 = vpop.xlane.xlu0 %1850
        %v1852 = vsel %vm700, %v1836, -inf
        %1853 = vmax.xlane.f32.xlu0 %v1852
        %v1854 = vpop.xlane.xlu0 %1853
        %v1855 = vsel %vm700, %v1837, -inf
        %1856 = vmax.xlane.f32.xlu0 %v1855
        %v1857 = vpop.xlane.xlu0 %1856
        %v1858 = vsel %vm700, %v1838, -inf
        %1859 = vmax.xlane.f32.xlu0 %v1858
        %v1860 = vpop.xlane.xlu0 %1859
        %v1861 = vsel %vm700, %v1839, -inf
        %1862 = vmax.xlane.f32.xlu0 %v1861
        %v1863 = vpop.xlane.xlu0 %1862
        %s1864 = sld [smem:[#allocation7 + $0x9]]
        %v1865 = vstv %s1864
        %v1866 = vadd.f32 %v1842, %v1865
        %v1867 = vadd.f32 %v1845, %v1865
        %v1868 = vadd.f32 %v1848, %v1865
        %v1869 = vadd.f32 %v1851, %v1865
        %v1870 = vadd.f32 %v1854, %v1865
        %v1871 = vadd.f32 %v1857, %v1865
        %v1872 = vadd.f32 %v1860, %v1865
        %v1873 = vadd.f32 %v1863, %v1865
        %s1874 = sld [smem:[#allocation6 + $0x1e]]
        %v1875 = vstv %s1874
        %v1876 = vmul.f32 %v1875, %v858
        %v1877 = vmul.f32 %v1875, %v859
        %v1878 = vmul.f32 %v1875, %v860
        %v1879 = vmul.f32 %v1875, %v861
        %v1880 = vmul.f32 %v1875, %v862
        %v1881 = vmul.f32 %v1875, %v863
        %v1882 = vmul.f32 %v1875, %v864
        %v1883 = vmul.f32 %v1875, %v865
        %s1884 = sld [smem:[#allocation6 + $0x1f]]
        %v1885 = vstv %s1884
        %v1886 = vmul.f32 %v1885, %v922
        %v1887 = vmul.f32 %v1885, %v923
        %v1888 = vmul.f32 %v1885, %v924
        %v1889 = vmul.f32 %v1885, %v925
        %v1890 = vmul.f32 %v1885, %v926
        %v1891 = vmul.f32 %v1885, %v927
        %v1892 = vmul.f32 %v1885, %v928
        %v1893 = vmul.f32 %v1885, %v929
        %v1894 = vadd.f32 %v1876, %v1886
        %v1895 = vadd.f32 %v1877, %v1887
        %v1896 = vadd.f32 %v1878, %v1888
        %v1897 = vadd.f32 %v1879, %v1889
        %v1898 = vadd.f32 %v1880, %v1890
        %v1899 = vadd.f32 %v1881, %v1891
        %v1900 = vadd.f32 %v1882, %v1892
        %v1901 = vadd.f32 %v1883, %v1893
        %s1902 = sld [smem:[#allocation6 + $0x20]]
        %v1903 = vstv %s1902
        %v1904 = vmul.f32 %v1903, %v986
        %v1905 = vmul.f32 %v1903, %v987
        %v1906 = vmul.f32 %v1903, %v988
        %v1907 = vmul.f32 %v1903, %v989
        %v1908 = vmul.f32 %v1903, %v990
        %v1909 = vmul.f32 %v1903, %v991
        %v1910 = vmul.f32 %v1903, %v992
        %v1911 = vmul.f32 %v1903, %v993
        %v1912 = vadd.f32 %v1894, %v1904
        %v1913 = vadd.f32 %v1895, %v1905
        %v1914 = vadd.f32 %v1896, %v1906
        %v1915 = vadd.f32 %v1897, %v1907
        %v1916 = vadd.f32 %v1898, %v1908
        %v1917 = vadd.f32 %v1899, %v1909
        %v1918 = vadd.f32 %v1900, %v1910
        %v1919 = vadd.f32 %v1901, %v1911
        %v1920 = vadd.f32 %v1912, %v794
        %v1921 = vadd.f32 %v1913, %v795
        %v1922 = vadd.f32 %v1914, %v796
        %v1923 = vadd.f32 %v1915, %v797
        %v1924 = vadd.f32 %v1916, %v798
        %v1925 = vadd.f32 %v1917, %v799
        %v1926 = vadd.f32 %v1918, %v800
        %v1927 = vadd.f32 %v1919, %v801
        %v1928 = vsel %vm700, %v1920, -inf
        %1929 = vmax.xlane.f32.xlu0 %v1928
        %v1930 = vpop.xlane.xlu0 %1929
        %v1931 = vsel %vm700, %v1921, -inf
        %1932 = vmax.xlane.f32.xlu0 %v1931
        %v1933 = vpop.xlane.xlu0 %1932
        %v1934 = vsel %vm700, %v1922, -inf
        %1935 = vmax.xlane.f32.xlu0 %v1934
        %v1936 = vpop.xlane.xlu0 %1935
        %v1937 = vsel %vm700, %v1923, -inf
        %1938 = vmax.xlane.f32.xlu0 %v1937
        %v1939 = vpop.xlane.xlu0 %1938
        %v1940 = vsel %vm700, %v1924, -inf
        %1941 = vmax.xlane.f32.xlu0 %v1940
        %v1942 = vpop.xlane.xlu0 %1941
        %v1943 = vsel %vm700, %v1925, -inf
        %1944 = vmax.xlane.f32.xlu0 %v1943
        %v1945 = vpop.xlane.xlu0 %1944
        %v1946 = vsel %vm700, %v1926, -inf
        %1947 = vmax.xlane.f32.xlu0 %v1946
        %v1948 = vpop.xlane.xlu0 %1947
        %v1949 = vsel %vm700, %v1927, -inf
        %1950 = vmax.xlane.f32.xlu0 %v1949
        %v1951 = vpop.xlane.xlu0 %1950
        %s1952 = sld [smem:[#allocation7 + $0xa]]
        %v1953 = vstv %s1952
        %v1954 = vadd.f32 %v1930, %v1953
        %v1955 = vadd.f32 %v1933, %v1953
        %v1956 = vadd.f32 %v1936, %v1953
        %v1957 = vadd.f32 %v1939, %v1953
        %v1958 = vadd.f32 %v1942, %v1953
        %v1959 = vadd.f32 %v1945, %v1953
        %v1960 = vadd.f32 %v1948, %v1953
        %v1961 = vadd.f32 %v1951, %v1953
        %s1962 = sld [smem:[#allocation6 + $0x21]]
        %v1963 = vstv %s1962
        %v1964 = vmul.f32 %v1963, %v858
        %v1965 = vmul.f32 %v1963, %v859
        %v1966 = vmul.f32 %v1963, %v860
        %v1967 = vmul.f32 %v1963, %v861
        %v1968 = vmul.f32 %v1963, %v862
        %v1969 = vmul.f32 %v1963, %v863
        %v1970 = vmul.f32 %v1963, %v864
        %v1971 = vmul.f32 %v1963, %v865
        %s1972 = sld [smem:[#allocation6 + $0x22]]
        %v1973 = vstv %s1972
        %v1974 = vmul.f32 %v1973, %v922
        %v1975 = vmul.f32 %v1973, %v923
        %v1976 = vmul.f32 %v1973, %v924
        %v1977 = vmul.f32 %v1973, %v925
        %v1978 = vmul.f32 %v1973, %v926
        %v1979 = vmul.f32 %v1973, %v927
        %v1980 = vmul.f32 %v1973, %v928
        %v1981 = vmul.f32 %v1973, %v929
        %v1982 = vadd.f32 %v1964, %v1974
        %v1983 = vadd.f32 %v1965, %v1975
        %v1984 = vadd.f32 %v1966, %v1976
        %v1985 = vadd.f32 %v1967, %v1977
        %v1986 = vadd.f32 %v1968, %v1978
        %v1987 = vadd.f32 %v1969, %v1979
        %v1988 = vadd.f32 %v1970, %v1980
        %v1989 = vadd.f32 %v1971, %v1981
        %s1990 = sld [smem:[#allocation6 + $0x23]]
        %v1991 = vstv %s1990
        %v1992 = vmul.f32 %v1991, %v986
        %v1993 = vmul.f32 %v1991, %v987
        %v1994 = vmul.f32 %v1991, %v988
        %v1995 = vmul.f32 %v1991, %v989
        %v1996 = vmul.f32 %v1991, %v990
        %v1997 = vmul.f32 %v1991, %v991
        %v1998 = vmul.f32 %v1991, %v992
        %v1999 = vmul.f32 %v1991, %v993
        %v2000 = vadd.f32 %v1982, %v1992
        %v2001 = vadd.f32 %v1983, %v1993
        %v2002 = vadd.f32 %v1984, %v1994
        %v2003 = vadd.f32 %v1985, %v1995
        %v2004 = vadd.f32 %v1986, %v1996
        %v2005 = vadd.f32 %v1987, %v1997
        %v2006 = vadd.f32 %v1988, %v1998
        %v2007 = vadd.f32 %v1989, %v1999
        %v2008 = vadd.f32 %v2000, %v794
        %v2009 = vadd.f32 %v2001, %v795
        %v2010 = vadd.f32 %v2002, %v796
        %v2011 = vadd.f32 %v2003, %v797
        %v2012 = vadd.f32 %v2004, %v798
        %v2013 = vadd.f32 %v2005, %v799
        %v2014 = vadd.f32 %v2006, %v800
        %v2015 = vadd.f32 %v2007, %v801
        %v2016 = vsel %vm700, %v2008, -inf
        %2017 = vmax.xlane.f32.xlu0 %v2016
        %v2018 = vpop.xlane.xlu0 %2017
        %v2019 = vsel %vm700, %v2009, -inf
        %2020 = vmax.xlane.f32.xlu0 %v2019
        %v2021 = vpop.xlane.xlu0 %2020
        %v2022 = vsel %vm700, %v2010, -inf
        %2023 = vmax.xlane.f32.xlu0 %v2022
        %v2024 = vpop.xlane.xlu0 %2023
        %v2025 = vsel %vm700, %v2011, -inf
        %2026 = vmax.xlane.f32.xlu0 %v2025
        %v2027 = vpop.xlane.xlu0 %2026
        %v2028 = vsel %vm700, %v2012, -inf
        %2029 = vmax.xlane.f32.xlu0 %v2028
        %v2030 = vpop.xlane.xlu0 %2029
        %v2031 = vsel %vm700, %v2013, -inf
        %2032 = vmax.xlane.f32.xlu0 %v2031
        %v2033 = vpop.xlane.xlu0 %2032
        %v2034 = vsel %vm700, %v2014, -inf
        %2035 = vmax.xlane.f32.xlu0 %v2034
        %v2036 = vpop.xlane.xlu0 %2035
        %v2037 = vsel %vm700, %v2015, -inf
        %2038 = vmax.xlane.f32.xlu0 %v2037
        %v2039 = vpop.xlane.xlu0 %2038
        %s2040 = sld [smem:[#allocation7 + $0xb]]
        %v2041 = vstv %s2040
        %v2042 = vadd.f32 %v2018, %v2041
        %v2043 = vadd.f32 %v2021, %v2041
        %v2044 = vadd.f32 %v2024, %v2041
        %v2045 = vadd.f32 %v2027, %v2041
        %v2046 = vadd.f32 %v2030, %v2041
        %v2047 = vadd.f32 %v2033, %v2041
        %v2048 = vadd.f32 %v2036, %v2041
        %v2049 = vadd.f32 %v2039, %v2041
        %s2050 = sld [smem:[#allocation6 + $0x24]]
        %v2051 = vstv %s2050
        %v2052 = vmul.f32 %v2051, %v858
        %v2053 = vmul.f32 %v2051, %v859
        %v2054 = vmul.f32 %v2051, %v860
        %v2055 = vmul.f32 %v2051, %v861
        %v2056 = vmul.f32 %v2051, %v862
        %v2057 = vmul.f32 %v2051, %v863
        %v2058 = vmul.f32 %v2051, %v864
        %v2059 = vmul.f32 %v2051, %v865
        %s2060 = sld [smem:[#allocation6 + $0x25]]
        %v2061 = vstv %s2060
        %v2062 = vmul.f32 %v2061, %v922
        %v2063 = vmul.f32 %v2061, %v923
        %v2064 = vmul.f32 %v2061, %v924
        %v2065 = vmul.f32 %v2061, %v925
        %v2066 = vmul.f32 %v2061, %v926
        %v2067 = vmul.f32 %v2061, %v927
        %v2068 = vmul.f32 %v2061, %v928
        %v2069 = vmul.f32 %v2061, %v929
        %v2070 = vadd.f32 %v2052, %v2062
        %v2071 = vadd.f32 %v2053, %v2063
        %v2072 = vadd.f32 %v2054, %v2064
        %v2073 = vadd.f32 %v2055, %v2065
        %v2074 = vadd.f32 %v2056, %v2066
        %v2075 = vadd.f32 %v2057, %v2067
        %v2076 = vadd.f32 %v2058, %v2068
        %v2077 = vadd.f32 %v2059, %v2069
        %s2078 = sld [smem:[#allocation6 + $0x26]]
        %v2079 = vstv %s2078
        %v2080 = vmul.f32 %v2079, %v986
        %v2081 = vmul.f32 %v2079, %v987
        %v2082 = vmul.f32 %v2079, %v988
        %v2083 = vmul.f32 %v2079, %v989
        %v2084 = vmul.f32 %v2079, %v990
        %v2085 = vmul.f32 %v2079, %v991
        %v2086 = vmul.f32 %v2079, %v992
        %v2087 = vmul.f32 %v2079, %v993
        %v2088 = vadd.f32 %v2070, %v2080
        %v2089 = vadd.f32 %v2071, %v2081
        %v2090 = vadd.f32 %v2072, %v2082
        %v2091 = vadd.f32 %v2073, %v2083
        %v2092 = vadd.f32 %v2074, %v2084
        %v2093 = vadd.f32 %v2075, %v2085
        %v2094 = vadd.f32 %v2076, %v2086
        %v2095 = vadd.f32 %v2077, %v2087
        %v2096 = vadd.f32 %v2088, %v794
        %v2097 = vadd.f32 %v2089, %v795
        %v2098 = vadd.f32 %v2090, %v796
        %v2099 = vadd.f32 %v2091, %v797
        %v2100 = vadd.f32 %v2092, %v798
        %v2101 = vadd.f32 %v2093, %v799
        %v2102 = vadd.f32 %v2094, %v800
        %v2103 = vadd.f32 %v2095, %v801
        %v2104 = vsel %vm700, %v2096, -inf
        %2105 = vmax.xlane.f32.xlu0 %v2104
        %v2106 = vpop.xlane.xlu0 %2105
        %v2107 = vsel %vm700, %v2097, -inf
        %2108 = vmax.xlane.f32.xlu0 %v2107
        %v2109 = vpop.xlane.xlu0 %2108
        %v2110 = vsel %vm700, %v2098, -inf
        %2111 = vmax.xlane.f32.xlu0 %v2110
        %v2112 = vpop.xlane.xlu0 %2111
        %v2113 = vsel %vm700, %v2099, -inf
        %2114 = vmax.xlane.f32.xlu0 %v2113
        %v2115 = vpop.xlane.xlu0 %2114
        %v2116 = vsel %vm700, %v2100, -inf
        %2117 = vmax.xlane.f32.xlu0 %v2116
        %v2118 = vpop.xlane.xlu0 %2117
        %v2119 = vsel %vm700, %v2101, -inf
        %2120 = vmax.xlane.f32.xlu0 %v2119
        %v2121 = vpop.xlane.xlu0 %2120
        %v2122 = vsel %vm700, %v2102, -inf
        %2123 = vmax.xlane.f32.xlu0 %v2122
        %v2124 = vpop.xlane.xlu0 %2123
        %v2125 = vsel %vm700, %v2103, -inf
        %2126 = vmax.xlane.f32.xlu0 %v2125
        %v2127 = vpop.xlane.xlu0 %2126
        %s2128 = sld [smem:[#allocation7 + $0xc]]
        %v2129 = vstv %s2128
        %v2130 = vadd.f32 %v2106, %v2129
        %v2131 = vadd.f32 %v2109, %v2129
        %v2132 = vadd.f32 %v2112, %v2129
        %v2133 = vadd.f32 %v2115, %v2129
        %v2134 = vadd.f32 %v2118, %v2129
        %v2135 = vadd.f32 %v2121, %v2129
        %v2136 = vadd.f32 %v2124, %v2129
        %v2137 = vadd.f32 %v2127, %v2129
        %s2138 = sld [smem:[#allocation6 + $0x27]]
        %v2139 = vstv %s2138
        %v2140 = vmul.f32 %v2139, %v858
        %v2141 = vmul.f32 %v2139, %v859
        %v2142 = vmul.f32 %v2139, %v860
        %v2143 = vmul.f32 %v2139, %v861
        %v2144 = vmul.f32 %v2139, %v862
        %v2145 = vmul.f32 %v2139, %v863
        %v2146 = vmul.f32 %v2139, %v864
        %v2147 = vmul.f32 %v2139, %v865
        %s2148 = sld [smem:[#allocation6 + $0x28]]
        %v2149 = vstv %s2148
        %v2150 = vmul.f32 %v2149, %v922
        %v2151 = vmul.f32 %v2149, %v923
        %v2152 = vmul.f32 %v2149, %v924
        %v2153 = vmul.f32 %v2149, %v925
        %v2154 = vmul.f32 %v2149, %v926
        %v2155 = vmul.f32 %v2149, %v927
        %v2156 = vmul.f32 %v2149, %v928
        %v2157 = vmul.f32 %v2149, %v929
        %v2158 = vadd.f32 %v2140, %v2150
        %v2159 = vadd.f32 %v2141, %v2151
        %v2160 = vadd.f32 %v2142, %v2152
        %v2161 = vadd.f32 %v2143, %v2153
        %v2162 = vadd.f32 %v2144, %v2154
        %v2163 = vadd.f32 %v2145, %v2155
        %v2164 = vadd.f32 %v2146, %v2156
        %v2165 = vadd.f32 %v2147, %v2157
        %s2166 = sld [smem:[#allocation6 + $0x29]]
        %v2167 = vstv %s2166
        %v2168 = vmul.f32 %v2167, %v986
        %v2169 = vmul.f32 %v2167, %v987
        %v2170 = vmul.f32 %v2167, %v988
        %v2171 = vmul.f32 %v2167, %v989
        %v2172 = vmul.f32 %v2167, %v990
        %v2173 = vmul.f32 %v2167, %v991
        %v2174 = vmul.f32 %v2167, %v992
        %v2175 = vmul.f32 %v2167, %v993
        %v2176 = vadd.f32 %v2158, %v2168
        %v2177 = vadd.f32 %v2159, %v2169
        %v2178 = vadd.f32 %v2160, %v2170
        %v2179 = vadd.f32 %v2161, %v2171
        %v2180 = vadd.f32 %v2162, %v2172
        %v2181 = vadd.f32 %v2163, %v2173
        %v2182 = vadd.f32 %v2164, %v2174
        %v2183 = vadd.f32 %v2165, %v2175
        %v2184 = vadd.f32 %v2176, %v794
        %v2185 = vadd.f32 %v2177, %v795
        %v2186 = vadd.f32 %v2178, %v796
        %v2187 = vadd.f32 %v2179, %v797
        %v2188 = vadd.f32 %v2180, %v798
        %v2189 = vadd.f32 %v2181, %v799
        %v2190 = vadd.f32 %v2182, %v800
        %v2191 = vadd.f32 %v2183, %v801
        %v2192 = vsel %vm700, %v2184, -inf
        %2193 = vmax.xlane.f32.xlu0 %v2192
        %v2194 = vpop.xlane.xlu0 %2193
        %v2195 = vsel %vm700, %v2185, -inf
        %2196 = vmax.xlane.f32.xlu0 %v2195
        %v2197 = vpop.xlane.xlu0 %2196
        %v2198 = vsel %vm700, %v2186, -inf
        %2199 = vmax.xlane.f32.xlu0 %v2198
        %v2200 = vpop.xlane.xlu0 %2199
        %v2201 = vsel %vm700, %v2187, -inf
        %2202 = vmax.xlane.f32.xlu0 %v2201
        %v2203 = vpop.xlane.xlu0 %2202
        %v2204 = vsel %vm700, %v2188, -inf
        %2205 = vmax.xlane.f32.xlu0 %v2204
        %v2206 = vpop.xlane.xlu0 %2205
        %v2207 = vsel %vm700, %v2189, -inf
        %2208 = vmax.xlane.f32.xlu0 %v2207
        %v2209 = vpop.xlane.xlu0 %2208
        %v2210 = vsel %vm700, %v2190, -inf
        %2211 = vmax.xlane.f32.xlu0 %v2210
        %v2212 = vpop.xlane.xlu0 %2211
        %v2213 = vsel %vm700, %v2191, -inf
        %2214 = vmax.xlane.f32.xlu0 %v2213
        %v2215 = vpop.xlane.xlu0 %2214
        %s2216 = sld [smem:[#allocation7 + $0xd]]
        %v2217 = vstv %s2216
        %v2218 = vadd.f32 %v2194, %v2217
        %v2219 = vadd.f32 %v2197, %v2217
        %v2220 = vadd.f32 %v2200, %v2217
        %v2221 = vadd.f32 %v2203, %v2217
        %v2222 = vadd.f32 %v2206, %v2217
        %v2223 = vadd.f32 %v2209, %v2217
        %v2224 = vadd.f32 %v2212, %v2217
        %v2225 = vadd.f32 %v2215, %v2217
        %s2226 = sld [smem:[#allocation6 + $0x2a]]
        %v2227 = vstv %s2226
        %v2228 = vmul.f32 %v2227, %v858
        %v2229 = vmul.f32 %v2227, %v859
        %v2230 = vmul.f32 %v2227, %v860
        %v2231 = vmul.f32 %v2227, %v861
        %v2232 = vmul.f32 %v2227, %v862
        %v2233 = vmul.f32 %v2227, %v863
        %v2234 = vmul.f32 %v2227, %v864
        %v2235 = vmul.f32 %v2227, %v865
        %s2236 = sld [smem:[#allocation6 + $0x2b]]
        %v2237 = vstv %s2236
        %v2238 = vmul.f32 %v2237, %v922
        %v2239 = vmul.f32 %v2237, %v923
        %v2240 = vmul.f32 %v2237, %v924
        %v2241 = vmul.f32 %v2237, %v925
        %v2242 = vmul.f32 %v2237, %v926
        %v2243 = vmul.f32 %v2237, %v927
        %v2244 = vmul.f32 %v2237, %v928
        %v2245 = vmul.f32 %v2237, %v929
        %v2246 = vadd.f32 %v2228, %v2238
        %v2247 = vadd.f32 %v2229, %v2239
        %v2248 = vadd.f32 %v2230, %v2240
        %v2249 = vadd.f32 %v2231, %v2241
        %v2250 = vadd.f32 %v2232, %v2242
        %v2251 = vadd.f32 %v2233, %v2243
        %v2252 = vadd.f32 %v2234, %v2244
        %v2253 = vadd.f32 %v2235, %v2245
        %s2254 = sld [smem:[#allocation6 + $0x2c]]
        %v2255 = vstv %s2254
        %v2256 = vmul.f32 %v2255, %v986
        %v2257 = vmul.f32 %v2255, %v987
        %v2258 = vmul.f32 %v2255, %v988
        %v2259 = vmul.f32 %v2255, %v989
        %v2260 = vmul.f32 %v2255, %v990
        %v2261 = vmul.f32 %v2255, %v991
        %v2262 = vmul.f32 %v2255, %v992
        %v2263 = vmul.f32 %v2255, %v993
        %v2264 = vadd.f32 %v2246, %v2256
        %v2265 = vadd.f32 %v2247, %v2257
        %v2266 = vadd.f32 %v2248, %v2258
        %v2267 = vadd.f32 %v2249, %v2259
        %v2268 = vadd.f32 %v2250, %v2260
        %v2269 = vadd.f32 %v2251, %v2261
        %v2270 = vadd.f32 %v2252, %v2262
        %v2271 = vadd.f32 %v2253, %v2263
        %v2272 = vadd.f32 %v2264, %v794
        %v2273 = vadd.f32 %v2265, %v795
        %v2274 = vadd.f32 %v2266, %v796
        %v2275 = vadd.f32 %v2267, %v797
        %v2276 = vadd.f32 %v2268, %v798
        %v2277 = vadd.f32 %v2269, %v799
        %v2278 = vadd.f32 %v2270, %v800
        %v2279 = vadd.f32 %v2271, %v801
        %v2280 = vsel %vm700, %v2272, -inf
        %2281 = vmax.xlane.f32.xlu0 %v2280
        %v2282 = vpop.xlane.xlu0 %2281
        %v2283 = vsel %vm700, %v2273, -inf
        %2284 = vmax.xlane.f32.xlu0 %v2283
        %v2285 = vpop.xlane.xlu0 %2284
        %v2286 = vsel %vm700, %v2274, -inf
        %2287 = vmax.xlane.f32.xlu0 %v2286
        %v2288 = vpop.xlane.xlu0 %2287
        %v2289 = vsel %vm700, %v2275, -inf
        %2290 = vmax.xlane.f32.xlu0 %v2289
        %v2291 = vpop.xlane.xlu0 %2290
        %v2292 = vsel %vm700, %v2276, -inf
        %2293 = vmax.xlane.f32.xlu0 %v2292
        %v2294 = vpop.xlane.xlu0 %2293
        %v2295 = vsel %vm700, %v2277, -inf
        %2296 = vmax.xlane.f32.xlu0 %v2295
        %v2297 = vpop.xlane.xlu0 %2296
        %v2298 = vsel %vm700, %v2278, -inf
        %2299 = vmax.xlane.f32.xlu0 %v2298
        %v2300 = vpop.xlane.xlu0 %2299
        %v2301 = vsel %vm700, %v2279, -inf
        %2302 = vmax.xlane.f32.xlu0 %v2301
        %v2303 = vpop.xlane.xlu0 %2302
        %s2304 = sld [smem:[#allocation7 + $0xe]]
        %v2305 = vstv %s2304
        %v2306 = vadd.f32 %v2282, %v2305
        %v2307 = vadd.f32 %v2285, %v2305
        %v2308 = vadd.f32 %v2288, %v2305
        %v2309 = vadd.f32 %v2291, %v2305
        %v2310 = vadd.f32 %v2294, %v2305
        %v2311 = vadd.f32 %v2297, %v2305
        %v2312 = vadd.f32 %v2300, %v2305
        %v2313 = vadd.f32 %v2303, %v2305
        %s2314 = sld [smem:[#allocation6 + $0x2d]]
        %v2315 = vstv %s2314
        %v2316 = vmul.f32 %v2315, %v858
        %v2317 = vmul.f32 %v2315, %v859
        %v2318 = vmul.f32 %v2315, %v860
        %v2319 = vmul.f32 %v2315, %v861
        %v2320 = vmul.f32 %v2315, %v862
        %v2321 = vmul.f32 %v2315, %v863
        %v2322 = vmul.f32 %v2315, %v864
        %v2323 = vmul.f32 %v2315, %v865
        %s2324 = sld [smem:[#allocation6 + $0x2e]]
        %v2325 = vstv %s2324
        %v2326 = vmul.f32 %v2325, %v922
        %v2327 = vmul.f32 %v2325, %v923
        %v2328 = vmul.f32 %v2325, %v924
        %v2329 = vmul.f32 %v2325, %v925
        %v2330 = vmul.f32 %v2325, %v926
        %v2331 = vmul.f32 %v2325, %v927
        %v2332 = vmul.f32 %v2325, %v928
        %v2333 = vmul.f32 %v2325, %v929
        %v2334 = vadd.f32 %v2316, %v2326
        %v2335 = vadd.f32 %v2317, %v2327
        %v2336 = vadd.f32 %v2318, %v2328
        %v2337 = vadd.f32 %v2319, %v2329
        %v2338 = vadd.f32 %v2320, %v2330
        %v2339 = vadd.f32 %v2321, %v2331
        %v2340 = vadd.f32 %v2322, %v2332
        %v2341 = vadd.f32 %v2323, %v2333
        %s2342 = sld [smem:[#allocation6 + $0x2f]]
        %v2343 = vstv %s2342
        %v2344 = vmul.f32 %v2343, %v986
        %v2345 = vmul.f32 %v2343, %v987
        %v2346 = vmul.f32 %v2343, %v988
        %v2347 = vmul.f32 %v2343, %v989
        %v2348 = vmul.f32 %v2343, %v990
        %v2349 = vmul.f32 %v2343, %v991
        %v2350 = vmul.f32 %v2343, %v992
        %v2351 = vmul.f32 %v2343, %v993
        %v2352 = vadd.f32 %v2334, %v2344
        %v2353 = vadd.f32 %v2335, %v2345
        %v2354 = vadd.f32 %v2336, %v2346
        %v2355 = vadd.f32 %v2337, %v2347
        %v2356 = vadd.f32 %v2338, %v2348
        %v2357 = vadd.f32 %v2339, %v2349
        %v2358 = vadd.f32 %v2340, %v2350
        %v2359 = vadd.f32 %v2341, %v2351
        %v2360 = vadd.f32 %v2352, %v794
        %v2361 = vadd.f32 %v2353, %v795
        %v2362 = vadd.f32 %v2354, %v796
        %v2363 = vadd.f32 %v2355, %v797
        %v2364 = vadd.f32 %v2356, %v798
        %v2365 = vadd.f32 %v2357, %v799
        %v2366 = vadd.f32 %v2358, %v800
        %v2367 = vadd.f32 %v2359, %v801
        %v2368 = vsel %vm700, %v2360, -inf
        %2369 = vmax.xlane.f32.xlu0 %v2368
        %v2370 = vpop.xlane.xlu0 %2369
        %v2371 = vsel %vm700, %v2361, -inf
        %2372 = vmax.xlane.f32.xlu0 %v2371
        %v2373 = vpop.xlane.xlu0 %2372
        %v2374 = vsel %vm700, %v2362, -inf
        %2375 = vmax.xlane.f32.xlu0 %v2374
        %v2376 = vpop.xlane.xlu0 %2375
        %v2377 = vsel %vm700, %v2363, -inf
        %2378 = vmax.xlane.f32.xlu0 %v2377
        %v2379 = vpop.xlane.xlu0 %2378
        %v2380 = vsel %vm700, %v2364, -inf
        %2381 = vmax.xlane.f32.xlu0 %v2380
        %v2382 = vpop.xlane.xlu0 %2381
        %v2383 = vsel %vm700, %v2365, -inf
        %2384 = vmax.xlane.f32.xlu0 %v2383
        %v2385 = vpop.xlane.xlu0 %2384
        %v2386 = vsel %vm700, %v2366, -inf
        %2387 = vmax.xlane.f32.xlu0 %v2386
        %v2388 = vpop.xlane.xlu0 %2387
        %v2389 = vsel %vm700, %v2367, -inf
        %2390 = vmax.xlane.f32.xlu0 %v2389
        %v2391 = vpop.xlane.xlu0 %2390
        %s2392 = sld [smem:[#allocation7 + $0xf]]
        %v2393 = vstv %s2392
        %v2394 = vadd.f32 %v2370, %v2393
        %v2395 = vadd.f32 %v2373, %v2393
        %v2396 = vadd.f32 %v2376, %v2393
        %v2397 = vadd.f32 %v2379, %v2393
        %v2398 = vadd.f32 %v2382, %v2393
        %v2399 = vadd.f32 %v2385, %v2393
        %v2400 = vadd.f32 %v2388, %v2393
        %v2401 = vadd.f32 %v2391, %v2393
        %s2402 = sld [smem:[#allocation6 + $0x30]]
        %v2403 = vstv %s2402
        %v2404 = vmul.f32 %v2403, %v858
        %v2405 = vmul.f32 %v2403, %v859
        %v2406 = vmul.f32 %v2403, %v860
        %v2407 = vmul.f32 %v2403, %v861
        %v2408 = vmul.f32 %v2403, %v862
        %v2409 = vmul.f32 %v2403, %v863
        %v2410 = vmul.f32 %v2403, %v864
        %v2411 = vmul.f32 %v2403, %v865
        %s2412 = sld [smem:[#allocation6 + $0x31]]
        %v2413 = vstv %s2412
        %v2414 = vmul.f32 %v2413, %v922
        %v2415 = vmul.f32 %v2413, %v923
        %v2416 = vmul.f32 %v2413, %v924
        %v2417 = vmul.f32 %v2413, %v925
        %v2418 = vmul.f32 %v2413, %v926
        %v2419 = vmul.f32 %v2413, %v927
        %v2420 = vmul.f32 %v2413, %v928
        %v2421 = vmul.f32 %v2413, %v929
        %v2422 = vadd.f32 %v2404, %v2414
        %v2423 = vadd.f32 %v2405, %v2415
        %v2424 = vadd.f32 %v2406, %v2416
        %v2425 = vadd.f32 %v2407, %v2417
        %v2426 = vadd.f32 %v2408, %v2418
        %v2427 = vadd.f32 %v2409, %v2419
        %v2428 = vadd.f32 %v2410, %v2420
        %v2429 = vadd.f32 %v2411, %v2421
        %s2430 = sld [smem:[#allocation6 + $0x32]]
        %v2431 = vstv %s2430
        %v2432 = vmul.f32 %v2431, %v986
        %v2433 = vmul.f32 %v2431, %v987
        %v2434 = vmul.f32 %v2431, %v988
        %v2435 = vmul.f32 %v2431, %v989
        %v2436 = vmul.f32 %v2431, %v990
        %v2437 = vmul.f32 %v2431, %v991
        %v2438 = vmul.f32 %v2431, %v992
        %v2439 = vmul.f32 %v2431, %v993
        %v2440 = vadd.f32 %v2422, %v2432
        %v2441 = vadd.f32 %v2423, %v2433
        %v2442 = vadd.f32 %v2424, %v2434
        %v2443 = vadd.f32 %v2425, %v2435
        %v2444 = vadd.f32 %v2426, %v2436
        %v2445 = vadd.f32 %v2427, %v2437
        %v2446 = vadd.f32 %v2428, %v2438
        %v2447 = vadd.f32 %v2429, %v2439
        %v2448 = vadd.f32 %v2440, %v794
        %v2449 = vadd.f32 %v2441, %v795
        %v2450 = vadd.f32 %v2442, %v796
        %v2451 = vadd.f32 %v2443, %v797
        %v2452 = vadd.f32 %v2444, %v798
        %v2453 = vadd.f32 %v2445, %v799
        %v2454 = vadd.f32 %v2446, %v800
        %v2455 = vadd.f32 %v2447, %v801
        %v2456 = vsel %vm700, %v2448, -inf
        %2457 = vmax.xlane.f32.xlu0 %v2456
        %v2458 = vpop.xlane.xlu0 %2457
        %v2459 = vsel %vm700, %v2449, -inf
        %2460 = vmax.xlane.f32.xlu0 %v2459
        %v2461 = vpop.xlane.xlu0 %2460
        %v2462 = vsel %vm700, %v2450, -inf
        %2463 = vmax.xlane.f32.xlu0 %v2462
        %v2464 = vpop.xlane.xlu0 %2463
        %v2465 = vsel %vm700, %v2451, -inf
        %2466 = vmax.xlane.f32.xlu0 %v2465
        %v2467 = vpop.xlane.xlu0 %2466
        %v2468 = vsel %vm700, %v2452, -inf
        %2469 = vmax.xlane.f32.xlu0 %v2468
        %v2470 = vpop.xlane.xlu0 %2469
        %v2471 = vsel %vm700, %v2453, -inf
        %2472 = vmax.xlane.f32.xlu0 %v2471
        %v2473 = vpop.xlane.xlu0 %2472
        %v2474 = vsel %vm700, %v2454, -inf
        %2475 = vmax.xlane.f32.xlu0 %v2474
        %v2476 = vpop.xlane.xlu0 %2475
        %v2477 = vsel %vm700, %v2455, -inf
        %2478 = vmax.xlane.f32.xlu0 %v2477
        %v2479 = vpop.xlane.xlu0 %2478
        %s2480 = sld [smem:[#allocation7 + $0x10]]
        %v2481 = vstv %s2480
        %v2482 = vadd.f32 %v2458, %v2481
        %v2483 = vadd.f32 %v2461, %v2481
        %v2484 = vadd.f32 %v2464, %v2481
        %v2485 = vadd.f32 %v2467, %v2481
        %v2486 = vadd.f32 %v2470, %v2481
        %v2487 = vadd.f32 %v2473, %v2481
        %v2488 = vadd.f32 %v2476, %v2481
        %v2489 = vadd.f32 %v2479, %v2481
        %s2490 = sld [smem:[#allocation6 + $0x33]]
        %v2491 = vstv %s2490
        %v2492 = vmul.f32 %v2491, %v858
        %v2493 = vmul.f32 %v2491, %v859
        %v2494 = vmul.f32 %v2491, %v860
        %v2495 = vmul.f32 %v2491, %v861
        %v2496 = vmul.f32 %v2491, %v862
        %v2497 = vmul.f32 %v2491, %v863
        %v2498 = vmul.f32 %v2491, %v864
        %v2499 = vmul.f32 %v2491, %v865
        %s2500 = sld [smem:[#allocation6 + $0x34]]
        %v2501 = vstv %s2500
        %v2502 = vmul.f32 %v2501, %v922
        %v2503 = vmul.f32 %v2501, %v923
        %v2504 = vmul.f32 %v2501, %v924
        %v2505 = vmul.f32 %v2501, %v925
        %v2506 = vmul.f32 %v2501, %v926
        %v2507 = vmul.f32 %v2501, %v927
        %v2508 = vmul.f32 %v2501, %v928
        %v2509 = vmul.f32 %v2501, %v929
        %v2510 = vadd.f32 %v2492, %v2502
        %v2511 = vadd.f32 %v2493, %v2503
        %v2512 = vadd.f32 %v2494, %v2504
        %v2513 = vadd.f32 %v2495, %v2505
        %v2514 = vadd.f32 %v2496, %v2506
        %v2515 = vadd.f32 %v2497, %v2507
        %v2516 = vadd.f32 %v2498, %v2508
        %v2517 = vadd.f32 %v2499, %v2509
        %s2518 = sld [smem:[#allocation6 + $0x35]]
        %v2519 = vstv %s2518
        %v2520 = vmul.f32 %v2519, %v986
        %v2521 = vmul.f32 %v2519, %v987
        %v2522 = vmul.f32 %v2519, %v988
        %v2523 = vmul.f32 %v2519, %v989
        %v2524 = vmul.f32 %v2519, %v990
        %v2525 = vmul.f32 %v2519, %v991
        %v2526 = vmul.f32 %v2519, %v992
        %v2527 = vmul.f32 %v2519, %v993
        %v2528 = vadd.f32 %v2510, %v2520
        %v2529 = vadd.f32 %v2511, %v2521
        %v2530 = vadd.f32 %v2512, %v2522
        %v2531 = vadd.f32 %v2513, %v2523
        %v2532 = vadd.f32 %v2514, %v2524
        %v2533 = vadd.f32 %v2515, %v2525
        %v2534 = vadd.f32 %v2516, %v2526
        %v2535 = vadd.f32 %v2517, %v2527
        %v2536 = vadd.f32 %v2528, %v794
        %v2537 = vadd.f32 %v2529, %v795
        %v2538 = vadd.f32 %v2530, %v796
        %v2539 = vadd.f32 %v2531, %v797
        %v2540 = vadd.f32 %v2532, %v798
        %v2541 = vadd.f32 %v2533, %v799
        %v2542 = vadd.f32 %v2534, %v800
        %v2543 = vadd.f32 %v2535, %v801
        %v2544 = vsel %vm700, %v2536, -inf
        %2545 = vmax.xlane.f32.xlu0 %v2544
        %v2546 = vpop.xlane.xlu0 %2545
        %v2547 = vsel %vm700, %v2537, -inf
        %2548 = vmax.xlane.f32.xlu0 %v2547
        %v2549 = vpop.xlane.xlu0 %2548
        %v2550 = vsel %vm700, %v2538, -inf
        %2551 = vmax.xlane.f32.xlu0 %v2550
        %v2552 = vpop.xlane.xlu0 %2551
        %v2553 = vsel %vm700, %v2539, -inf
        %2554 = vmax.xlane.f32.xlu0 %v2553
        %v2555 = vpop.xlane.xlu0 %2554
        %v2556 = vsel %vm700, %v2540, -inf
        %2557 = vmax.xlane.f32.xlu0 %v2556
        %v2558 = vpop.xlane.xlu0 %2557
        %v2559 = vsel %vm700, %v2541, -inf
        %2560 = vmax.xlane.f32.xlu0 %v2559
        %v2561 = vpop.xlane.xlu0 %2560
        %v2562 = vsel %vm700, %v2542, -inf
        %2563 = vmax.xlane.f32.xlu0 %v2562
        %v2564 = vpop.xlane.xlu0 %2563
        %v2565 = vsel %vm700, %v2543, -inf
        %2566 = vmax.xlane.f32.xlu0 %v2565
        %v2567 = vpop.xlane.xlu0 %2566
        %s2568 = sld [smem:[#allocation7 + $0x11]]
        %v2569 = vstv %s2568
        %v2570 = vadd.f32 %v2546, %v2569
        %v2571 = vadd.f32 %v2549, %v2569
        %v2572 = vadd.f32 %v2552, %v2569
        %v2573 = vadd.f32 %v2555, %v2569
        %v2574 = vadd.f32 %v2558, %v2569
        %v2575 = vadd.f32 %v2561, %v2569
        %v2576 = vadd.f32 %v2564, %v2569
        %v2577 = vadd.f32 %v2567, %v2569
        %s2578 = sld [smem:[#allocation6 + $0x36]]
        %v2579 = vstv %s2578
        %v2580 = vmul.f32 %v2579, %v858
        %v2581 = vmul.f32 %v2579, %v859
        %v2582 = vmul.f32 %v2579, %v860
        %v2583 = vmul.f32 %v2579, %v861
        %v2584 = vmul.f32 %v2579, %v862
        %v2585 = vmul.f32 %v2579, %v863
        %v2586 = vmul.f32 %v2579, %v864
        %v2587 = vmul.f32 %v2579, %v865
        %s2588 = sld [smem:[#allocation6 + $0x37]]
        %v2589 = vstv %s2588
        %v2590 = vmul.f32 %v2589, %v922
        %v2591 = vmul.f32 %v2589, %v923
        %v2592 = vmul.f32 %v2589, %v924
        %v2593 = vmul.f32 %v2589, %v925
        %v2594 = vmul.f32 %v2589, %v926
        %v2595 = vmul.f32 %v2589, %v927
        %v2596 = vmul.f32 %v2589, %v928
        %v2597 = vmul.f32 %v2589, %v929
        %v2598 = vadd.f32 %v2580, %v2590
        %v2599 = vadd.f32 %v2581, %v2591
        %v2600 = vadd.f32 %v2582, %v2592
        %v2601 = vadd.f32 %v2583, %v2593
        %v2602 = vadd.f32 %v2584, %v2594
        %v2603 = vadd.f32 %v2585, %v2595
        %v2604 = vadd.f32 %v2586, %v2596
        %v2605 = vadd.f32 %v2587, %v2597
        %s2606 = sld [smem:[#allocation6 + $0x38]]
        %v2607 = vstv %s2606
        %v2608 = vmul.f32 %v2607, %v986
        %v2609 = vmul.f32 %v2607, %v987
        %v2610 = vmul.f32 %v2607, %v988
        %v2611 = vmul.f32 %v2607, %v989
        %v2612 = vmul.f32 %v2607, %v990
        %v2613 = vmul.f32 %v2607, %v991
        %v2614 = vmul.f32 %v2607, %v992
        %v2615 = vmul.f32 %v2607, %v993
        %v2616 = vadd.f32 %v2598, %v2608
        %v2617 = vadd.f32 %v2599, %v2609
        %v2618 = vadd.f32 %v2600, %v2610
        %v2619 = vadd.f32 %v2601, %v2611
        %v2620 = vadd.f32 %v2602, %v2612
        %v2621 = vadd.f32 %v2603, %v2613
        %v2622 = vadd.f32 %v2604, %v2614
        %v2623 = vadd.f32 %v2605, %v2615
        %v2624 = vadd.f32 %v2616, %v794
        %v2625 = vadd.f32 %v2617, %v795
        %v2626 = vadd.f32 %v2618, %v796
        %v2627 = vadd.f32 %v2619, %v797
        %v2628 = vadd.f32 %v2620, %v798
        %v2629 = vadd.f32 %v2621, %v799
        %v2630 = vadd.f32 %v2622, %v800
        %v2631 = vadd.f32 %v2623, %v801
        %v2632 = vsel %vm700, %v2624, -inf
        %2633 = vmax.xlane.f32.xlu0 %v2632
        %v2634 = vpop.xlane.xlu0 %2633
        %v2635 = vsel %vm700, %v2625, -inf
        %2636 = vmax.xlane.f32.xlu0 %v2635
        %v2637 = vpop.xlane.xlu0 %2636
        %v2638 = vsel %vm700, %v2626, -inf
        %2639 = vmax.xlane.f32.xlu0 %v2638
        %v2640 = vpop.xlane.xlu0 %2639
        %v2641 = vsel %vm700, %v2627, -inf
        %2642 = vmax.xlane.f32.xlu0 %v2641
        %v2643 = vpop.xlane.xlu0 %2642
        %v2644 = vsel %vm700, %v2628, -inf
        %2645 = vmax.xlane.f32.xlu0 %v2644
        %v2646 = vpop.xlane.xlu0 %2645
        %v2647 = vsel %vm700, %v2629, -inf
        %2648 = vmax.xlane.f32.xlu0 %v2647
        %v2649 = vpop.xlane.xlu0 %2648
        %v2650 = vsel %vm700, %v2630, -inf
        %2651 = vmax.xlane.f32.xlu0 %v2650
        %v2652 = vpop.xlane.xlu0 %2651
        %v2653 = vsel %vm700, %v2631, -inf
        %2654 = vmax.xlane.f32.xlu0 %v2653
        %v2655 = vpop.xlane.xlu0 %2654
        %s2656 = sld [smem:[#allocation7 + $0x12]]
        %v2657 = vstv %s2656
        %v2658 = vadd.f32 %v2634, %v2657
        %v2659 = vadd.f32 %v2637, %v2657
        %v2660 = vadd.f32 %v2640, %v2657
        %v2661 = vadd.f32 %v2643, %v2657
        %v2662 = vadd.f32 %v2646, %v2657
        %v2663 = vadd.f32 %v2649, %v2657
        %v2664 = vadd.f32 %v2652, %v2657
        %v2665 = vadd.f32 %v2655, %v2657
        %s2666 = sld [smem:[#allocation6 + $0x39]]
        %v2667 = vstv %s2666
        %v2668 = vmul.f32 %v2667, %v858
        %v2669 = vmul.f32 %v2667, %v859
        %v2670 = vmul.f32 %v2667, %v860
        %v2671 = vmul.f32 %v2667, %v861
        %v2672 = vmul.f32 %v2667, %v862
        %v2673 = vmul.f32 %v2667, %v863
        %v2674 = vmul.f32 %v2667, %v864
        %v2675 = vmul.f32 %v2667, %v865
        %s2676 = sld [smem:[#allocation6 + $0x3a]]
        %v2677 = vstv %s2676
        %v2678 = vmul.f32 %v2677, %v922
        %v2679 = vmul.f32 %v2677, %v923
        %v2680 = vmul.f32 %v2677, %v924
        %v2681 = vmul.f32 %v2677, %v925
        %v2682 = vmul.f32 %v2677, %v926
        %v2683 = vmul.f32 %v2677, %v927
        %v2684 = vmul.f32 %v2677, %v928
        %v2685 = vmul.f32 %v2677, %v929
        %v2686 = vadd.f32 %v2668, %v2678
        %v2687 = vadd.f32 %v2669, %v2679
        %v2688 = vadd.f32 %v2670, %v2680
        %v2689 = vadd.f32 %v2671, %v2681
        %v2690 = vadd.f32 %v2672, %v2682
        %v2691 = vadd.f32 %v2673, %v2683
        %v2692 = vadd.f32 %v2674, %v2684
        %v2693 = vadd.f32 %v2675, %v2685
        %s2694 = sld [smem:[#allocation6 + $0x3b]]
        %v2695 = vstv %s2694
        %v2696 = vmul.f32 %v2695, %v986
        %v2697 = vmul.f32 %v2695, %v987
        %v2698 = vmul.f32 %v2695, %v988
        %v2699 = vmul.f32 %v2695, %v989
        %v2700 = vmul.f32 %v2695, %v990
        %v2701 = vmul.f32 %v2695, %v991
        %v2702 = vmul.f32 %v2695, %v992
        %v2703 = vmul.f32 %v2695, %v993
        %v2704 = vadd.f32 %v2686, %v2696
        %v2705 = vadd.f32 %v2687, %v2697
        %v2706 = vadd.f32 %v2688, %v2698
        %v2707 = vadd.f32 %v2689, %v2699
        %v2708 = vadd.f32 %v2690, %v2700
        %v2709 = vadd.f32 %v2691, %v2701
        %v2710 = vadd.f32 %v2692, %v2702
        %v2711 = vadd.f32 %v2693, %v2703
        %v2712 = vadd.f32 %v2704, %v794
        %v2713 = vadd.f32 %v2705, %v795
        %v2714 = vadd.f32 %v2706, %v796
        %v2715 = vadd.f32 %v2707, %v797
        %v2716 = vadd.f32 %v2708, %v798
        %v2717 = vadd.f32 %v2709, %v799
        %v2718 = vadd.f32 %v2710, %v800
        %v2719 = vadd.f32 %v2711, %v801
        %v2720 = vsel %vm700, %v2712, -inf
        %2721 = vmax.xlane.f32.xlu0 %v2720
        %v2722 = vpop.xlane.xlu0 %2721
        %v2723 = vsel %vm700, %v2713, -inf
        %2724 = vmax.xlane.f32.xlu0 %v2723
        %v2725 = vpop.xlane.xlu0 %2724
        %v2726 = vsel %vm700, %v2714, -inf
        %2727 = vmax.xlane.f32.xlu0 %v2726
        %v2728 = vpop.xlane.xlu0 %2727
        %v2729 = vsel %vm700, %v2715, -inf
        %2730 = vmax.xlane.f32.xlu0 %v2729
        %v2731 = vpop.xlane.xlu0 %2730
        %v2732 = vsel %vm700, %v2716, -inf
        %2733 = vmax.xlane.f32.xlu0 %v2732
        %v2734 = vpop.xlane.xlu0 %2733
        %v2735 = vsel %vm700, %v2717, -inf
        %2736 = vmax.xlane.f32.xlu0 %v2735
        %v2737 = vpop.xlane.xlu0 %2736
        %v2738 = vsel %vm700, %v2718, -inf
        %2739 = vmax.xlane.f32.xlu0 %v2738
        %v2740 = vpop.xlane.xlu0 %2739
        %v2741 = vsel %vm700, %v2719, -inf
        %2742 = vmax.xlane.f32.xlu0 %v2741
        %v2743 = vpop.xlane.xlu0 %2742
        %s2744 = sld [smem:[#allocation7 + $0x13]]
        %v2745 = vstv %s2744
        %v2746 = vadd.f32 %v2722, %v2745
        %v2747 = vadd.f32 %v2725, %v2745
        %v2748 = vadd.f32 %v2728, %v2745
        %v2749 = vadd.f32 %v2731, %v2745
        %v2750 = vadd.f32 %v2734, %v2745
        %v2751 = vadd.f32 %v2737, %v2745
        %v2752 = vadd.f32 %v2740, %v2745
        %v2753 = vadd.f32 %v2743, %v2745
        %s2754 = sld [smem:[#allocation6 + $0x3c]]
        %v2755 = vstv %s2754
        %v2756 = vmul.f32 %v2755, %v858
        %v2757 = vmul.f32 %v2755, %v859
        %v2758 = vmul.f32 %v2755, %v860
        %v2759 = vmul.f32 %v2755, %v861
        %v2760 = vmul.f32 %v2755, %v862
        %v2761 = vmul.f32 %v2755, %v863
        %v2762 = vmul.f32 %v2755, %v864
        %v2763 = vmul.f32 %v2755, %v865
        %s2764 = sld [smem:[#allocation6 + $0x3d]]
        %v2765 = vstv %s2764
        %v2766 = vmul.f32 %v2765, %v922
        %v2767 = vmul.f32 %v2765, %v923
        %v2768 = vmul.f32 %v2765, %v924
        %v2769 = vmul.f32 %v2765, %v925
        %v2770 = vmul.f32 %v2765, %v926
        %v2771 = vmul.f32 %v2765, %v927
        %v2772 = vmul.f32 %v2765, %v928
        %v2773 = vmul.f32 %v2765, %v929
        %v2774 = vadd.f32 %v2756, %v2766
        %v2775 = vadd.f32 %v2757, %v2767
        %v2776 = vadd.f32 %v2758, %v2768
        %v2777 = vadd.f32 %v2759, %v2769
        %v2778 = vadd.f32 %v2760, %v2770
        %v2779 = vadd.f32 %v2761, %v2771
        %v2780 = vadd.f32 %v2762, %v2772
        %v2781 = vadd.f32 %v2763, %v2773
        %s2782 = sld [smem:[#allocation6 + $0x3e]]
        %v2783 = vstv %s2782
        %v2784 = vmul.f32 %v2783, %v986
        %v2785 = vmul.f32 %v2783, %v987
        %v2786 = vmul.f32 %v2783, %v988
        %v2787 = vmul.f32 %v2783, %v989
        %v2788 = vmul.f32 %v2783, %v990
        %v2789 = vmul.f32 %v2783, %v991
        %v2790 = vmul.f32 %v2783, %v992
        %v2791 = vmul.f32 %v2783, %v993
        %v2792 = vadd.f32 %v2774, %v2784
        %v2793 = vadd.f32 %v2775, %v2785
        %v2794 = vadd.f32 %v2776, %v2786
        %v2795 = vadd.f32 %v2777, %v2787
        %v2796 = vadd.f32 %v2778, %v2788
        %v2797 = vadd.f32 %v2779, %v2789
        %v2798 = vadd.f32 %v2780, %v2790
        %v2799 = vadd.f32 %v2781, %v2791
        %v2800 = vadd.f32 %v2792, %v794
        %v2801 = vadd.f32 %v2793, %v795
        %v2802 = vadd.f32 %v2794, %v796
        %v2803 = vadd.f32 %v2795, %v797
        %v2804 = vadd.f32 %v2796, %v798
        %v2805 = vadd.f32 %v2797, %v799
        %v2806 = vadd.f32 %v2798, %v800
        %v2807 = vadd.f32 %v2799, %v801
        %v2808 = vsel %vm700, %v2800, -inf
        %2809 = vmax.xlane.f32.xlu0 %v2808
        %v2810 = vpop.xlane.xlu0 %2809
        %v2811 = vsel %vm700, %v2801, -inf
        %2812 = vmax.xlane.f32.xlu0 %v2811
        %v2813 = vpop.xlane.xlu0 %2812
        %v2814 = vsel %vm700, %v2802, -inf
        %2815 = vmax.xlane.f32.xlu0 %v2814
        %v2816 = vpop.xlane.xlu0 %2815
        %v2817 = vsel %vm700, %v2803, -inf
        %2818 = vmax.xlane.f32.xlu0 %v2817
        %v2819 = vpop.xlane.xlu0 %2818
        %v2820 = vsel %vm700, %v2804, -inf
        %2821 = vmax.xlane.f32.xlu0 %v2820
        %v2822 = vpop.xlane.xlu0 %2821
        %v2823 = vsel %vm700, %v2805, -inf
        %2824 = vmax.xlane.f32.xlu0 %v2823
        %v2825 = vpop.xlane.xlu0 %2824
        %v2826 = vsel %vm700, %v2806, -inf
        %2827 = vmax.xlane.f32.xlu0 %v2826
        %v2828 = vpop.xlane.xlu0 %2827
        %v2829 = vsel %vm700, %v2807, -inf
        %2830 = vmax.xlane.f32.xlu0 %v2829
        %v2831 = vpop.xlane.xlu0 %2830
        %s2832 = sld [smem:[#allocation7 + $0x14]]
        %v2833 = vstv %s2832
        %v2834 = vadd.f32 %v2810, %v2833
        %v2835 = vadd.f32 %v2813, %v2833
        %v2836 = vadd.f32 %v2816, %v2833
        %v2837 = vadd.f32 %v2819, %v2833
        %v2838 = vadd.f32 %v2822, %v2833
        %v2839 = vadd.f32 %v2825, %v2833
        %v2840 = vadd.f32 %v2828, %v2833
        %v2841 = vadd.f32 %v2831, %v2833
        %s2842 = sld [smem:[#allocation6 + $0x3f]]
        %v2843 = vstv %s2842
        %v2844 = vmul.f32 %v2843, %v858
        %v2845 = vmul.f32 %v2843, %v859
        %v2846 = vmul.f32 %v2843, %v860
        %v2847 = vmul.f32 %v2843, %v861
        %v2848 = vmul.f32 %v2843, %v862
        %v2849 = vmul.f32 %v2843, %v863
        %v2850 = vmul.f32 %v2843, %v864
        %v2851 = vmul.f32 %v2843, %v865
        %s2852 = sld [smem:[#allocation6 + $0x40]]
        %v2853 = vstv %s2852
        %v2854 = vmul.f32 %v2853, %v922
        %v2855 = vmul.f32 %v2853, %v923
        %v2856 = vmul.f32 %v2853, %v924
        %v2857 = vmul.f32 %v2853, %v925
        %v2858 = vmul.f32 %v2853, %v926
        %v2859 = vmul.f32 %v2853, %v927
        %v2860 = vmul.f32 %v2853, %v928
        %v2861 = vmul.f32 %v2853, %v929
        %v2862 = vadd.f32 %v2844, %v2854
        %v2863 = vadd.f32 %v2845, %v2855
        %v2864 = vadd.f32 %v2846, %v2856
        %v2865 = vadd.f32 %v2847, %v2857
        %v2866 = vadd.f32 %v2848, %v2858
        %v2867 = vadd.f32 %v2849, %v2859
        %v2868 = vadd.f32 %v2850, %v2860
        %v2869 = vadd.f32 %v2851, %v2861
        %s2870 = sld [smem:[#allocation6 + $0x41]]
        %v2871 = vstv %s2870
        %v2872 = vmul.f32 %v2871, %v986
        %v2873 = vmul.f32 %v2871, %v987
        %v2874 = vmul.f32 %v2871, %v988
        %v2875 = vmul.f32 %v2871, %v989
        %v2876 = vmul.f32 %v2871, %v990
        %v2877 = vmul.f32 %v2871, %v991
        %v2878 = vmul.f32 %v2871, %v992
        %v2879 = vmul.f32 %v2871, %v993
        %v2880 = vadd.f32 %v2862, %v2872
        %v2881 = vadd.f32 %v2863, %v2873
        %v2882 = vadd.f32 %v2864, %v2874
        %v2883 = vadd.f32 %v2865, %v2875
        %v2884 = vadd.f32 %v2866, %v2876
        %v2885 = vadd.f32 %v2867, %v2877
        %v2886 = vadd.f32 %v2868, %v2878
        %v2887 = vadd.f32 %v2869, %v2879
        %v2888 = vadd.f32 %v2880, %v794
        %v2889 = vadd.f32 %v2881, %v795
        %v2890 = vadd.f32 %v2882, %v796
        %v2891 = vadd.f32 %v2883, %v797
        %v2892 = vadd.f32 %v2884, %v798
        %v2893 = vadd.f32 %v2885, %v799
        %v2894 = vadd.f32 %v2886, %v800
        %v2895 = vadd.f32 %v2887, %v801
        %v2896 = vsel %vm700, %v2888, -inf
        %2897 = vmax.xlane.f32.xlu0 %v2896
        %v2898 = vpop.xlane.xlu0 %2897
        %v2899 = vsel %vm700, %v2889, -inf
        %2900 = vmax.xlane.f32.xlu0 %v2899
        %v2901 = vpop.xlane.xlu0 %2900
        %v2902 = vsel %vm700, %v2890, -inf
        %2903 = vmax.xlane.f32.xlu0 %v2902
        %v2904 = vpop.xlane.xlu0 %2903
        %v2905 = vsel %vm700, %v2891, -inf
        %2906 = vmax.xlane.f32.xlu0 %v2905
        %v2907 = vpop.xlane.xlu0 %2906
        %v2908 = vsel %vm700, %v2892, -inf
        %2909 = vmax.xlane.f32.xlu0 %v2908
        %v2910 = vpop.xlane.xlu0 %2909
        %v2911 = vsel %vm700, %v2893, -inf
        %2912 = vmax.xlane.f32.xlu0 %v2911
        %v2913 = vpop.xlane.xlu0 %2912
        %v2914 = vsel %vm700, %v2894, -inf
        %2915 = vmax.xlane.f32.xlu0 %v2914
        %v2916 = vpop.xlane.xlu0 %2915
        %v2917 = vsel %vm700, %v2895, -inf
        %2918 = vmax.xlane.f32.xlu0 %v2917
        %v2919 = vpop.xlane.xlu0 %2918
        %s2920 = sld [smem:[#allocation7 + $0x15]]
        %v2921 = vstv %s2920
        %v2922 = vadd.f32 %v2898, %v2921
        %v2923 = vadd.f32 %v2901, %v2921
        %v2924 = vadd.f32 %v2904, %v2921
        %v2925 = vadd.f32 %v2907, %v2921
        %v2926 = vadd.f32 %v2910, %v2921
        %v2927 = vadd.f32 %v2913, %v2921
        %v2928 = vadd.f32 %v2916, %v2921
        %v2929 = vadd.f32 %v2919, %v2921
        %s2930 = sld [smem:[#allocation6 + $0x42]]
        %v2931 = vstv %s2930
        %v2932 = vmul.f32 %v2931, %v858
        %v2933 = vmul.f32 %v2931, %v859
        %v2934 = vmul.f32 %v2931, %v860
        %v2935 = vmul.f32 %v2931, %v861
        %v2936 = vmul.f32 %v2931, %v862
        %v2937 = vmul.f32 %v2931, %v863
        %v2938 = vmul.f32 %v2931, %v864
        %v2939 = vmul.f32 %v2931, %v865
        %s2940 = sld [smem:[#allocation6 + $0x43]]
        %v2941 = vstv %s2940
        %v2942 = vmul.f32 %v2941, %v922
        %v2943 = vmul.f32 %v2941, %v923
        %v2944 = vmul.f32 %v2941, %v924
        %v2945 = vmul.f32 %v2941, %v925
        %v2946 = vmul.f32 %v2941, %v926
        %v2947 = vmul.f32 %v2941, %v927
        %v2948 = vmul.f32 %v2941, %v928
        %v2949 = vmul.f32 %v2941, %v929
        %v2950 = vadd.f32 %v2932, %v2942
        %v2951 = vadd.f32 %v2933, %v2943
        %v2952 = vadd.f32 %v2934, %v2944
        %v2953 = vadd.f32 %v2935, %v2945
        %v2954 = vadd.f32 %v2936, %v2946
        %v2955 = vadd.f32 %v2937, %v2947
        %v2956 = vadd.f32 %v2938, %v2948
        %v2957 = vadd.f32 %v2939, %v2949
        %s2958 = sld [smem:[#allocation6 + $0x44]]
        %v2959 = vstv %s2958
        %v2960 = vmul.f32 %v2959, %v986
        %v2961 = vmul.f32 %v2959, %v987
        %v2962 = vmul.f32 %v2959, %v988
        %v2963 = vmul.f32 %v2959, %v989
        %v2964 = vmul.f32 %v2959, %v990
        %v2965 = vmul.f32 %v2959, %v991
        %v2966 = vmul.f32 %v2959, %v992
        %v2967 = vmul.f32 %v2959, %v993
        %v2968 = vadd.f32 %v2950, %v2960
        %v2969 = vadd.f32 %v2951, %v2961
        %v2970 = vadd.f32 %v2952, %v2962
        %v2971 = vadd.f32 %v2953, %v2963
        %v2972 = vadd.f32 %v2954, %v2964
        %v2973 = vadd.f32 %v2955, %v2965
        %v2974 = vadd.f32 %v2956, %v2966
        %v2975 = vadd.f32 %v2957, %v2967
        %v2976 = vadd.f32 %v2968, %v794
        %v2977 = vadd.f32 %v2969, %v795
        %v2978 = vadd.f32 %v2970, %v796
        %v2979 = vadd.f32 %v2971, %v797
        %v2980 = vadd.f32 %v2972, %v798
        %v2981 = vadd.f32 %v2973, %v799
        %v2982 = vadd.f32 %v2974, %v800
        %v2983 = vadd.f32 %v2975, %v801
        %v2984 = vsel %vm700, %v2976, -inf
        %2985 = vmax.xlane.f32.xlu0 %v2984
        %v2986 = vpop.xlane.xlu0 %2985
        %v2987 = vsel %vm700, %v2977, -inf
        %2988 = vmax.xlane.f32.xlu0 %v2987
        %v2989 = vpop.xlane.xlu0 %2988
        %v2990 = vsel %vm700, %v2978, -inf
        %2991 = vmax.xlane.f32.xlu0 %v2990
        %v2992 = vpop.xlane.xlu0 %2991
        %v2993 = vsel %vm700, %v2979, -inf
        %2994 = vmax.xlane.f32.xlu0 %v2993
        %v2995 = vpop.xlane.xlu0 %2994
        %v2996 = vsel %vm700, %v2980, -inf
        %2997 = vmax.xlane.f32.xlu0 %v2996
        %v2998 = vpop.xlane.xlu0 %2997
        %v2999 = vsel %vm700, %v2981, -inf
        %3000 = vmax.xlane.f32.xlu0 %v2999
        %v3001 = vpop.xlane.xlu0 %3000
        %v3002 = vsel %vm700, %v2982, -inf
        %3003 = vmax.xlane.f32.xlu0 %v3002
        %v3004 = vpop.xlane.xlu0 %3003
        %v3005 = vsel %vm700, %v2983, -inf
        %3006 = vmax.xlane.f32.xlu0 %v3005
        %v3007 = vpop.xlane.xlu0 %3006
        %s3008 = sld [smem:[#allocation7 + $0x16]]
        %v3009 = vstv %s3008
        %v3010 = vadd.f32 %v2986, %v3009
        %v3011 = vadd.f32 %v2989, %v3009
        %v3012 = vadd.f32 %v2992, %v3009
        %v3013 = vadd.f32 %v2995, %v3009
        %v3014 = vadd.f32 %v2998, %v3009
        %v3015 = vadd.f32 %v3001, %v3009
        %v3016 = vadd.f32 %v3004, %v3009
        %v3017 = vadd.f32 %v3007, %v3009
        %s3018 = sld [smem:[#allocation6 + $0x45]]
        %v3019 = vstv %s3018
        %v3020 = vmul.f32 %v3019, %v858
        %v3021 = vmul.f32 %v3019, %v859
        %v3022 = vmul.f32 %v3019, %v860
        %v3023 = vmul.f32 %v3019, %v861
        %v3024 = vmul.f32 %v3019, %v862
        %v3025 = vmul.f32 %v3019, %v863
        %v3026 = vmul.f32 %v3019, %v864
        %v3027 = vmul.f32 %v3019, %v865
        %s3028 = sld [smem:[#allocation6 + $0x46]]
        %v3029 = vstv %s3028
        %v3030 = vmul.f32 %v3029, %v922
        %v3031 = vmul.f32 %v3029, %v923
        %v3032 = vmul.f32 %v3029, %v924
        %v3033 = vmul.f32 %v3029, %v925
        %v3034 = vmul.f32 %v3029, %v926
        %v3035 = vmul.f32 %v3029, %v927
        %v3036 = vmul.f32 %v3029, %v928
        %v3037 = vmul.f32 %v3029, %v929
        %v3038 = vadd.f32 %v3020, %v3030
        %v3039 = vadd.f32 %v3021, %v3031
        %v3040 = vadd.f32 %v3022, %v3032
        %v3041 = vadd.f32 %v3023, %v3033
        %v3042 = vadd.f32 %v3024, %v3034
        %v3043 = vadd.f32 %v3025, %v3035
        %v3044 = vadd.f32 %v3026, %v3036
        %v3045 = vadd.f32 %v3027, %v3037
        %s3046 = sld [smem:[#allocation6 + $0x47]]
        %v3047 = vstv %s3046
        %v3048 = vmul.f32 %v3047, %v986
        %v3049 = vmul.f32 %v3047, %v987
        %v3050 = vmul.f32 %v3047, %v988
        %v3051 = vmul.f32 %v3047, %v989
        %v3052 = vmul.f32 %v3047, %v990
        %v3053 = vmul.f32 %v3047, %v991
        %v3054 = vmul.f32 %v3047, %v992
        %v3055 = vmul.f32 %v3047, %v993
        %v3056 = vadd.f32 %v3038, %v3048
        %v3057 = vadd.f32 %v3039, %v3049
        %v3058 = vadd.f32 %v3040, %v3050
        %v3059 = vadd.f32 %v3041, %v3051
        %v3060 = vadd.f32 %v3042, %v3052
        %v3061 = vadd.f32 %v3043, %v3053
        %v3062 = vadd.f32 %v3044, %v3054
        %v3063 = vadd.f32 %v3045, %v3055
        %v3064 = vadd.f32 %v3056, %v794
        %v3065 = vadd.f32 %v3057, %v795
        %v3066 = vadd.f32 %v3058, %v796
        %v3067 = vadd.f32 %v3059, %v797
        %v3068 = vadd.f32 %v3060, %v798
        %v3069 = vadd.f32 %v3061, %v799
        %v3070 = vadd.f32 %v3062, %v800
        %v3071 = vadd.f32 %v3063, %v801
        %v3072 = vsel %vm700, %v3064, -inf
        %3073 = vmax.xlane.f32.xlu0 %v3072
        %v3074 = vpop.xlane.xlu0 %3073
        %v3075 = vsel %vm700, %v3065, -inf
        %3076 = vmax.xlane.f32.xlu0 %v3075
        %v3077 = vpop.xlane.xlu0 %3076
        %v3078 = vsel %vm700, %v3066, -inf
        %3079 = vmax.xlane.f32.xlu0 %v3078
        %v3080 = vpop.xlane.xlu0 %3079
        %v3081 = vsel %vm700, %v3067, -inf
        %3082 = vmax.xlane.f32.xlu0 %v3081
        %v3083 = vpop.xlane.xlu0 %3082
        %v3084 = vsel %vm700, %v3068, -inf
        %3085 = vmax.xlane.f32.xlu0 %v3084
        %v3086 = vpop.xlane.xlu0 %3085
        %v3087 = vsel %vm700, %v3069, -inf
        %3088 = vmax.xlane.f32.xlu0 %v3087
        %v3089 = vpop.xlane.xlu0 %3088
        %v3090 = vsel %vm700, %v3070, -inf
        %3091 = vmax.xlane.f32.xlu0 %v3090
        %v3092 = vpop.xlane.xlu0 %3091
        %v3093 = vsel %vm700, %v3071, -inf
        %3094 = vmax.xlane.f32.xlu0 %v3093
        %v3095 = vpop.xlane.xlu0 %3094
        %s3096 = sld [smem:[#allocation7 + $0x17]]
        %v3097 = vstv %s3096
        %v3098 = vadd.f32 %v3074, %v3097
        %v3099 = vadd.f32 %v3077, %v3097
        %v3100 = vadd.f32 %v3080, %v3097
        %v3101 = vadd.f32 %v3083, %v3097
        %v3102 = vadd.f32 %v3086, %v3097
        %v3103 = vadd.f32 %v3089, %v3097
        %v3104 = vadd.f32 %v3092, %v3097
        %v3105 = vadd.f32 %v3095, %v3097
        %s3106 = sld [smem:[#allocation6 + $0x48]]
        %v3107 = vstv %s3106
        %v3108 = vmul.f32 %v3107, %v858
        %v3109 = vmul.f32 %v3107, %v859
        %v3110 = vmul.f32 %v3107, %v860
        %v3111 = vmul.f32 %v3107, %v861
        %v3112 = vmul.f32 %v3107, %v862
        %v3113 = vmul.f32 %v3107, %v863
        %v3114 = vmul.f32 %v3107, %v864
        %v3115 = vmul.f32 %v3107, %v865
        %s3116 = sld [smem:[#allocation6 + $0x49]]
        %v3117 = vstv %s3116
        %v3118 = vmul.f32 %v3117, %v922
        %v3119 = vmul.f32 %v3117, %v923
        %v3120 = vmul.f32 %v3117, %v924
        %v3121 = vmul.f32 %v3117, %v925
        %v3122 = vmul.f32 %v3117, %v926
        %v3123 = vmul.f32 %v3117, %v927
        %v3124 = vmul.f32 %v3117, %v928
        %v3125 = vmul.f32 %v3117, %v929
        %v3126 = vadd.f32 %v3108, %v3118
        %v3127 = vadd.f32 %v3109, %v3119
        %v3128 = vadd.f32 %v3110, %v3120
        %v3129 = vadd.f32 %v3111, %v3121
        %v3130 = vadd.f32 %v3112, %v3122
        %v3131 = vadd.f32 %v3113, %v3123
        %v3132 = vadd.f32 %v3114, %v3124
        %v3133 = vadd.f32 %v3115, %v3125
        %s3134 = sld [smem:[#allocation6 + $0x4a]]
        %v3135 = vstv %s3134
        %v3136 = vmul.f32 %v3135, %v986
        %v3137 = vmul.f32 %v3135, %v987
        %v3138 = vmul.f32 %v3135, %v988
        %v3139 = vmul.f32 %v3135, %v989
        %v3140 = vmul.f32 %v3135, %v990
        %v3141 = vmul.f32 %v3135, %v991
        %v3142 = vmul.f32 %v3135, %v992
        %v3143 = vmul.f32 %v3135, %v993
        %v3144 = vadd.f32 %v3126, %v3136
        %v3145 = vadd.f32 %v3127, %v3137
        %v3146 = vadd.f32 %v3128, %v3138
        %v3147 = vadd.f32 %v3129, %v3139
        %v3148 = vadd.f32 %v3130, %v3140
        %v3149 = vadd.f32 %v3131, %v3141
        %v3150 = vadd.f32 %v3132, %v3142
        %v3151 = vadd.f32 %v3133, %v3143
        %v3152 = vadd.f32 %v3144, %v794
        %v3153 = vadd.f32 %v3145, %v795
        %v3154 = vadd.f32 %v3146, %v796
        %v3155 = vadd.f32 %v3147, %v797
        %v3156 = vadd.f32 %v3148, %v798
        %v3157 = vadd.f32 %v3149, %v799
        %v3158 = vadd.f32 %v3150, %v800
        %v3159 = vadd.f32 %v3151, %v801
        %v3160 = vsel %vm700, %v3152, -inf
        %3161 = vmax.xlane.f32.xlu0 %v3160
        %v3162 = vpop.xlane.xlu0 %3161
        %v3163 = vsel %vm700, %v3153, -inf
        %3164 = vmax.xlane.f32.xlu0 %v3163
        %v3165 = vpop.xlane.xlu0 %3164
        %v3166 = vsel %vm700, %v3154, -inf
        %3167 = vmax.xlane.f32.xlu0 %v3166
        %v3168 = vpop.xlane.xlu0 %3167
        %v3169 = vsel %vm700, %v3155, -inf
        %3170 = vmax.xlane.f32.xlu0 %v3169
        %v3171 = vpop.xlane.xlu0 %3170
        %v3172 = vsel %vm700, %v3156, -inf
        %3173 = vmax.xlane.f32.xlu0 %v3172
        %v3174 = vpop.xlane.xlu0 %3173
        %v3175 = vsel %vm700, %v3157, -inf
        %3176 = vmax.xlane.f32.xlu0 %v3175
        %v3177 = vpop.xlane.xlu0 %3176
        %v3178 = vsel %vm700, %v3158, -inf
        %3179 = vmax.xlane.f32.xlu0 %v3178
        %v3180 = vpop.xlane.xlu0 %3179
        %v3181 = vsel %vm700, %v3159, -inf
        %3182 = vmax.xlane.f32.xlu0 %v3181
        %v3183 = vpop.xlane.xlu0 %3182
        %s3184 = sld [smem:[#allocation7 + $0x18]]
        %v3185 = vstv %s3184
        %v3186 = vadd.f32 %v3162, %v3185
        %v3187 = vadd.f32 %v3165, %v3185
        %v3188 = vadd.f32 %v3168, %v3185
        %v3189 = vadd.f32 %v3171, %v3185
        %v3190 = vadd.f32 %v3174, %v3185
        %v3191 = vadd.f32 %v3177, %v3185
        %v3192 = vadd.f32 %v3180, %v3185
        %v3193 = vadd.f32 %v3183, %v3185
        %s3194 = sld [smem:[#allocation6 + $0x4b]]
        %v3195 = vstv %s3194
        %v3196 = vmul.f32 %v3195, %v858
        %v3197 = vmul.f32 %v3195, %v859
        %v3198 = vmul.f32 %v3195, %v860
        %v3199 = vmul.f32 %v3195, %v861
        %v3200 = vmul.f32 %v3195, %v862
        %v3201 = vmul.f32 %v3195, %v863
        %v3202 = vmul.f32 %v3195, %v864
        %v3203 = vmul.f32 %v3195, %v865
        %s3204 = sld [smem:[#allocation6 + $0x4c]]
        %v3205 = vstv %s3204
        %v3206 = vmul.f32 %v3205, %v922
        %v3207 = vmul.f32 %v3205, %v923
        %v3208 = vmul.f32 %v3205, %v924
        %v3209 = vmul.f32 %v3205, %v925
        %v3210 = vmul.f32 %v3205, %v926
        %v3211 = vmul.f32 %v3205, %v927
        %v3212 = vmul.f32 %v3205, %v928
        %v3213 = vmul.f32 %v3205, %v929
        %v3214 = vadd.f32 %v3196, %v3206
        %v3215 = vadd.f32 %v3197, %v3207
        %v3216 = vadd.f32 %v3198, %v3208
        %v3217 = vadd.f32 %v3199, %v3209
        %v3218 = vadd.f32 %v3200, %v3210
        %v3219 = vadd.f32 %v3201, %v3211
        %v3220 = vadd.f32 %v3202, %v3212
        %v3221 = vadd.f32 %v3203, %v3213
        %s3222 = sld [smem:[#allocation6 + $0x4d]]
        %v3223 = vstv %s3222
        %v3224 = vmul.f32 %v3223, %v986
        %v3225 = vmul.f32 %v3223, %v987
        %v3226 = vmul.f32 %v3223, %v988
        %v3227 = vmul.f32 %v3223, %v989
        %v3228 = vmul.f32 %v3223, %v990
        %v3229 = vmul.f32 %v3223, %v991
        %v3230 = vmul.f32 %v3223, %v992
        %v3231 = vmul.f32 %v3223, %v993
        %v3232 = vadd.f32 %v3214, %v3224
        %v3233 = vadd.f32 %v3215, %v3225
        %v3234 = vadd.f32 %v3216, %v3226
        %v3235 = vadd.f32 %v3217, %v3227
        %v3236 = vadd.f32 %v3218, %v3228
        %v3237 = vadd.f32 %v3219, %v3229
        %v3238 = vadd.f32 %v3220, %v3230
        %v3239 = vadd.f32 %v3221, %v3231
        %v3240 = vadd.f32 %v3232, %v794
        %v3241 = vadd.f32 %v3233, %v795
        %v3242 = vadd.f32 %v3234, %v796
        %v3243 = vadd.f32 %v3235, %v797
        %v3244 = vadd.f32 %v3236, %v798
        %v3245 = vadd.f32 %v3237, %v799
        %v3246 = vadd.f32 %v3238, %v800
        %v3247 = vadd.f32 %v3239, %v801
        %v3248 = vsel %vm700, %v3240, -inf
        %3249 = vmax.xlane.f32.xlu0 %v3248
        %v3250 = vpop.xlane.xlu0 %3249
        %v3251 = vsel %vm700, %v3241, -inf
        %3252 = vmax.xlane.f32.xlu0 %v3251
        %v3253 = vpop.xlane.xlu0 %3252
        %v3254 = vsel %vm700, %v3242, -inf
        %3255 = vmax.xlane.f32.xlu0 %v3254
        %v3256 = vpop.xlane.xlu0 %3255
        %v3257 = vsel %vm700, %v3243, -inf
        %3258 = vmax.xlane.f32.xlu0 %v3257
        %v3259 = vpop.xlane.xlu0 %3258
        %v3260 = vsel %vm700, %v3244, -inf
        %3261 = vmax.xlane.f32.xlu0 %v3260
        %v3262 = vpop.xlane.xlu0 %3261
        %v3263 = vsel %vm700, %v3245, -inf
        %3264 = vmax.xlane.f32.xlu0 %v3263
        %v3265 = vpop.xlane.xlu0 %3264
        %v3266 = vsel %vm700, %v3246, -inf
        %3267 = vmax.xlane.f32.xlu0 %v3266
        %v3268 = vpop.xlane.xlu0 %3267
        %v3269 = vsel %vm700, %v3247, -inf
        %3270 = vmax.xlane.f32.xlu0 %v3269
        %v3271 = vpop.xlane.xlu0 %3270
        %s3272 = sld [smem:[#allocation7 + $0x19]]
        %v3273 = vstv %s3272
        %v3274 = vadd.f32 %v3250, %v3273
        %v3275 = vadd.f32 %v3253, %v3273
        %v3276 = vadd.f32 %v3256, %v3273
        %v3277 = vadd.f32 %v3259, %v3273
        %v3278 = vadd.f32 %v3262, %v3273
        %v3279 = vadd.f32 %v3265, %v3273
        %v3280 = vadd.f32 %v3268, %v3273
        %v3281 = vadd.f32 %v3271, %v3273
        %s3282 = sld [smem:[#allocation6 + $0x4e]]
        %v3283 = vstv %s3282
        %v3284 = vmul.f32 %v3283, %v858
        %v3285 = vmul.f32 %v3283, %v859
        %v3286 = vmul.f32 %v3283, %v860
        %v3287 = vmul.f32 %v3283, %v861
        %v3288 = vmul.f32 %v3283, %v862
        %v3289 = vmul.f32 %v3283, %v863
        %v3290 = vmul.f32 %v3283, %v864
        %v3291 = vmul.f32 %v3283, %v865
        %s3292 = sld [smem:[#allocation6 + $0x4f]]
        %v3293 = vstv %s3292
        %v3294 = vmul.f32 %v3293, %v922
        %v3295 = vmul.f32 %v3293, %v923
        %v3296 = vmul.f32 %v3293, %v924
        %v3297 = vmul.f32 %v3293, %v925
        %v3298 = vmul.f32 %v3293, %v926
        %v3299 = vmul.f32 %v3293, %v927
        %v3300 = vmul.f32 %v3293, %v928
        %v3301 = vmul.f32 %v3293, %v929
        %v3302 = vadd.f32 %v3284, %v3294
        %v3303 = vadd.f32 %v3285, %v3295
        %v3304 = vadd.f32 %v3286, %v3296
        %v3305 = vadd.f32 %v3287, %v3297
        %v3306 = vadd.f32 %v3288, %v3298
        %v3307 = vadd.f32 %v3289, %v3299
        %v3308 = vadd.f32 %v3290, %v3300
        %v3309 = vadd.f32 %v3291, %v3301
        %s3310 = sld [smem:[#allocation6 + $0x50]]
        %v3311 = vstv %s3310
        %v3312 = vmul.f32 %v3311, %v986
        %v3313 = vmul.f32 %v3311, %v987
        %v3314 = vmul.f32 %v3311, %v988
        %v3315 = vmul.f32 %v3311, %v989
        %v3316 = vmul.f32 %v3311, %v990
        %v3317 = vmul.f32 %v3311, %v991
        %v3318 = vmul.f32 %v3311, %v992
        %v3319 = vmul.f32 %v3311, %v993
        %v3320 = vadd.f32 %v3302, %v3312
        %v3321 = vadd.f32 %v3303, %v3313
        %v3322 = vadd.f32 %v3304, %v3314
        %v3323 = vadd.f32 %v3305, %v3315
        %v3324 = vadd.f32 %v3306, %v3316
        %v3325 = vadd.f32 %v3307, %v3317
        %v3326 = vadd.f32 %v3308, %v3318
        %v3327 = vadd.f32 %v3309, %v3319
        %v3328 = vadd.f32 %v3320, %v794
        %v3329 = vadd.f32 %v3321, %v795
        %v3330 = vadd.f32 %v3322, %v796
        %v3331 = vadd.f32 %v3323, %v797
        %v3332 = vadd.f32 %v3324, %v798
        %v3333 = vadd.f32 %v3325, %v799
        %v3334 = vadd.f32 %v3326, %v800
        %v3335 = vadd.f32 %v3327, %v801
        %v3336 = vsel %vm700, %v3328, -inf
        %3337 = vmax.xlane.f32.xlu0 %v3336
        %v3338 = vpop.xlane.xlu0 %3337
        %v3339 = vsel %vm700, %v3329, -inf
        %3340 = vmax.xlane.f32.xlu0 %v3339
        %v3341 = vpop.xlane.xlu0 %3340
        %v3342 = vsel %vm700, %v3330, -inf
        %3343 = vmax.xlane.f32.xlu0 %v3342
        %v3344 = vpop.xlane.xlu0 %3343
        %v3345 = vsel %vm700, %v3331, -inf
        %3346 = vmax.xlane.f32.xlu0 %v3345
        %v3347 = vpop.xlane.xlu0 %3346
        %v3348 = vsel %vm700, %v3332, -inf
        %3349 = vmax.xlane.f32.xlu0 %v3348
        %v3350 = vpop.xlane.xlu0 %3349
        %v3351 = vsel %vm700, %v3333, -inf
        %3352 = vmax.xlane.f32.xlu0 %v3351
        %v3353 = vpop.xlane.xlu0 %3352
        %v3354 = vsel %vm700, %v3334, -inf
        %3355 = vmax.xlane.f32.xlu0 %v3354
        %v3356 = vpop.xlane.xlu0 %3355
        %v3357 = vsel %vm700, %v3335, -inf
        %3358 = vmax.xlane.f32.xlu0 %v3357
        %v3359 = vpop.xlane.xlu0 %3358
        %s3360 = sld [smem:[#allocation7 + $0x1a]]
        %v3361 = vstv %s3360
        %v3362 = vadd.f32 %v3338, %v3361
        %v3363 = vadd.f32 %v3341, %v3361
        %v3364 = vadd.f32 %v3344, %v3361
        %v3365 = vadd.f32 %v3347, %v3361
        %v3366 = vadd.f32 %v3350, %v3361
        %v3367 = vadd.f32 %v3353, %v3361
        %v3368 = vadd.f32 %v3356, %v3361
        %v3369 = vadd.f32 %v3359, %v3361
        %s3370 = sld [smem:[#allocation6 + $0x51]]
        %v3371 = vstv %s3370
        %v3372 = vmul.f32 %v3371, %v858
        %v3373 = vmul.f32 %v3371, %v859
        %v3374 = vmul.f32 %v3371, %v860
        %v3375 = vmul.f32 %v3371, %v861
        %v3376 = vmul.f32 %v3371, %v862
        %v3377 = vmul.f32 %v3371, %v863
        %v3378 = vmul.f32 %v3371, %v864
        %v3379 = vmul.f32 %v3371, %v865
        %s3380 = sld [smem:[#allocation6 + $0x52]]
        %v3381 = vstv %s3380
        %v3382 = vmul.f32 %v3381, %v922
        %v3383 = vmul.f32 %v3381, %v923
        %v3384 = vmul.f32 %v3381, %v924
        %v3385 = vmul.f32 %v3381, %v925
        %v3386 = vmul.f32 %v3381, %v926
        %v3387 = vmul.f32 %v3381, %v927
        %v3388 = vmul.f32 %v3381, %v928
        %v3389 = vmul.f32 %v3381, %v929
        %v3390 = vadd.f32 %v3372, %v3382
        %v3391 = vadd.f32 %v3373, %v3383
        %v3392 = vadd.f32 %v3374, %v3384
        %v3393 = vadd.f32 %v3375, %v3385
        %v3394 = vadd.f32 %v3376, %v3386
        %v3395 = vadd.f32 %v3377, %v3387
        %v3396 = vadd.f32 %v3378, %v3388
        %v3397 = vadd.f32 %v3379, %v3389
        %s3398 = sld [smem:[#allocation6 + $0x53]]
        %v3399 = vstv %s3398
        %v3400 = vmul.f32 %v3399, %v986
        %v3401 = vmul.f32 %v3399, %v987
        %v3402 = vmul.f32 %v3399, %v988
        %v3403 = vmul.f32 %v3399, %v989
        %v3404 = vmul.f32 %v3399, %v990
        %v3405 = vmul.f32 %v3399, %v991
        %v3406 = vmul.f32 %v3399, %v992
        %v3407 = vmul.f32 %v3399, %v993
        %v3408 = vadd.f32 %v3390, %v3400
        %v3409 = vadd.f32 %v3391, %v3401
        %v3410 = vadd.f32 %v3392, %v3402
        %v3411 = vadd.f32 %v3393, %v3403
        %v3412 = vadd.f32 %v3394, %v3404
        %v3413 = vadd.f32 %v3395, %v3405
        %v3414 = vadd.f32 %v3396, %v3406
        %v3415 = vadd.f32 %v3397, %v3407
        %v3416 = vadd.f32 %v3408, %v794
        %v3417 = vadd.f32 %v3409, %v795
        %v3418 = vadd.f32 %v3410, %v796
        %v3419 = vadd.f32 %v3411, %v797
        %v3420 = vadd.f32 %v3412, %v798
        %v3421 = vadd.f32 %v3413, %v799
        %v3422 = vadd.f32 %v3414, %v800
        %v3423 = vadd.f32 %v3415, %v801
        %v3424 = vsel %vm700, %v3416, -inf
        %3425 = vmax.xlane.f32.xlu0 %v3424
        %v3426 = vpop.xlane.xlu0 %3425
        %v3427 = vsel %vm700, %v3417, -inf
        %3428 = vmax.xlane.f32.xlu0 %v3427
        %v3429 = vpop.xlane.xlu0 %3428
        %v3430 = vsel %vm700, %v3418, -inf
        %3431 = vmax.xlane.f32.xlu0 %v3430
        %v3432 = vpop.xlane.xlu0 %3431
        %v3433 = vsel %vm700, %v3419, -inf
        %3434 = vmax.xlane.f32.xlu0 %v3433
        %v3435 = vpop.xlane.xlu0 %3434
        %v3436 = vsel %vm700, %v3420, -inf
        %3437 = vmax.xlane.f32.xlu0 %v3436
        %v3438 = vpop.xlane.xlu0 %3437
        %v3439 = vsel %vm700, %v3421, -inf
        %3440 = vmax.xlane.f32.xlu0 %v3439
        %v3441 = vpop.xlane.xlu0 %3440
        %v3442 = vsel %vm700, %v3422, -inf
        %3443 = vmax.xlane.f32.xlu0 %v3442
        %v3444 = vpop.xlane.xlu0 %3443
        %v3445 = vsel %vm700, %v3423, -inf
        %3446 = vmax.xlane.f32.xlu0 %v3445
        %v3447 = vpop.xlane.xlu0 %3446
        %s3448 = sld [smem:[#allocation7 + $0x1b]]
        %v3449 = vstv %s3448
        %v3450 = vadd.f32 %v3426, %v3449
        %v3451 = vadd.f32 %v3429, %v3449
        %v3452 = vadd.f32 %v3432, %v3449
        %v3453 = vadd.f32 %v3435, %v3449
        %v3454 = vadd.f32 %v3438, %v3449
        %v3455 = vadd.f32 %v3441, %v3449
        %v3456 = vadd.f32 %v3444, %v3449
        %v3457 = vadd.f32 %v3447, %v3449
        %s3458 = sld [smem:[#allocation6 + $0x54]]
        %v3459 = vstv %s3458
        %v3460 = vmul.f32 %v3459, %v858
        %v3461 = vmul.f32 %v3459, %v859
        %v3462 = vmul.f32 %v3459, %v860
        %v3463 = vmul.f32 %v3459, %v861
        %v3464 = vmul.f32 %v3459, %v862
        %v3465 = vmul.f32 %v3459, %v863
        %v3466 = vmul.f32 %v3459, %v864
        %v3467 = vmul.f32 %v3459, %v865
        %s3468 = sld [smem:[#allocation6 + $0x55]]
        %v3469 = vstv %s3468
        %v3470 = vmul.f32 %v3469, %v922
        %v3471 = vmul.f32 %v3469, %v923
        %v3472 = vmul.f32 %v3469, %v924
        %v3473 = vmul.f32 %v3469, %v925
        %v3474 = vmul.f32 %v3469, %v926
        %v3475 = vmul.f32 %v3469, %v927
        %v3476 = vmul.f32 %v3469, %v928
        %v3477 = vmul.f32 %v3469, %v929
        %v3478 = vadd.f32 %v3460, %v3470
        %v3479 = vadd.f32 %v3461, %v3471
        %v3480 = vadd.f32 %v3462, %v3472
        %v3481 = vadd.f32 %v3463, %v3473
        %v3482 = vadd.f32 %v3464, %v3474
        %v3483 = vadd.f32 %v3465, %v3475
        %v3484 = vadd.f32 %v3466, %v3476
        %v3485 = vadd.f32 %v3467, %v3477
        %s3486 = sld [smem:[#allocation6 + $0x56]]
        %v3487 = vstv %s3486
        %v3488 = vmul.f32 %v3487, %v986
        %v3489 = vmul.f32 %v3487, %v987
        %v3490 = vmul.f32 %v3487, %v988
        %v3491 = vmul.f32 %v3487, %v989
        %v3492 = vmul.f32 %v3487, %v990
        %v3493 = vmul.f32 %v3487, %v991
        %v3494 = vmul.f32 %v3487, %v992
        %v3495 = vmul.f32 %v3487, %v993
        %v3496 = vadd.f32 %v3478, %v3488
        %v3497 = vadd.f32 %v3479, %v3489
        %v3498 = vadd.f32 %v3480, %v3490
        %v3499 = vadd.f32 %v3481, %v3491
        %v3500 = vadd.f32 %v3482, %v3492
        %v3501 = vadd.f32 %v3483, %v3493
        %v3502 = vadd.f32 %v3484, %v3494
        %v3503 = vadd.f32 %v3485, %v3495
        %v3504 = vadd.f32 %v3496, %v794
        %v3505 = vadd.f32 %v3497, %v795
        %v3506 = vadd.f32 %v3498, %v796
        %v3507 = vadd.f32 %v3499, %v797
        %v3508 = vadd.f32 %v3500, %v798
        %v3509 = vadd.f32 %v3501, %v799
        %v3510 = vadd.f32 %v3502, %v800
        %v3511 = vadd.f32 %v3503, %v801
        %v3512 = vsel %vm700, %v3504, -inf
        %3513 = vmax.xlane.f32.xlu0 %v3512
        %v3514 = vpop.xlane.xlu0 %3513
        %v3515 = vsel %vm700, %v3505, -inf
        %3516 = vmax.xlane.f32.xlu0 %v3515
        %v3517 = vpop.xlane.xlu0 %3516
        %v3518 = vsel %vm700, %v3506, -inf
        %3519 = vmax.xlane.f32.xlu0 %v3518
        %v3520 = vpop.xlane.xlu0 %3519
        %v3521 = vsel %vm700, %v3507, -inf
        %3522 = vmax.xlane.f32.xlu0 %v3521
        %v3523 = vpop.xlane.xlu0 %3522
        %v3524 = vsel %vm700, %v3508, -inf
        %3525 = vmax.xlane.f32.xlu0 %v3524
        %v3526 = vpop.xlane.xlu0 %3525
        %v3527 = vsel %vm700, %v3509, -inf
        %3528 = vmax.xlane.f32.xlu0 %v3527
        %v3529 = vpop.xlane.xlu0 %3528
        %v3530 = vsel %vm700, %v3510, -inf
        %3531 = vmax.xlane.f32.xlu0 %v3530
        %v3532 = vpop.xlane.xlu0 %3531
        %v3533 = vsel %vm700, %v3511, -inf
        %3534 = vmax.xlane.f32.xlu0 %v3533
        %v3535 = vpop.xlane.xlu0 %3534
        %s3536 = sld [smem:[#allocation7 + $0x1c]]
        %v3537 = vstv %s3536
        %v3538 = vadd.f32 %v3514, %v3537
        %v3539 = vadd.f32 %v3517, %v3537
        %v3540 = vadd.f32 %v3520, %v3537
        %v3541 = vadd.f32 %v3523, %v3537
        %v3542 = vadd.f32 %v3526, %v3537
        %v3543 = vadd.f32 %v3529, %v3537
        %v3544 = vadd.f32 %v3532, %v3537
        %v3545 = vadd.f32 %v3535, %v3537
        %s3546 = sld [smem:[#allocation6 + $0x57]]
        %v3547 = vstv %s3546
        %v3548 = vmul.f32 %v3547, %v858
        %v3549 = vmul.f32 %v3547, %v859
        %v3550 = vmul.f32 %v3547, %v860
        %v3551 = vmul.f32 %v3547, %v861
        %v3552 = vmul.f32 %v3547, %v862
        %v3553 = vmul.f32 %v3547, %v863
        %v3554 = vmul.f32 %v3547, %v864
        %v3555 = vmul.f32 %v3547, %v865
        %s3556 = sld [smem:[#allocation6 + $0x58]]
        %v3557 = vstv %s3556
        %v3558 = vmul.f32 %v3557, %v922
        %v3559 = vmul.f32 %v3557, %v923
        %v3560 = vmul.f32 %v3557, %v924
        %v3561 = vmul.f32 %v3557, %v925
        %v3562 = vmul.f32 %v3557, %v926
        %v3563 = vmul.f32 %v3557, %v927
        %v3564 = vmul.f32 %v3557, %v928
        %v3565 = vmul.f32 %v3557, %v929
        %v3566 = vadd.f32 %v3548, %v3558
        %v3567 = vadd.f32 %v3549, %v3559
        %v3568 = vadd.f32 %v3550, %v3560
        %v3569 = vadd.f32 %v3551, %v3561
        %v3570 = vadd.f32 %v3552, %v3562
        %v3571 = vadd.f32 %v3553, %v3563
        %v3572 = vadd.f32 %v3554, %v3564
        %v3573 = vadd.f32 %v3555, %v3565
        %s3574 = sld [smem:[#allocation6 + $0x59]]
        %v3575 = vstv %s3574
        %v3576 = vmul.f32 %v3575, %v986
        %v3577 = vmul.f32 %v3575, %v987
        %v3578 = vmul.f32 %v3575, %v988
        %v3579 = vmul.f32 %v3575, %v989
        %v3580 = vmul.f32 %v3575, %v990
        %v3581 = vmul.f32 %v3575, %v991
        %v3582 = vmul.f32 %v3575, %v992
        %v3583 = vmul.f32 %v3575, %v993
        %v3584 = vadd.f32 %v3566, %v3576
        %v3585 = vadd.f32 %v3567, %v3577
        %v3586 = vadd.f32 %v3568, %v3578
        %v3587 = vadd.f32 %v3569, %v3579
        %v3588 = vadd.f32 %v3570, %v3580
        %v3589 = vadd.f32 %v3571, %v3581
        %v3590 = vadd.f32 %v3572, %v3582
        %v3591 = vadd.f32 %v3573, %v3583
        %v3592 = vadd.f32 %v3584, %v794
        %v3593 = vadd.f32 %v3585, %v795
        %v3594 = vadd.f32 %v3586, %v796
        %v3595 = vadd.f32 %v3587, %v797
        %v3596 = vadd.f32 %v3588, %v798
        %v3597 = vadd.f32 %v3589, %v799
        %v3598 = vadd.f32 %v3590, %v800
        %v3599 = vadd.f32 %v3591, %v801
        %v3600 = vsel %vm700, %v3592, -inf
        %3601 = vmax.xlane.f32.xlu0 %v3600
        %v3602 = vpop.xlane.xlu0 %3601
        %v3603 = vsel %vm700, %v3593, -inf
        %3604 = vmax.xlane.f32.xlu0 %v3603
        %v3605 = vpop.xlane.xlu0 %3604
        %v3606 = vsel %vm700, %v3594, -inf
        %3607 = vmax.xlane.f32.xlu0 %v3606
        %v3608 = vpop.xlane.xlu0 %3607
        %v3609 = vsel %vm700, %v3595, -inf
        %3610 = vmax.xlane.f32.xlu0 %v3609
        %v3611 = vpop.xlane.xlu0 %3610
        %v3612 = vsel %vm700, %v3596, -inf
        %3613 = vmax.xlane.f32.xlu0 %v3612
        %v3614 = vpop.xlane.xlu0 %3613
        %v3615 = vsel %vm700, %v3597, -inf
        %3616 = vmax.xlane.f32.xlu0 %v3615
        %v3617 = vpop.xlane.xlu0 %3616
        %v3618 = vsel %vm700, %v3598, -inf
        %3619 = vmax.xlane.f32.xlu0 %v3618
        %v3620 = vpop.xlane.xlu0 %3619
        %v3621 = vsel %vm700, %v3599, -inf
        %3622 = vmax.xlane.f32.xlu0 %v3621
        %v3623 = vpop.xlane.xlu0 %3622
        %s3624 = sld [smem:[#allocation7 + $0x1d]]
        %v3625 = vstv %s3624
        %v3626 = vadd.f32 %v3602, %v3625
        %v3627 = vadd.f32 %v3605, %v3625
        %v3628 = vadd.f32 %v3608, %v3625
        %v3629 = vadd.f32 %v3611, %v3625
        %v3630 = vadd.f32 %v3614, %v3625
        %v3631 = vadd.f32 %v3617, %v3625
        %v3632 = vadd.f32 %v3620, %v3625
        %v3633 = vadd.f32 %v3623, %v3625
        %s3634 = sld [smem:[#allocation6 + $0x5a]]
        %v3635 = vstv %s3634
        %v3636 = vmul.f32 %v3635, %v858
        %v3637 = vmul.f32 %v3635, %v859
        %v3638 = vmul.f32 %v3635, %v860
        %v3639 = vmul.f32 %v3635, %v861
        %v3640 = vmul.f32 %v3635, %v862
        %v3641 = vmul.f32 %v3635, %v863
        %v3642 = vmul.f32 %v3635, %v864
        %v3643 = vmul.f32 %v3635, %v865
        %s3644 = sld [smem:[#allocation6 + $0x5b]]
        %v3645 = vstv %s3644
        %v3646 = vmul.f32 %v3645, %v922
        %v3647 = vmul.f32 %v3645, %v923
        %v3648 = vmul.f32 %v3645, %v924
        %v3649 = vmul.f32 %v3645, %v925
        %v3650 = vmul.f32 %v3645, %v926
        %v3651 = vmul.f32 %v3645, %v927
        %v3652 = vmul.f32 %v3645, %v928
        %v3653 = vmul.f32 %v3645, %v929
        %v3654 = vadd.f32 %v3636, %v3646
        %v3655 = vadd.f32 %v3637, %v3647
        %v3656 = vadd.f32 %v3638, %v3648
        %v3657 = vadd.f32 %v3639, %v3649
        %v3658 = vadd.f32 %v3640, %v3650
        %v3659 = vadd.f32 %v3641, %v3651
        %v3660 = vadd.f32 %v3642, %v3652
        %v3661 = vadd.f32 %v3643, %v3653
        %s3662 = sld [smem:[#allocation6 + $0x5c]]
        %v3663 = vstv %s3662
        %v3664 = vmul.f32 %v3663, %v986
        %v3665 = vmul.f32 %v3663, %v987
        %v3666 = vmul.f32 %v3663, %v988
        %v3667 = vmul.f32 %v3663, %v989
        %v3668 = vmul.f32 %v3663, %v990
        %v3669 = vmul.f32 %v3663, %v991
        %v3670 = vmul.f32 %v3663, %v992
        %v3671 = vmul.f32 %v3663, %v993
        %v3672 = vadd.f32 %v3654, %v3664
        %v3673 = vadd.f32 %v3655, %v3665
        %v3674 = vadd.f32 %v3656, %v3666
        %v3675 = vadd.f32 %v3657, %v3667
        %v3676 = vadd.f32 %v3658, %v3668
        %v3677 = vadd.f32 %v3659, %v3669
        %v3678 = vadd.f32 %v3660, %v3670
        %v3679 = vadd.f32 %v3661, %v3671
        %v3680 = vadd.f32 %v3672, %v794
        %v3681 = vadd.f32 %v3673, %v795
        %v3682 = vadd.f32 %v3674, %v796
        %v3683 = vadd.f32 %v3675, %v797
        %v3684 = vadd.f32 %v3676, %v798
        %v3685 = vadd.f32 %v3677, %v799
        %v3686 = vadd.f32 %v3678, %v800
        %v3687 = vadd.f32 %v3679, %v801
        %v3688 = vsel %vm700, %v3680, -inf
        %3689 = vmax.xlane.f32.xlu0 %v3688
        %v3690 = vpop.xlane.xlu0 %3689
        %v3691 = vsel %vm700, %v3681, -inf
        %3692 = vmax.xlane.f32.xlu0 %v3691
        %v3693 = vpop.xlane.xlu0 %3692
        %v3694 = vsel %vm700, %v3682, -inf
        %3695 = vmax.xlane.f32.xlu0 %v3694
        %v3696 = vpop.xlane.xlu0 %3695
        %v3697 = vsel %vm700, %v3683, -inf
        %3698 = vmax.xlane.f32.xlu0 %v3697
        %v3699 = vpop.xlane.xlu0 %3698
        %v3700 = vsel %vm700, %v3684, -inf
        %3701 = vmax.xlane.f32.xlu0 %v3700
        %v3702 = vpop.xlane.xlu0 %3701
        %v3703 = vsel %vm700, %v3685, -inf
        %3704 = vmax.xlane.f32.xlu0 %v3703
        %v3705 = vpop.xlane.xlu0 %3704
        %v3706 = vsel %vm700, %v3686, -inf
        %3707 = vmax.xlane.f32.xlu0 %v3706
        %v3708 = vpop.xlane.xlu0 %3707
        %v3709 = vsel %vm700, %v3687, -inf
        %3710 = vmax.xlane.f32.xlu0 %v3709
        %v3711 = vpop.xlane.xlu0 %3710
        %s3712 = sld [smem:[#allocation7 + $0x1e]]
        %v3713 = vstv %s3712
        %v3714 = vadd.f32 %v3690, %v3713
        %v3715 = vadd.f32 %v3693, %v3713
        %v3716 = vadd.f32 %v3696, %v3713
        %v3717 = vadd.f32 %v3699, %v3713
        %v3718 = vadd.f32 %v3702, %v3713
        %v3719 = vadd.f32 %v3705, %v3713
        %v3720 = vadd.f32 %v3708, %v3713
        %v3721 = vadd.f32 %v3711, %v3713
        %s3722 = sld [smem:[#allocation6 + $0x5d]]
        %v3723 = vstv %s3722
        %v3724 = vmul.f32 %v3723, %v858
        %v3725 = vmul.f32 %v3723, %v859
        %v3726 = vmul.f32 %v3723, %v860
        %v3727 = vmul.f32 %v3723, %v861
        %v3728 = vmul.f32 %v3723, %v862
        %v3729 = vmul.f32 %v3723, %v863
        %v3730 = vmul.f32 %v3723, %v864
        %v3731 = vmul.f32 %v3723, %v865
        %s3732 = sld [smem:[#allocation6 + $0x5e]]
        %v3733 = vstv %s3732
        %v3734 = vmul.f32 %v3733, %v922
        %v3735 = vmul.f32 %v3733, %v923
        %v3736 = vmul.f32 %v3733, %v924
        %v3737 = vmul.f32 %v3733, %v925
        %v3738 = vmul.f32 %v3733, %v926
        %v3739 = vmul.f32 %v3733, %v927
        %v3740 = vmul.f32 %v3733, %v928
        %v3741 = vmul.f32 %v3733, %v929
        %v3742 = vadd.f32 %v3724, %v3734
        %v3743 = vadd.f32 %v3725, %v3735
        %v3744 = vadd.f32 %v3726, %v3736
        %v3745 = vadd.f32 %v3727, %v3737
        %v3746 = vadd.f32 %v3728, %v3738
        %v3747 = vadd.f32 %v3729, %v3739
        %v3748 = vadd.f32 %v3730, %v3740
        %v3749 = vadd.f32 %v3731, %v3741
        %s3750 = sld [smem:[#allocation6 + $0x5f]]
        %v3751 = vstv %s3750
        %v3752 = vmul.f32 %v3751, %v986
        %v3753 = vmul.f32 %v3751, %v987
        %v3754 = vmul.f32 %v3751, %v988
        %v3755 = vmul.f32 %v3751, %v989
        %v3756 = vmul.f32 %v3751, %v990
        %v3757 = vmul.f32 %v3751, %v991
        %v3758 = vmul.f32 %v3751, %v992
        %v3759 = vmul.f32 %v3751, %v993
        %v3760 = vadd.f32 %v3742, %v3752
        %v3761 = vadd.f32 %v3743, %v3753
        %v3762 = vadd.f32 %v3744, %v3754
        %v3763 = vadd.f32 %v3745, %v3755
        %v3764 = vadd.f32 %v3746, %v3756
        %v3765 = vadd.f32 %v3747, %v3757
        %v3766 = vadd.f32 %v3748, %v3758
        %v3767 = vadd.f32 %v3749, %v3759
        %v3768 = vadd.f32 %v3760, %v794
        %v3769 = vadd.f32 %v3761, %v795
        %v3770 = vadd.f32 %v3762, %v796
        %v3771 = vadd.f32 %v3763, %v797
        %v3772 = vadd.f32 %v3764, %v798
        %v3773 = vadd.f32 %v3765, %v799
        %v3774 = vadd.f32 %v3766, %v800
        %v3775 = vadd.f32 %v3767, %v801
        %v3776 = vsel %vm700, %v3768, -inf
        %3777 = vmax.xlane.f32.xlu0 %v3776
        %v3778 = vpop.xlane.xlu0 %3777
        %v3779 = vsel %vm700, %v3769, -inf
        %3780 = vmax.xlane.f32.xlu0 %v3779
        %v3781 = vpop.xlane.xlu0 %3780
        %v3782 = vsel %vm700, %v3770, -inf
        %3783 = vmax.xlane.f32.xlu0 %v3782
        %v3784 = vpop.xlane.xlu0 %3783
        %v3785 = vsel %vm700, %v3771, -inf
        %3786 = vmax.xlane.f32.xlu0 %v3785
        %v3787 = vpop.xlane.xlu0 %3786
        %v3788 = vsel %vm700, %v3772, -inf
        %3789 = vmax.xlane.f32.xlu0 %v3788
        %v3790 = vpop.xlane.xlu0 %3789
        %v3791 = vsel %vm700, %v3773, -inf
        %3792 = vmax.xlane.f32.xlu0 %v3791
        %v3793 = vpop.xlane.xlu0 %3792
        %v3794 = vsel %vm700, %v3774, -inf
        %3795 = vmax.xlane.f32.xlu0 %v3794
        %v3796 = vpop.xlane.xlu0 %3795
        %v3797 = vsel %vm700, %v3775, -inf
        %3798 = vmax.xlane.f32.xlu0 %v3797
        %v3799 = vpop.xlane.xlu0 %3798
        %s3800 = sld [smem:[#allocation7 + $0x1f]]
        %v3801 = vstv %s3800
        %v3802 = vadd.f32 %v3778, %v3801
        %v3803 = vadd.f32 %v3781, %v3801
        %v3804 = vadd.f32 %v3784, %v3801
        %v3805 = vadd.f32 %v3787, %v3801
        %v3806 = vadd.f32 %v3790, %v3801
        %v3807 = vadd.f32 %v3793, %v3801
        %v3808 = vadd.f32 %v3796, %v3801
        %v3809 = vadd.f32 %v3799, %v3801
        %vm3810 = vcmask 7168
        %v3811 = vsel %vm3810, %v1074, %v1162
        %v3812 = vsel %vm3810, %v1075, %v1163
        %v3813 = vsel %vm3810, %v1076, %v1164
        %v3814 = vsel %vm3810, %v1077, %v1165
        %v3815 = vsel %vm3810, %v1078, %v1166
        %v3816 = vsel %vm3810, %v1079, %v1167
        %v3817 = vsel %vm3810, %v1080, %v1168
        %v3818 = vsel %vm3810, %v1081, %v1169
        %vm3819 = vcmask 15360
        %v3820 = vsel %vm3819, %v3811, %v1250
        %v3821 = vsel %vm3819, %v3812, %v1251
        %v3822 = vsel %vm3819, %v3813, %v1252
        %v3823 = vsel %vm3819, %v3814, %v1253
        %v3824 = vsel %vm3819, %v3815, %v1254
        %v3825 = vsel %vm3819, %v3816, %v1255
        %v3826 = vsel %vm3819, %v3817, %v1256
        %v3827 = vsel %vm3819, %v3818, %v1257
        %vm3828 = vcmask 23552
        %v3829 = vsel %vm3828, %v3820, %v1338
        %v3830 = vsel %vm3828, %v3821, %v1339
        %v3831 = vsel %vm3828, %v3822, %v1340
        %v3832 = vsel %vm3828, %v3823, %v1341
        %v3833 = vsel %vm3828, %v3824, %v1342
        %v3834 = vsel %vm3828, %v3825, %v1343
        %v3835 = vsel %vm3828, %v3826, %v1344
        %v3836 = vsel %vm3828, %v3827, %v1345
        %vm3837 = vcmask 31744
        %v3838 = vsel %vm3837, %v3829, %v1426
        %v3839 = vsel %vm3837, %v3830, %v1427
        %v3840 = vsel %vm3837, %v3831, %v1428
        %v3841 = vsel %vm3837, %v3832, %v1429
        %v3842 = vsel %vm3837, %v3833, %v1430
        %v3843 = vsel %vm3837, %v3834, %v1431
        %v3844 = vsel %vm3837, %v3835, %v1432
        %v3845 = vsel %vm3837, %v3836, %v1433
        %vm3846 = vcmask 39936
        %v3847 = vsel %vm3846, %v3838, %v1514
        %v3848 = vsel %vm3846, %v3839, %v1515
        %v3849 = vsel %vm3846, %v3840, %v1516
        %v3850 = vsel %vm3846, %v3841, %v1517
        %v3851 = vsel %vm3846, %v3842, %v1518
        %v3852 = vsel %vm3846, %v3843, %v1519
        %v3853 = vsel %vm3846, %v3844, %v1520
        %v3854 = vsel %vm3846, %v3845, %v1521
        %vm3855 = vcmask 48128
        %v3856 = vsel %vm3855, %v3847, %v1602
        %v3857 = vsel %vm3855, %v3848, %v1603
        %v3858 = vsel %vm3855, %v3849, %v1604
        %v3859 = vsel %vm3855, %v3850, %v1605
        %v3860 = vsel %vm3855, %v3851, %v1606
        %v3861 = vsel %vm3855, %v3852, %v1607
        %v3862 = vsel %vm3855, %v3853, %v1608
        %v3863 = vsel %vm3855, %v3854, %v1609
        %vm3864 = vcmask 56320
        %v3865 = vsel %vm3864, %v3856, %v1690
        %v3866 = vsel %vm3864, %v3857, %v1691
        %v3867 = vsel %vm3864, %v3858, %v1692
        %v3868 = vsel %vm3864, %v3859, %v1693
        %v3869 = vsel %vm3864, %v3860, %v1694
        %v3870 = vsel %vm3864, %v3861, %v1695
        %v3871 = vsel %vm3864, %v3862, %v1696
        %v3872 = vsel %vm3864, %v3863, %v1697
        %vm3873 = vcmask 64512
        %v3874 = vsel %vm3873, %v3865, %v1778
        %v3875 = vsel %vm3873, %v3866, %v1779
        %v3876 = vsel %vm3873, %v3867, %v1780
        %v3877 = vsel %vm3873, %v3868, %v1781
        %v3878 = vsel %vm3873, %v3869, %v1782
        %v3879 = vsel %vm3873, %v3870, %v1783
        %v3880 = vsel %vm3873, %v3871, %v1784
        %v3881 = vsel %vm3873, %v3872, %v1785
        %vm3882 = vcmask 72704
        %v3883 = vsel %vm3882, %v3874, %v1866
        %v3884 = vsel %vm3882, %v3875, %v1867
        %v3885 = vsel %vm3882, %v3876, %v1868
        %v3886 = vsel %vm3882, %v3877, %v1869
        %v3887 = vsel %vm3882, %v3878, %v1870
        %v3888 = vsel %vm3882, %v3879, %v1871
        %v3889 = vsel %vm3882, %v3880, %v1872
        %v3890 = vsel %vm3882, %v3881, %v1873
        %vm3891 = vcmask 80896
        %v3892 = vsel %vm3891, %v3883, %v1954
        %v3893 = vsel %vm3891, %v3884, %v1955
        %v3894 = vsel %vm3891, %v3885, %v1956
        %v3895 = vsel %vm3891, %v3886, %v1957
        %v3896 = vsel %vm3891, %v3887, %v1958
        %v3897 = vsel %vm3891, %v3888, %v1959
        %v3898 = vsel %vm3891, %v3889, %v1960
        %v3899 = vsel %vm3891, %v3890, %v1961
        %vm3900 = vcmask 89088
        %v3901 = vsel %vm3900, %v3892, %v2042
        %v3902 = vsel %vm3900, %v3893, %v2043
        %v3903 = vsel %vm3900, %v3894, %v2044
        %v3904 = vsel %vm3900, %v3895, %v2045
        %v3905 = vsel %vm3900, %v3896, %v2046
        %v3906 = vsel %vm3900, %v3897, %v2047
        %v3907 = vsel %vm3900, %v3898, %v2048
        %v3908 = vsel %vm3900, %v3899, %v2049
        %vm3909 = vcmask 97280
        %v3910 = vsel %vm3909, %v3901, %v2130
        %v3911 = vsel %vm3909, %v3902, %v2131
        %v3912 = vsel %vm3909, %v3903, %v2132
        %v3913 = vsel %vm3909, %v3904, %v2133
        %v3914 = vsel %vm3909, %v3905, %v2134
        %v3915 = vsel %vm3909, %v3906, %v2135
        %v3916 = vsel %vm3909, %v3907, %v2136
        %v3917 = vsel %vm3909, %v3908, %v2137
        %vm3918 = vcmask 105472
        %v3919 = vsel %vm3918, %v3910, %v2218
        %v3920 = vsel %vm3918, %v3911, %v2219
        %v3921 = vsel %vm3918, %v3912, %v2220
        %v3922 = vsel %vm3918, %v3913, %v2221
        %v3923 = vsel %vm3918, %v3914, %v2222
        %v3924 = vsel %vm3918, %v3915, %v2223
        %v3925 = vsel %vm3918, %v3916, %v2224
        %v3926 = vsel %vm3918, %v3917, %v2225
        %vm3927 = vcmask 113664
        %v3928 = vsel %vm3927, %v3919, %v2306
        %v3929 = vsel %vm3927, %v3920, %v2307
        %v3930 = vsel %vm3927, %v3921, %v2308
        %v3931 = vsel %vm3927, %v3922, %v2309
        %v3932 = vsel %vm3927, %v3923, %v2310
        %v3933 = vsel %vm3927, %v3924, %v2311
        %v3934 = vsel %vm3927, %v3925, %v2312
        %v3935 = vsel %vm3927, %v3926, %v2313
        %vm3936 = vcmask 121856
        %v3937 = vsel %vm3936, %v3928, %v2394
        %v3938 = vsel %vm3936, %v3929, %v2395
        %v3939 = vsel %vm3936, %v3930, %v2396
        %v3940 = vsel %vm3936, %v3931, %v2397
        %v3941 = vsel %vm3936, %v3932, %v2398
        %v3942 = vsel %vm3936, %v3933, %v2399
        %v3943 = vsel %vm3936, %v3934, %v2400
        %v3944 = vsel %vm3936, %v3935, %v2401
        %v3945 = vsel %vm3810, %v2482, %v2570
        %v3946 = vsel %vm3810, %v2483, %v2571
        %v3947 = vsel %vm3810, %v2484, %v2572
        %v3948 = vsel %vm3810, %v2485, %v2573
        %v3949 = vsel %vm3810, %v2486, %v2574
        %v3950 = vsel %vm3810, %v2487, %v2575
        %v3951 = vsel %vm3810, %v2488, %v2576
        %v3952 = vsel %vm3810, %v2489, %v2577
        %v3953 = vsel %vm3819, %v3945, %v2658
        %v3954 = vsel %vm3819, %v3946, %v2659
        %v3955 = vsel %vm3819, %v3947, %v2660
        %v3956 = vsel %vm3819, %v3948, %v2661
        %v3957 = vsel %vm3819, %v3949, %v2662
        %v3958 = vsel %vm3819, %v3950, %v2663
        %v3959 = vsel %vm3819, %v3951, %v2664
        %v3960 = vsel %vm3819, %v3952, %v2665
        %v3961 = vsel %vm3828, %v3953, %v2746
        %v3962 = vsel %vm3828, %v3954, %v2747
        %v3963 = vsel %vm3828, %v3955, %v2748
        %v3964 = vsel %vm3828, %v3956, %v2749
        %v3965 = vsel %vm3828, %v3957, %v2750
        %v3966 = vsel %vm3828, %v3958, %v2751
        %v3967 = vsel %vm3828, %v3959, %v2752
        %v3968 = vsel %vm3828, %v3960, %v2753
        %v3969 = vsel %vm3837, %v3961, %v2834
        %v3970 = vsel %vm3837, %v3962, %v2835
        %v3971 = vsel %vm3837, %v3963, %v2836
        %v3972 = vsel %vm3837, %v3964, %v2837
        %v3973 = vsel %vm3837, %v3965, %v2838
        %v3974 = vsel %vm3837, %v3966, %v2839
        %v3975 = vsel %vm3837, %v3967, %v2840
        %v3976 = vsel %vm3837, %v3968, %v2841
        %v3977 = vsel %vm3846, %v3969, %v2922
        %v3978 = vsel %vm3846, %v3970, %v2923
        %v3979 = vsel %vm3846, %v3971, %v2924
        %v3980 = vsel %vm3846, %v3972, %v2925
        %v3981 = vsel %vm3846, %v3973, %v2926
        %v3982 = vsel %vm3846, %v3974, %v2927
        %v3983 = vsel %vm3846, %v3975, %v2928
        %v3984 = vsel %vm3846, %v3976, %v2929
        %v3985 = vsel %vm3855, %v3977, %v3010
        %v3986 = vsel %vm3855, %v3978, %v3011
        %v3987 = vsel %vm3855, %v3979, %v3012
        %v3988 = vsel %vm3855, %v3980, %v3013
        %v3989 = vsel %vm3855, %v3981, %v3014
        %v3990 = vsel %vm3855, %v3982, %v3015
        %v3991 = vsel %vm3855, %v3983, %v3016
        %v3992 = vsel %vm3855, %v3984, %v3017
        %v3993 = vsel %vm3864, %v3985, %v3098
        %v3994 = vsel %vm3864, %v3986, %v3099
        %v3995 = vsel %vm3864, %v3987, %v3100
        %v3996 = vsel %vm3864, %v3988, %v3101
        %v3997 = vsel %vm3864, %v3989, %v3102
        %v3998 = vsel %vm3864, %v3990, %v3103
        %v3999 = vsel %vm3864, %v3991, %v3104
        %v4000 = vsel %vm3864, %v3992, %v3105
        %v4001 = vsel %vm3873, %v3993, %v3186
        %v4002 = vsel %vm3873, %v3994, %v3187
        %v4003 = vsel %vm3873, %v3995, %v3188
        %v4004 = vsel %vm3873, %v3996, %v3189
        %v4005 = vsel %vm3873, %v3997, %v3190
        %v4006 = vsel %vm3873, %v3998, %v3191
        %v4007 = vsel %vm3873, %v3999, %v3192
        %v4008 = vsel %vm3873, %v4000, %v3193
        %v4009 = vsel %vm3882, %v4001, %v3274
        %v4010 = vsel %vm3882, %v4002, %v3275
        %v4011 = vsel %vm3882, %v4003, %v3276
        %v4012 = vsel %vm3882, %v4004, %v3277
        %v4013 = vsel %vm3882, %v4005, %v3278
        %v4014 = vsel %vm3882, %v4006, %v3279
        %v4015 = vsel %vm3882, %v4007, %v3280
        %v4016 = vsel %vm3882, %v4008, %v3281
        %v4017 = vsel %vm3891, %v4009, %v3362
        %v4018 = vsel %vm3891, %v4010, %v3363
        %v4019 = vsel %vm3891, %v4011, %v3364
        %v4020 = vsel %vm3891, %v4012, %v3365
        %v4021 = vsel %vm3891, %v4013, %v3366
        %v4022 = vsel %vm3891, %v4014, %v3367
        %v4023 = vsel %vm3891, %v4015, %v3368
        %v4024 = vsel %vm3891, %v4016, %v3369
        %v4025 = vsel %vm3900, %v4017, %v3450
        %v4026 = vsel %vm3900, %v4018, %v3451
        %v4027 = vsel %vm3900, %v4019, %v3452
        %v4028 = vsel %vm3900, %v4020, %v3453
        %v4029 = vsel %vm3900, %v4021, %v3454
        %v4030 = vsel %vm3900, %v4022, %v3455
        %v4031 = vsel %vm3900, %v4023, %v3456
        %v4032 = vsel %vm3900, %v4024, %v3457
        %v4033 = vsel %vm3909, %v4025, %v3538
        %v4034 = vsel %vm3909, %v4026, %v3539
        %v4035 = vsel %vm3909, %v4027, %v3540
        %v4036 = vsel %vm3909, %v4028, %v3541
        %v4037 = vsel %vm3909, %v4029, %v3542
        %v4038 = vsel %vm3909, %v4030, %v3543
        %v4039 = vsel %vm3909, %v4031, %v3544
        %v4040 = vsel %vm3909, %v4032, %v3545
        %v4041 = vsel %vm3918, %v4033, %v3626
        %v4042 = vsel %vm3918, %v4034, %v3627
        %v4043 = vsel %vm3918, %v4035, %v3628
        %v4044 = vsel %vm3918, %v4036, %v3629
        %v4045 = vsel %vm3918, %v4037, %v3630
        %v4046 = vsel %vm3918, %v4038, %v3631
        %v4047 = vsel %vm3918, %v4039, %v3632
        %v4048 = vsel %vm3918, %v4040, %v3633
        %v4049 = vsel %vm3927, %v4041, %v3714
        %v4050 = vsel %vm3927, %v4042, %v3715
        %v4051 = vsel %vm3927, %v4043, %v3716
        %v4052 = vsel %vm3927, %v4044, %v3717
        %v4053 = vsel %vm3927, %v4045, %v3718
        %v4054 = vsel %vm3927, %v4046, %v3719
        %v4055 = vsel %vm3927, %v4047, %v3720
        %v4056 = vsel %vm3927, %v4048, %v3721
        %v4057 = vsel %vm3936, %v4049, %v3802
        %v4058 = vsel %vm3936, %v4050, %v3803
        %v4059 = vsel %vm3936, %v4051, %v3804
        %v4060 = vsel %vm3936, %v4052, %v3805
        %v4061 = vsel %vm3936, %v4053, %v3806
        %v4062 = vsel %vm3936, %v4054, %v3807
        %v4063 = vsel %vm3936, %v4055, %v3808
        %v4064 = vsel %vm3936, %v4056, %v3809
        %4073 = vrot.lane.b32.xlu0 %v4057, 16
        %v4074 = vpop.permute.xlu0 %4073
        %4075 = vrot.lane.b32.xlu0 %v4058, 16
        %v4076 = vpop.permute.xlu0 %4075
        %4077 = vrot.lane.b32.xlu0 %v4059, 16
        %v4078 = vpop.permute.xlu0 %4077
        %4079 = vrot.lane.b32.xlu0 %v4060, 16
        %v4080 = vpop.permute.xlu0 %4079
        %4081 = vrot.lane.b32.xlu0 %v4061, 16
        %v4082 = vpop.permute.xlu0 %4081
        %4083 = vrot.lane.b32.xlu0 %v4062, 16
        %v4084 = vpop.permute.xlu0 %4083
        %4085 = vrot.lane.b32.xlu0 %v4063, 16
        %v4086 = vpop.permute.xlu0 %4085
        %4087 = vrot.lane.b32.xlu0 %v4064, 16
        %v4088 = vpop.permute.xlu0 %4087
        %vm4097 = vcmask 130048
        %v4098 = vsel %vm4097, %v3937, %v4074
        %v4099 = vsel %vm4097, %v3938, %v4076
        %v4100 = vsel %vm4097, %v3939, %v4078
        %v4101 = vsel %vm4097, %v3940, %v4080
        %v4102 = vsel %vm4097, %v3941, %v4082
        %v4103 = vsel %vm4097, %v3942, %v4084
        %v4104 = vsel %vm4097, %v3943, %v4086
        %v4105 = vsel %vm4097, %v3944, %v4088
        %v4106 = vld [vmem:[%s438] sm:$0xff]
        %v4107 = vld [vmem:[%s438 + $0x8] sm:$0xff]
        %v4108 = vld [vmem:[%s438 + $0x10] sm:$0xff]
        %v4109 = vld [vmem:[%s438 + $0x18] sm:$0xff]
        %v4110 = vld [vmem:[%s438 + $0x20] sm:$0xff]
        %v4111 = vld [vmem:[%s438 + $0x28] sm:$0xff]
        %v4112 = vld [vmem:[%s438 + $0x30] sm:$0xff]
        %v4113 = vld [vmem:[%s438 + $0x38] sm:$0xff]
        %v4114 = vadd.f32 %v4106, %v4098
        %v4115 = vadd.f32 %v4107, %v4099
        %v4116 = vadd.f32 %v4108, %v4100
        %v4117 = vadd.f32 %v4109, %v4101
        %v4118 = vadd.f32 %v4110, %v4102
        %v4119 = vadd.f32 %v4111, %v4103
        %v4120 = vadd.f32 %v4112, %v4104
        %v4121 = vadd.f32 %v4113, %v4105
        %vm4122 = vcmask 261120
        %4123 = vst.msk [vmem:[%s448] sm:$0xff] %vm4122, %v4114
        %4124 = vst.msk [vmem:[%s448 + $0x8] sm:$0xff] %vm4122, %v4115
        %4125 = vst.msk [vmem:[%s448 + $0x10] sm:$0xff] %vm4122, %v4116
        %4126 = vst.msk [vmem:[%s448 + $0x18] sm:$0xff] %vm4122, %v4117
        %4127 = vst.msk [vmem:[%s448 + $0x20] sm:$0xff] %vm4122, %v4118
        %4128 = vst.msk [vmem:[%s448 + $0x28] sm:$0xff] %vm4122, %v4119
        %4129 = vst.msk [vmem:[%s448 + $0x30] sm:$0xff] %vm4122, %v4120
        %4130 = vst.msk [vmem:[%s448 + $0x38] sm:$0xff] %vm4122, %v4121
        %s4131 = smul.u32 8, %s27
        %p4132 = scmp.lt.s32.totalorder %s26, 1
        %s4133 = scalar_select %p4132, %s26, 1
        %p4134 = scmp.lt.s32.totalorder %s4131, 7
        %s4135 = scalar_select %p4134, %s4131, 7
        %s4136 = smul.addr %s4133, 8
        %s4137 = sadd.s32 %s4135, %s4136
        %s4138 = smul.addr %s4137, 8
        %s4139 = scalar_lea.vmem %s8, %s4138
        // Predicated region
        $region69: #{tpu_custom_call.1} parent=51 // pred_check
          %p4140 = pneg %p241
        $region70: #{tpu_custom_call.1} parent=51 // pred_check_branch
          %4142 = sbr.rel (%p4140) target = $region72
        $region71: #{tpu_custom_call.1} parent=51 // pred_region
          %s4143 = smul.u32 8, %s27
        $region72: #{tpu_custom_call.1} parent=51 // pred_fallthru
          _
      $region52: #{tpu_custom_call.1} parent=5 // pred_fallthru
        _
      %p4144 = scmp.le.s32.totalorder 2, %s17
      // Predicated region
      $region73: #{tpu_custom_call.1} parent=5 // pred_check
        %p4145 = pneg %p4144
      $region74: #{tpu_custom_call.1} parent=5 // pred_check_branch
        %4147 = sbr.rel (%p4145) target = $region76
      $region75: #{tpu_custom_call.1} parent=5 // pred_region
        %s4148 = ssub.s32 %s17, 2
        // Predicated region
        $region77: #{tpu_custom_call.1} parent=75 // pred_check
          %p4149 = pneg %p247
        $region78: #{tpu_custom_call.1} parent=75 // pred_check_branch
          %4151 = sbr.rel (%p4149) target = $region80
        $region79: #{tpu_custom_call.1} parent=75 // pred_region
          %s4152 = smul.u32 8, %s29
          %p4153 = scmp.lt.s32.totalorder %s28, 1
          %s4154 = scalar_select %p4153, %s28, 1
          %p4155 = scmp.lt.s32.totalorder %s4152, 7
          %s4156 = scalar_select %p4155, %s4152, 7
          %s4157 = smul.addr %s4154, 8
          %s4158 = sadd.s32 %s4156, %s4157
          %s4159 = smul.addr %s4158, 8
          %s4160 = scalar_lea.vmem %s8, %s4159
        $region80: #{tpu_custom_call.1} parent=75 // pred_fallthru
          _
      $region76: #{tpu_custom_call.1} parent=5 // pred_fallthru
        _
    $region6: #{tpu_custom_call.1} parent=1 // loop_footer
      %s21 = sadd.s32 1, %s17
    $region7: #{tpu_custom_call.1} parent=1 // loop_footer_branch
      %16 = sbr.rel target = $region3
    $region8: #{tpu_custom_call.1} parent=1 // loop_exit
      _
    %4161 = vsyncpa [#allocation3], 1
    %s4162 = scalar_lea.sflag [#allocation3], 1
    %4163 = vsyncpa %s4162, 1
    %4164 = vsyncpa [#allocation5], 1
    %4165 = vsyncpa [#allocation8], 1

</llo_original>
